<compile_context>
chip_gen: v5e
topology: v5e:2x2
jax: 0.10.0
libtpu: 0.0.40
codegen_flags: <defaults>
</compile_context>

<pallas_src>
import functools

import jax
import jax.numpy as jnp
from jax import lax
from jax.experimental import pallas as pl
from jax.experimental.pallas import tpu as pltpu


def _vmem_limit_bytes():
    """Scoped-VMEM budget: ~75% of physical VMEM (per generation), with a safe fallback."""
    phys = None
    try:
        info = pltpu.get_tpu_info()
        for name in ("vmem_capacity_bytes", "vmem_size_bytes", "vmem_bytes"):
            phys = getattr(info, name, None)
            if phys:
                break
    except Exception:
        phys = None
    if not phys:
        phys = 64 * 1024 * 1024          # conservative (v7x-sized) fallback
    return int(max(32 * 1024 * 1024, min(phys * 3 // 4, 100 * 1024 * 1024)))


# ----------------------------------------------------------------------------
# Fused kernel.  Grid = (2*(K-1) recursion phases, n_panels L column-panels).
# Layout: activations are [B*C, V] (batch-folded rows, vertices on lanes), stored in
# panel-major 3-D scratch [n_panels, rows, panel] so only leading-dim indexing is dynamic.
# ----------------------------------------------------------------------------
def _fused_kernel(lap_ref, z0_ref,
                  w1_ref, b1_ref, g1_ref, be1_ref,
                  w2_ref, b2_ref, g2_ref, be2_ref,
                  o_ref,
                  z_a, z_b, y_acc,
                  *, K, B, C1, F1, F2, n_panels, panel, eps, compute_dtype):
    ph = pl.program_id(0)
    p = pl.program_id(1)

    R1 = B * C1            # layer-1 input rows (unpool+concat channels, batch-folded)
    R2 = B * F1            # layer-2 input rows
    n_rec = K - 1          # recursion phases per layer

    def layer_cfg(layer):
        if layer == 0:
            # Z0 = kernel input; Z1 -> z_a, Z2 -> z_b, Z3 -> z_a, ...
            return C1, R1, F1, w1_ref, b1_ref, z0_ref, (z_a, z_b)
        # Z0 = H (written into z_a by the layer-1 finalize); Z1 -> z_b, Z2 -> z_a, ...
        return F1, R2, F2, w2_ref, b2_ref, z_a, (z_b, z_a)

    def phase_body(layer, k):
        cin, rows, fout, w_ref, brows_ref, z0src, bufs = layer_cfg(layer)

        # --- Chebyshev recursion for this column panel of L -----------------------
        # Z_k[:, p] = 2 * Z_{k-1} @ L[:, p-panel] - Z_{k-2}[:, p-panel]
        # (valid because the graph Laplacian is symmetric; contraction over V is
        #  blocked over the same panel decomposition as the scratch layout).
        zprev = z0src if k == 1 else bufs[(k - 2) % 2]
        acc = jnp.zeros((rows, panel), jnp.float32)
        for q in range(n_panels):
            acc = acc + jnp.dot(zprev[q, 0:rows, :],
                                lap_ref[q * panel:(q + 1) * panel, :],
                                preferred_element_type=jnp.float32)
        if k == 1:
            znew = acc
        else:
            zkm2 = z0src if k == 2 else bufs[(k - 1) % 2]
            znew = 2.0 * acc - zkm2[p, 0:rows, :].astype(jnp.float32)   # f32 elementwise
        znew_c = znew.astype(compute_dtype)
        if k < K - 1:                         # the highest order is never read again
            bufs[(k - 1) % 2][p, 0:rows, :] = znew_c

        # --- weight stage: accumulate W_k^T . Z_k straight into the y scratch -----
        w_k = w_ref[k]                        # [fout, cin]
        if k == 1:
            w_0 = w_ref[0]
            z0_p = z0src[p, 0:rows, :]
        for b in range(B):
            rsl = slice(b * cin, (b + 1) * cin)
            osl = slice(b * fout, (b + 1) * fout)
            contrib = jnp.dot(w_k, znew_c[rsl, :], preferred_element_type=jnp.float32)
            if k == 1:
                contrib = contrib + jnp.dot(w_0, z0_p[rsl, :],
                                            preferred_element_type=jnp.float32)
                # first touch of this layer's y for panel p: set (with bias), not add
                y_acc[p, osl, :] = contrib + brows_ref[osl, :]
            else:
                y_acc[p, osl, :] = y_acc[p, osl, :] + contrib

    def finalize(layer, to_output):
        # BatchNorm (train-mode batch stats, biased variance) + ReLU, applied in place
        # from the VMEM-resident accumulator (activation never re-read from HBM).
        _, _, fout, _, _, _, _ = layer_cfg(layer)
        g_ref = g1_ref if layer == 0 else g2_ref
        be_ref = be1_ref if layer == 0 else be2_ref
        count = float(B * n_panels * panel)
        ssum = jnp.zeros((fout, 1), jnp.float32)
        ssq = jnp.zeros((fout, 1), jnp.float32)
        for q in range(n_panels):
            for b in range(B):
                blk = y_acc[q, b * fout:(b + 1) * fout, :]
                ssum = ssum + jnp.sum(blk, axis=1, keepdims=True)
                ssq = ssq + jnp.sum(blk * blk, axis=1, keepdims=True)
        mean = ssum / count
        var = jnp.maximum(ssq / count - mean * mean, 0.0)   # clamp one-pass cancellation
        scale = g_ref[...] * lax.rsqrt(var + eps)
        shift = be_ref[...] - mean * scale
        for q in range(n_panels):
            for b in range(B):
                blk = y_acc[q, b * fout:(b + 1) * fout, :]
                h = jnp.maximum(blk * scale + shift, 0.0)
                if to_output:
                    o_ref[b * fout:(b + 1) * fout, q * panel:(q + 1) * panel] = h
                else:
                    z_a[q, b * fout:(b + 1) * fout, :] = h.astype(compute_dtype)

    for ph_idx in range(2 * n_rec):
        layer = ph_idx // n_rec
        k = ph_idx % n_rec + 1

        @pl.when(ph == ph_idx)
        def _(layer=layer, k=k, ph_idx=ph_idx):
            if layer == 1 and k == 1:
                # every panel of layer-1's last phase is done -> BN + ReLU -> H (in z_a)
                @pl.when(p == 0)
                def _():
                    finalize(0, to_output=False)
            phase_body(layer, k)
            if ph_idx == 2 * n_rec - 1:
                @pl.when(p == n_panels - 1)
                def _():
                    finalize(1, to_output=True)


# ----------------------------------------------------------------------------
# Module forward.
# ----------------------------------------------------------------------------
def spherical_cheb_bn_pool_concat(x, concat_data, lap, params, unpool_factor=4,
                                  eps=1e-5, compute_dtype=jnp.bfloat16,
                                  panel_width=None):
    """x: [B, Vp, Cx]; concat_data: [B, Vp*factor, Ccat]; lap: [V, V] symmetric."""
    B, Vp, Cx = x.shape
    _, V, Ccat = concat_data.shape
    assert V == Vp * unpool_factor
    K, C1, F1 = params["w1"].shape
    K2, C2, F2 = params["w2"].shape
    assert K2 == K and C1 == Cx + Ccat and C2 == F1
    assert K >= 2, "kernel supports Chebyshev order >= 2"

    # --- panel width over the vertex (lane) axis for streaming L column panels ----
    if panel_width is None:
        panel_width = V
        for cand in (512, 256):          # 256-multiples for the v6e/v7x 256-wide MXU
            if V > cand and V % cand == 0:
                panel_width = cand
                break
    if V % panel_width != 0 or (panel_width != V and (panel_width % 128 != 0 or V % 8 != 0)):
        panel_width = V                  # fall back to a single full-width panel
    n_panels = V // panel_width

    # --- unpool + concat + layout plumbing in the wrapper (cheap XLA ops) ----------
    x_rep = jnp.repeat(x, unpool_factor, axis=1)                       # [B, V, Cx]
    z0 = jnp.concatenate([x_rep, concat_data], axis=2)                 # [B, V, C1]
    z0_t = jnp.transpose(z0, (0, 2, 1)).reshape(B * C1, V)             # batch-folded rows
    z0_t = z0_t.reshape(B * C1, n_panels, panel_width).transpose(1, 0, 2)
    z0_t = z0_t.astype(compute_dtype)

    lap_c = lap.astype(compute_dtype)                                  # bf16 L by default

    w1_t = jnp.transpose(params["w1"], (0, 2, 1)).astype(compute_dtype)   # [K, F1, C1]
    w2_t = jnp.transpose(params["w2"], (0, 2, 1)).astype(compute_dtype)   # [K, F2, C2]
    b1_rows = jnp.tile(params["b1"].reshape(1, F1), (B, 1)).reshape(B * F1, 1).astype(jnp.float32)
    b2_rows = jnp.tile(params["b2"].reshape(1, F2), (B, 1)).reshape(B * F2, 1).astype(jnp.float32)
    g1 = params["g1"].reshape(F1, 1).astype(jnp.float32)
    g2 = params["g2"].reshape(F2, 1).astype(jnp.float32)
    be1 = params["beta1"].reshape(F1, 1).astype(jnp.float32)
    be2 = params["beta2"].reshape(F2, 1).astype(jnp.float32)

    n_rec = K - 1
    grid = (2 * n_rec, n_panels)
    r_max = max(B * C1, B * F1)
    y_rows = max(B * F1, B * F2)

    kernel = functools.partial(
        _fused_kernel, K=K, B=B, C1=C1, F1=F1, F2=F2,
        n_panels=n_panels, panel=panel_width, eps=eps, compute_dtype=compute_dtype)

    scratch = [
        pltpu.VMEM((n_panels, r_max, panel_width), compute_dtype),     # Z ping buffer
        pltpu.VMEM((n_panels, r_max, panel_width), compute_dtype),     # Z pong buffer
        pltpu.VMEM((n_panels, y_rows, panel_width), jnp.float32),      # conv/BN accumulator
    ]
    cparams = pltpu.CompilerParams(
        dimension_semantics=("arbitrary", "arbitrary"),
        vmem_limit_bytes=_vmem_limit_bytes())

    def _specs(single_buffer):
        def one_shot(shape):
            idx = (lambda ph, p, _n=len(shape): (0,) * _n)
            if single_buffer:
                return pl.BlockSpec(shape, idx, pipeline_mode=pl.Buffered(1))
            return pl.BlockSpec(shape, idx)
        return [
            # streamed, double-buffered column panels of the Laplacian
            pl.BlockSpec((V, panel_width), lambda ph, p: (0, p)),
            one_shot((n_panels, B * C1, panel_width)),    # unpooled+concatenated input
            one_shot((K, F1, C1)),
            one_shot((B * F1, 1)),
            one_shot((F1, 1)),
            one_shot((F1, 1)),
            one_shot((K, F2, C2)),
            one_shot((B * F2, 1)),
            one_shot((F2, 1)),
            one_shot((F2, 1)),
        ]

    def _run(single_buffer):
        return pl.pallas_call(
            kernel,
            out_shape=jax.ShapeDtypeStruct((B * F2, V), jnp.float32),
            grid=grid,
            in_specs=_specs(single_buffer),
            out_specs=pl.BlockSpec((B * F2, V), lambda ph, p: (0, 0)),
            scratch_shapes=scratch,
            compiler_params=cparams,
        )(lap_c, z0_t, w1_t, b1_rows, g1, be1, w2_t, b2_rows, g2, be2)

    try:
        out_t = _run(True)     # one-shot inputs: single VMEM buffer (pl.Buffered(1))
    except Exception:
        out_t = _run(False)    # fallback if this JAX build rejects pipeline_mode/Buffered(1)

    # Back to the module's [batch, vertices, channels] convention.
    return jnp.transpose(out_t.reshape(B, F2, V), (0, 2, 1))


# ----------------------------------------------------------------------------
# Pure-JAX reference (matches the PyTorch module semantics) for sanity checking.
# ----------------------------------------------------------------------------
def _reference(x, concat_data, lap, params, unpool_factor=4, eps=1e-5):
    def cheb(x, w, b):
        K = w.shape[0]
        x0 = x
        acc = jnp.einsum("bvf,fo->bvo", x0, w[0], precision=lax.Precision.HIGHEST)
        if K > 1:
            x1 = jnp.einsum("uv,bvf->buf", lap, x0, precision=lax.Precision.HIGHEST)
            acc += jnp.einsum("bvf,fo->bvo", x1, w[1], precision=lax.Precision.HIGHEST)
            for k in range(2, K):
                x2 = 2.0 * jnp.einsum("uv,bvf->buf", lap, x1,
                                      precision=lax.Precision.HIGHEST) - x0
                acc += jnp.einsum("bvf,fo->bvo", x2, w[k],
                                  precision=lax.Precision.HIGHEST)
                x0, x1 = x1, x2
        return acc + b[None]

    def bn_relu_ref(x, g, b):
        mean = jnp.mean(x, axis=(0, 1), keepdims=True)
        var = jnp.mean((x - mean) ** 2, axis=(0, 1), keepdims=True)
        return jnp.maximum((x - mean) * lax.rsqrt(var + eps) * g + b, 0.0)

    x = jnp.repeat(x, unpool_factor, axis=1)
    x = jnp.concatenate([x, concat_data], axis=2)
    x = bn_relu_ref(cheb(x, params["w1"], params["b1"]), params["g1"], params["beta1"])
    x = bn_relu_ref(cheb(x, params["w2"], params["b2"]), params["g2"], params["beta2"])
    return x


if __name__ == "__main__":
    key = jax.random.PRNGKey(0)
    ks = jax.random.split(key, 12)

    # Small shapes consistent with the module's forward; V chosen so that the
    # L-panel streaming path (2 panels of width 128) is actually exercised.
    B, Vp, FACTOR = 2, 64, 4
    V = Vp * FACTOR                      # vertices after unpooling = 256
    Cx, Ccat = 4, 4                      # channels of x and of the encoder skip
    in_ch = Cx + Ccat
    mid_ch, out_ch = 16, 8
    K = 3                                # Chebyshev polynomial degree (kernel_size)

    x = jax.random.normal(ks[0], (B, Vp, Cx), jnp.float32)
    concat_data = jax.random.normal(ks[1], (B, V, Ccat), jnp.float32)

    # Deterministic dense symmetric "laplacian" (stands in for the sparse graph laplacian).
    M = jax.random.normal(ks[2], (V, V), jnp.float32)
    lap = (M + M.T) / (2.0 * jnp.sqrt(jnp.float32(V)))

    params = {
        "w1": 0.1 * jax.random.normal(ks[3], (K, in_ch, mid_ch), jnp.float32),
        "b1": 0.1 * jax.random.normal(ks[4], (1, mid_ch), jnp.float32),
        "g1": 1.0 + 0.1 * jax.random.normal(ks[5], (1, 1, mid_ch), jnp.float32),
        "beta1": 0.1 * jax.random.normal(ks[6], (1, 1, mid_ch), jnp.float32),
        "w2": 0.1 * jax.random.normal(ks[7], (K, mid_ch, out_ch), jnp.float32),
        "b2": 0.1 * jax.random.normal(ks[8], (1, out_ch), jnp.float32),
        "g2": 1.0 + 0.1 * jax.random.normal(ks[9], (1, 1, out_ch), jnp.float32),
        "beta2": 0.1 * jax.random.normal(ks[10], (1, 1, out_ch), jnp.float32),
    }

    ref = jax.block_until_ready(_reference(x, concat_data, lap, params, FACTOR))

    def _check(out, rel_tol, label):
        assert out.shape == (B, V, out_ch), (label, out.shape)
        assert bool(jnp.all(jnp.isfinite(out))), label
        rel = float(jnp.linalg.norm(out - ref) / (jnp.linalg.norm(ref) + 1e-12))
        mae = float(jnp.max(jnp.abs(out - ref)))
        # Tolerances leave headroom for MXU operand rounding (bf16 passes); a genuinely
        # wrong kernel produces O(1) relative error and still fails decisively.
        assert rel < rel_tol and mae < 0.25, (label, rel, mae)

    # f32 compute path, streaming L in 2 column panels of width 128.
    out_f32 = spherical_cheb_bn_pool_concat(
        x, concat_data, lap, params, FACTOR,
        compute_dtype=jnp.float32, panel_width=128)
    out_f32 = jax.block_until_ready(out_f32)
    _check(out_f32, 2e-2, "f32")

    # Default bf16 MXU-operand path (f32 accumulation / BN / ReLU), same streaming.
    out_bf16 = spherical_cheb_bn_pool_concat(
        x, concat_data, lap, params, FACTOR, panel_width=128)
    out_bf16 = jax.block_until_ready(out_bf16)
    _check(out_bf16, 4e-2, "bf16")

    print("KERNEL_OK")
</pallas_src>

<mosaic_0001>
module attributes {stable_mosaic.version = 11 : i64} {
  func.func @_fused_kernel(%arg0: i32, %arg1: i32, %arg2: memref<256x128xf32, #tpu.memory_space<vmem>>, %arg3: memref<2x16x128xf32, #tpu.memory_space<vmem>>, %arg4: memref<3x16x8xf32, #tpu.memory_space<vmem>>, %arg5: memref<32x1xf32, #tpu.memory_space<vmem>>, %arg6: memref<16x1xf32, #tpu.memory_space<vmem>>, %arg7: memref<16x1xf32, #tpu.memory_space<vmem>>, %arg8: memref<3x8x16xf32, #tpu.memory_space<vmem>>, %arg9: memref<16x1xf32, #tpu.memory_space<vmem>>, %arg10: memref<8x1xf32, #tpu.memory_space<vmem>>, %arg11: memref<8x1xf32, #tpu.memory_space<vmem>>, %arg12: memref<16x256xf32, #tpu.memory_space<vmem>>, %arg13: memref<2x32x128xf32, #tpu.memory_space<vmem>>, %arg14: memref<2x32x128xf32, #tpu.memory_space<vmem>>, %arg15: memref<2x32x128xf32, #tpu.memory_space<vmem>>) attributes {dimension_semantics = [#tpu.dimension_semantics<arbitrary>, #tpu.dimension_semantics<arbitrary>], iteration_bounds = array<i64: 4, 2>, scalar_prefetch = 0 : i64, scratch_operands = 3 : i64, tpu.core_type = #tpu.core_type<tc>, window_params = [{transform_indices = @transform_0, window_bounds = array<i64: 256, 128>}, {pipeline_mode = #tpu.pipeline_mode<synchronous>, transform_indices = @transform_1, window_bounds = array<i64: 2, 16, 128>}, {pipeline_mode = #tpu.pipeline_mode<synchronous>, transform_indices = @transform_2, window_bounds = array<i64: 3, 16, 8>}, {pipeline_mode = #tpu.pipeline_mode<synchronous>, transform_indices = @transform_3, window_bounds = array<i64: 32, 1>}, {pipeline_mode = #tpu.pipeline_mode<synchronous>, transform_indices = @transform_4, window_bounds = array<i64: 16, 1>}, {pipeline_mode = #tpu.pipeline_mode<synchronous>, transform_indices = @transform_5, window_bounds = array<i64: 16, 1>}, {pipeline_mode = #tpu.pipeline_mode<synchronous>, transform_indices = @transform_6, window_bounds = array<i64: 3, 8, 16>}, {pipeline_mode = #tpu.pipeline_mode<synchronous>, transform_indices = @transform_7, window_bounds = array<i64: 16, 1>}, {pipeline_mode = #tpu.pipeline_mode<synchronous>, transform_indices = @transform_8, window_bounds = array<i64: 8, 1>}, {pipeline_mode = #tpu.pipeline_mode<synchronous>, transform_indices = @transform_9, window_bounds = array<i64: 8, 1>}, {pipeline_mode = #tpu.pipeline_mode<synchronous>, transform_indices = @transform_10, window_bounds = array<i64: 16, 256>}]} {
    %c0_i32 = arith.constant 0 : i32
    %0 = arith.cmpi eq, %arg0, %c0_i32 : i32
    %1 = arith.extui %0 : i1 to i32
    %c0_i32_0 = arith.constant 0 : i32
    %2 = arith.cmpi ne, %1, %c0_i32_0 : i32
    scf.if %2 {
      %cst = arith.constant 0.000000e+00 : f32
      %12 = vector.broadcast %cst : f32 to vector<16x128xf32>
      %c0 = arith.constant 0 : index
      %c0_4 = arith.constant 0 : index
      %c0_5 = arith.constant 0 : index
      %13 = vector.load %arg3[%c0, %c0_4, %c0_5] : memref<2x16x128xf32, #tpu.memory_space<vmem>>, vector<1x16x128xf32>
      %14 = vector.shape_cast %13 : vector<1x16x128xf32> to vector<16x128xf32>
      %c0_6 = arith.constant 0 : index
      %c0_7 = arith.constant 0 : index
      %15 = vector.load %arg2[%c0_6, %c0_7] : memref<256x128xf32, #tpu.memory_space<vmem>>, vector<128x128xf32>
      %cst_8 = arith.constant dense<0.000000e+00> : vector<16x128xf32>
      %16 = tpu.matmul %14, %15, %cst_8 {dimension_numbers = #tpu.dot_dimension_numbers<[1], [0], [0], [1], [0, 0, 1, 1], [], []>} : vector<16x128xf32>, vector<128x128xf32>, vector<16x128xf32> -> vector<16x128xf32>
      %17 = arith.addf %12, %16 : vector<16x128xf32>
      %c1 = arith.constant 1 : index
      %c0_9 = arith.constant 0 : index
      %c0_10 = arith.constant 0 : index
      %18 = vector.load %arg3[%c1, %c0_9, %c0_10] : memref<2x16x128xf32, #tpu.memory_space<vmem>>, vector<1x16x128xf32>
      %19 = vector.shape_cast %18 : vector<1x16x128xf32> to vector<16x128xf32>
      %c128 = arith.constant 128 : index
      %c0_11 = arith.constant 0 : index
      %20 = vector.load %arg2[%c128, %c0_11] : memref<256x128xf32, #tpu.memory_space<vmem>>, vector<128x128xf32>
      %cst_12 = arith.constant dense<0.000000e+00> : vector<16x128xf32>
      %21 = tpu.matmul %19, %20, %cst_12 {dimension_numbers = #tpu.dot_dimension_numbers<[1], [0], [0], [1], [0, 0, 1, 1], [], []>} : vector<16x128xf32>, vector<128x128xf32>, vector<16x128xf32> -> vector<16x128xf32>
      %22 = arith.addf %17, %21 : vector<16x128xf32>
      %23 = arith.index_cast %arg1 : i32 to index
      %c0_13 = arith.constant 0 : index
      %c0_14 = arith.constant 0 : index
      %24 = vector.load %arg13[%23, %c0_13, %c0_14] : memref<2x32x128xf32, #tpu.memory_space<vmem>>, vector<1x16x128xf32>
      %25 = vector.shape_cast %24 : vector<1x16x128xf32> to vector<16x128xf32>
      %26 = vector.shape_cast %22 : vector<16x128xf32> to vector<1x16x128xf32>
      tpu.vector_store %arg13[%23, %c0_13, %c0_14], %26 {strides = array<i32>} : memref<2x32x128xf32, #tpu.memory_space<vmem>>, vector<1x16x128xf32>,
      %c1_15 = arith.constant 1 : index
      %c0_16 = arith.constant 0 : index
      %c0_17 = arith.constant 0 : index
      %27 = vector.load %arg4[%c1_15, %c0_16, %c0_17] : memref<3x16x8xf32, #tpu.memory_space<vmem>>, vector<1x16x8xf32>
      %28 = vector.shape_cast %27 : vector<1x16x8xf32> to vector<16x8xf32>
      %c0_18 = arith.constant 0 : index
      %c0_19 = arith.constant 0 : index
      %c0_20 = arith.constant 0 : index
      %29 = vector.load %arg4[%c0_18, %c0_19, %c0_20] : memref<3x16x8xf32, #tpu.memory_space<vmem>>, vector<1x16x8xf32>
      %30 = vector.shape_cast %29 : vector<1x16x8xf32> to vector<16x8xf32>
      %31 = arith.index_cast %arg1 : i32 to index
      %c0_21 = arith.constant 0 : index
      %c0_22 = arith.constant 0 : index
      %32 = vector.load %arg3[%31, %c0_21, %c0_22] : memref<2x16x128xf32, #tpu.memory_space<vmem>>, vector<1x16x128xf32>
      %33 = vector.shape_cast %32 : vector<1x16x128xf32> to vector<16x128xf32>
      %34 = vector.extract_strided_slice %22 {offsets = [0, 0], sizes = [8, 128], strides = [1, 1]} : vector<16x128xf32> to vector<8x128xf32>
      %cst_23 = arith.constant dense<0.000000e+00> : vector<16x128xf32>
      %35 = tpu.matmul %28, %34, %cst_23 {dimension_numbers = #tpu.dot_dimension_numbers<[1], [0], [0], [1], [0, 0, 1, 1], [], []>} : vector<16x8xf32>, vector<8x128xf32>, vector<16x128xf32> -> vector<16x128xf32>
      %36 = vector.extract_strided_slice %33 {offsets = [0, 0], sizes = [8, 128], strides = [1, 1]} : vector<16x128xf32> to vector<8x128xf32>
      %cst_24 = arith.constant dense<0.000000e+00> : vector<16x128xf32>
      %37 = tpu.matmul %30, %36, %cst_24 {dimension_numbers = #tpu.dot_dimension_numbers<[1], [0], [0], [1], [0, 0, 1, 1], [], []>} : vector<16x8xf32>, vector<8x128xf32>, vector<16x128xf32> -> vector<16x128xf32>
      %38 = arith.addf %35, %37 : vector<16x128xf32>
      %c0_25 = arith.constant 0 : index
      %c0_26 = arith.constant 0 : index
      %39 = vector.load %arg5[%c0_25, %c0_26] : memref<32x1xf32, #tpu.memory_space<vmem>>, vector<16x1xf32>
      %40 = vector.broadcast %39 : vector<16x1xf32> to vector<16x128xf32>
      %41 = arith.addf %38, %40 : vector<16x128xf32>
      %42 = arith.index_cast %arg1 : i32 to index
      %c0_27 = arith.constant 0 : index
      %c0_28 = arith.constant 0 : index
      %43 = vector.load %arg15[%42, %c0_27, %c0_28] : memref<2x32x128xf32, #tpu.memory_space<vmem>>, vector<1x16x128xf32>
      %44 = vector.shape_cast %43 : vector<1x16x128xf32> to vector<16x128xf32>
      %45 = vector.shape_cast %41 : vector<16x128xf32> to vector<1x16x128xf32>
      tpu.vector_store %arg15[%42, %c0_27, %c0_28], %45 {strides = array<i32>} : memref<2x32x128xf32, #tpu.memory_space<vmem>>, vector<1x16x128xf32>,
      %46 = vector.extract_strided_slice %22 {offsets = [8, 0], sizes = [8, 128], strides = [1, 1]} : vector<16x128xf32> to vector<8x128xf32>
      %cst_29 = arith.constant dense<0.000000e+00> : vector<16x128xf32>
      %47 = tpu.matmul %28, %46, %cst_29 {dimension_numbers = #tpu.dot_dimension_numbers<[1], [0], [0], [1], [0, 0, 1, 1], [], []>} : vector<16x8xf32>, vector<8x128xf32>, vector<16x128xf32> -> vector<16x128xf32>
      %48 = vector.extract_strided_slice %33 {offsets = [8, 0], sizes = [8, 128], strides = [1, 1]} : vector<16x128xf32> to vector<8x128xf32>
      %cst_30 = arith.constant dense<0.000000e+00> : vector<16x128xf32>
      %49 = tpu.matmul %30, %48, %cst_30 {dimension_numbers = #tpu.dot_dimension_numbers<[1], [0], [0], [1], [0, 0, 1, 1], [], []>} : vector<16x8xf32>, vector<8x128xf32>, vector<16x128xf32> -> vector<16x128xf32>
      %50 = arith.addf %47, %49 : vector<16x128xf32>
      %c16 = arith.constant 16 : index
      %c0_31 = arith.constant 0 : index
      %51 = vector.load %arg5[%c16, %c0_31] : memref<32x1xf32, #tpu.memory_space<vmem>>, vector<16x1xf32>
      %52 = vector.broadcast %51 : vector<16x1xf32> to vector<16x128xf32>
      %53 = arith.addf %50, %52 : vector<16x128xf32>
      %54 = arith.index_cast %arg1 : i32 to index
      %c16_32 = arith.constant 16 : index
      %c0_33 = arith.constant 0 : index
      %55 = vector.load %arg15[%54, %c16_32, %c0_33] : memref<2x32x128xf32, #tpu.memory_space<vmem>>, vector<1x16x128xf32>
      %56 = vector.shape_cast %55 : vector<1x16x128xf32> to vector<16x128xf32>
      %57 = vector.shape_cast %53 : vector<16x128xf32> to vector<1x16x128xf32>
      tpu.vector_store %arg15[%54, %c16_32, %c0_33], %57 {strides = array<i32>} : memref<2x32x128xf32, #tpu.memory_space<vmem>>, vector<1x16x128xf32>,
    } else {
    }
    %c1_i32 = arith.constant 1 : i32
    %3 = arith.cmpi eq, %arg0, %c1_i32 : i32
    %4 = arith.extui %3 : i1 to i32
    %c0_i32_1 = arith.constant 0 : i32
    %5 = arith.cmpi ne, %4, %c0_i32_1 : i32
    scf.if %5 {
      %cst = arith.constant 0.000000e+00 : f32
      %12 = vector.broadcast %cst : f32 to vector<16x128xf32>
      %c0 = arith.constant 0 : index
      %c0_4 = arith.constant 0 : index
      %c0_5 = arith.constant 0 : index
      %13 = vector.load %arg13[%c0, %c0_4, %c0_5] : memref<2x32x128xf32, #tpu.memory_space<vmem>>, vector<1x16x128xf32>
      %14 = vector.shape_cast %13 : vector<1x16x128xf32> to vector<16x128xf32>
      %c0_6 = arith.constant 0 : index
      %c0_7 = arith.constant 0 : index
      %15 = vector.load %arg2[%c0_6, %c0_7] : memref<256x128xf32, #tpu.memory_space<vmem>>, vector<128x128xf32>
      %cst_8 = arith.constant dense<0.000000e+00> : vector<16x128xf32>
      %16 = tpu.matmul %14, %15, %cst_8 {dimension_numbers = #tpu.dot_dimension_numbers<[1], [0], [0], [1], [0, 0, 1, 1], [], []>} : vector<16x128xf32>, vector<128x128xf32>, vector<16x128xf32> -> vector<16x128xf32>
      %17 = arith.addf %12, %16 : vector<16x128xf32>
      %c1 = arith.constant 1 : index
      %c0_9 = arith.constant 0 : index
      %c0_10 = arith.constant 0 : index
      %18 = vector.load %arg13[%c1, %c0_9, %c0_10] : memref<2x32x128xf32, #tpu.memory_space<vmem>>, vector<1x16x128xf32>
      %19 = vector.shape_cast %18 : vector<1x16x128xf32> to vector<16x128xf32>
      %c128 = arith.constant 128 : index
      %c0_11 = arith.constant 0 : index
      %20 = vector.load %arg2[%c128, %c0_11] : memref<256x128xf32, #tpu.memory_space<vmem>>, vector<128x128xf32>
      %cst_12 = arith.constant dense<0.000000e+00> : vector<16x128xf32>
      %21 = tpu.matmul %19, %20, %cst_12 {dimension_numbers = #tpu.dot_dimension_numbers<[1], [0], [0], [1], [0, 0, 1, 1], [], []>} : vector<16x128xf32>, vector<128x128xf32>, vector<16x128xf32> -> vector<16x128xf32>
      %22 = arith.addf %17, %21 : vector<16x128xf32>
      %cst_13 = arith.constant 2.000000e+00 : f32
      %23 = vector.broadcast %cst_13 : f32 to vector<16x128xf32>
      %24 = arith.mulf %23, %22 : vector<16x128xf32>
      %25 = arith.index_cast %arg1 : i32 to index
      %c0_14 = arith.constant 0 : index
      %c0_15 = arith.constant 0 : index
      %26 = vector.load %arg3[%25, %c0_14, %c0_15] : memref<2x16x128xf32, #tpu.memory_space<vmem>>, vector<1x16x128xf32>
      %27 = vector.shape_cast %26 : vector<1x16x128xf32> to vector<16x128xf32>
      %28 = arith.subf %24, %27 : vector<16x128xf32>
      %c2 = arith.constant 2 : index
      %c0_16 = arith.constant 0 : index
      %c0_17 = arith.constant 0 : index
      %29 = vector.load %arg4[%c2, %c0_16, %c0_17] : memref<3x16x8xf32, #tpu.memory_space<vmem>>, vector<1x16x8xf32>
      %30 = vector.shape_cast %29 : vector<1x16x8xf32> to vector<16x8xf32>
      %31 = vector.extract_strided_slice %28 {offsets = [0, 0], sizes = [8, 128], strides = [1, 1]} : vector<16x128xf32> to vector<8x128xf32>
      %cst_18 = arith.constant dense<0.000000e+00> : vector<16x128xf32>
      %32 = tpu.matmul %30, %31, %cst_18 {dimension_numbers = #tpu.dot_dimension_numbers<[1], [0], [0], [1], [0, 0, 1, 1], [], []>} : vector<16x8xf32>, vector<8x128xf32>, vector<16x128xf32> -> vector<16x128xf32>
      %33 = arith.index_cast %arg1 : i32 to index
      %c0_19 = arith.constant 0 : index
      %c0_20 = arith.constant 0 : index
      %34 = vector.load %arg15[%33, %c0_19, %c0_20] : memref<2x32x128xf32, #tpu.memory_space<vmem>>, vector<1x16x128xf32>
      %35 = vector.shape_cast %34 : vector<1x16x128xf32> to vector<16x128xf32>
      %36 = arith.addf %35, %32 : vector<16x128xf32>
      %37 = arith.index_cast %arg1 : i32 to index
      %c0_21 = arith.constant 0 : index
      %c0_22 = arith.constant 0 : index
      %38 = vector.load %arg15[%37, %c0_21, %c0_22] : memref<2x32x128xf32, #tpu.memory_space<vmem>>, vector<1x16x128xf32>
      %39 = vector.shape_cast %38 : vector<1x16x128xf32> to vector<16x128xf32>
      %40 = vector.shape_cast %36 : vector<16x128xf32> to vector<1x16x128xf32>
      tpu.vector_store %arg15[%37, %c0_21, %c0_22], %40 {strides = array<i32>} : memref<2x32x128xf32, #tpu.memory_space<vmem>>, vector<1x16x128xf32>,
      %41 = vector.extract_strided_slice %28 {offsets = [8, 0], sizes = [8, 128], strides = [1, 1]} : vector<16x128xf32> to vector<8x128xf32>
      %cst_23 = arith.constant dense<0.000000e+00> : vector<16x128xf32>
      %42 = tpu.matmul %30, %41, %cst_23 {dimension_numbers = #tpu.dot_dimension_numbers<[1], [0], [0], [1], [0, 0, 1, 1], [], []>} : vector<16x8xf32>, vector<8x128xf32>, vector<16x128xf32> -> vector<16x128xf32>
      %43 = arith.index_cast %arg1 : i32 to index
      %c16 = arith.constant 16 : index
      %c0_24 = arith.constant 0 : index
      %44 = vector.load %arg15[%43, %c16, %c0_24] : memref<2x32x128xf32, #tpu.memory_space<vmem>>, vector<1x16x128xf32>
      %45 = vector.shape_cast %44 : vector<1x16x128xf32> to vector<16x128xf32>
      %46 = arith.addf %45, %42 : vector<16x128xf32>
      %47 = arith.index_cast %arg1 : i32 to index
      %c16_25 = arith.constant 16 : index
      %c0_26 = arith.constant 0 : index
      %48 = vector.load %arg15[%47, %c16_25, %c0_26] : memref<2x32x128xf32, #tpu.memory_space<vmem>>, vector<1x16x128xf32>
      %49 = vector.shape_cast %48 : vector<1x16x128xf32> to vector<16x128xf32>
      %50 = vector.shape_cast %46 : vector<16x128xf32> to vector<1x16x128xf32>
      tpu.vector_store %arg15[%47, %c16_25, %c0_26], %50 {strides = array<i32>} : memref<2x32x128xf32, #tpu.memory_space<vmem>>, vector<1x16x128xf32>,
    } else {
    }
    %c2_i32 = arith.constant 2 : i32
    %6 = arith.cmpi eq, %arg0, %c2_i32 : i32
    %7 = arith.extui %6 : i1 to i32
    %c0_i32_2 = arith.constant 0 : i32
    %8 = arith.cmpi ne, %7, %c0_i32_2 : i32
    scf.if %8 {
      %c0_i32_4 = arith.constant 0 : i32
      %12 = arith.cmpi eq, %arg1, %c0_i32_4 : i32
      %13 = arith.extui %12 : i1 to i32
      %c0_i32_5 = arith.constant 0 : i32
      %14 = arith.cmpi ne, %13, %c0_i32_5 : i32
      scf.if %14 {
        %cst_36 = arith.constant 0.000000e+00 : f32
        %61 = vector.broadcast %cst_36 : f32 to vector<16x1xf32>
        %cst_37 = arith.constant 0.000000e+00 : f32
        %62 = vector.broadcast %cst_37 : f32 to vector<16x1xf32>
        %c0_38 = arith.constant 0 : index
        %c0_39 = arith.constant 0 : index
        %c0_40 = arith.constant 0 : index
        %63 = vector.load %arg15[%c0_38, %c0_39, %c0_40] : memref<2x32x128xf32, #tpu.memory_space<vmem>>, vector<1x16x128xf32>
        %64 = vector.shape_cast %63 : vector<1x16x128xf32> to vector<16x128xf32>
        %cst_41 = arith.constant dense<0.000000e+00> : vector<16xf32>
        %65 = vector.multi_reduction <add>, %64, %cst_41 [1] : vector<16x128xf32> to vector<16xf32>
        %66 = vector.shape_cast %65 : vector<16xf32> to vector<16x1xf32>
        %67 = arith.addf %61, %66 : vector<16x1xf32>
        %68 = arith.mulf %64, %64 : vector<16x128xf32>
        %cst_42 = arith.constant dense<0.000000e+00> : vector<16xf32>
        %69 = vector.multi_reduction <add>, %68, %cst_42 [1] : vector<16x128xf32> to vector<16xf32>
        %70 = vector.shape_cast %69 : vector<16xf32> to vector<16x1xf32>
        %71 = arith.addf %62, %70 : vector<16x1xf32>
        %c0_43 = arith.constant 0 : index
        %c16 = arith.constant 16 : index
        %c0_44 = arith.constant 0 : index
        %72 = vector.load %arg15[%c0_43, %c16, %c0_44] : memref<2x32x128xf32, #tpu.memory_space<vmem>>, vector<1x16x128xf32>
        %73 = vector.shape_cast %72 : vector<1x16x128xf32> to vector<16x128xf32>
        %cst_45 = arith.constant dense<0.000000e+00> : vector<16xf32>
        %74 = vector.multi_reduction <add>, %73, %cst_45 [1] : vector<16x128xf32> to vector<16xf32>
        %75 = vector.shape_cast %74 : vector<16xf32> to vector<16x1xf32>
        %76 = arith.addf %67, %75 : vector<16x1xf32>
        %77 = arith.mulf %73, %73 : vector<16x128xf32>
        %cst_46 = arith.constant dense<0.000000e+00> : vector<16xf32>
        %78 = vector.multi_reduction <add>, %77, %cst_46 [1] : vector<16x128xf32> to vector<16xf32>
        %79 = vector.shape_cast %78 : vector<16xf32> to vector<16x1xf32>
        %80 = arith.addf %71, %79 : vector<16x1xf32>
        %c1_47 = arith.constant 1 : index
        %c0_48 = arith.constant 0 : index
        %c0_49 = arith.constant 0 : index
        %81 = vector.load %arg15[%c1_47, %c0_48, %c0_49] : memref<2x32x128xf32, #tpu.memory_space<vmem>>, vector<1x16x128xf32>
        %82 = vector.shape_cast %81 : vector<1x16x128xf32> to vector<16x128xf32>
        %cst_50 = arith.constant dense<0.000000e+00> : vector<16xf32>
        %83 = vector.multi_reduction <add>, %82, %cst_50 [1] : vector<16x128xf32> to vector<16xf32>
        %84 = vector.shape_cast %83 : vector<16xf32> to vector<16x1xf32>
        %85 = arith.addf %76, %84 : vector<16x1xf32>
        %86 = arith.mulf %82, %82 : vector<16x128xf32>
        %cst_51 = arith.constant dense<0.000000e+00> : vector<16xf32>
        %87 = vector.multi_reduction <add>, %86, %cst_51 [1] : vector<16x128xf32> to vector<16xf32>
        %88 = vector.shape_cast %87 : vector<16xf32> to vector<16x1xf32>
        %89 = arith.addf %80, %88 : vector<16x1xf32>
        %c1_52 = arith.constant 1 : index
        %c16_53 = arith.constant 16 : index
        %c0_54 = arith.constant 0 : index
        %90 = vector.load %arg15[%c1_52, %c16_53, %c0_54] : memref<2x32x128xf32, #tpu.memory_space<vmem>>, vector<1x16x128xf32>
        %91 = vector.shape_cast %90 : vector<1x16x128xf32> to vector<16x128xf32>
        %cst_55 = arith.constant dense<0.000000e+00> : vector<16xf32>
        %92 = vector.multi_reduction <add>, %91, %cst_55 [1] : vector<16x128xf32> to vector<16xf32>
        %93 = vector.shape_cast %92 : vector<16xf32> to vector<16x1xf32>
        %94 = arith.addf %85, %93 : vector<16x1xf32>
        %95 = arith.mulf %91, %91 : vector<16x128xf32>
        %cst_56 = arith.constant dense<0.000000e+00> : vector<16xf32>
        %96 = vector.multi_reduction <add>, %95, %cst_56 [1] : vector<16x128xf32> to vector<16xf32>
        %97 = vector.shape_cast %96 : vector<16xf32> to vector<16x1xf32>
        %98 = arith.addf %89, %97 : vector<16x1xf32>
        %cst_57 = arith.constant 5.120000e+02 : f32
        %99 = vector.broadcast %cst_57 : f32 to vector<16x1xf32>
        %100 = arith.divf %94, %99 : vector<16x1xf32>
        %cst_58 = arith.constant 5.120000e+02 : f32
        %101 = vector.broadcast %cst_58 : f32 to vector<16x1xf32>
        %102 = arith.divf %98, %101 : vector<16x1xf32>
        %103 = arith.mulf %100, %100 : vector<16x1xf32>
        %104 = arith.subf %102, %103 : vector<16x1xf32>
        %cst_59 = arith.constant 0.000000e+00 : f32
        %105 = vector.broadcast %cst_59 : f32 to vector<16x1xf32>
        %106 = arith.maximumf %104, %105 : vector<16x1xf32>
        %c0_60 = arith.constant 0 : index
        %c0_61 = arith.constant 0 : index
        %107 = vector.load %arg6[%c0_60, %c0_61] : memref<16x1xf32, #tpu.memory_space<vmem>>, vector<16x1xf32>
        %cst_62 = arith.constant 9.99999974E-6 : f32
        %108 = vector.broadcast %cst_62 : f32 to vector<16x1xf32>
        %109 = arith.addf %106, %108 : vector<16x1xf32>
        %110 = math.rsqrt %109 : vector<16x1xf32>
        %111 = arith.mulf %107, %110 : vector<16x1xf32>
        %c0_63 = arith.constant 0 : index
        %c0_64 = arith.constant 0 : index
        %112 = vector.load %arg7[%c0_63, %c0_64] : memref<16x1xf32, #tpu.memory_space<vmem>>, vector<16x1xf32>
        %113 = arith.mulf %100, %111 : vector<16x1xf32>
        %114 = arith.subf %112, %113 : vector<16x1xf32>
        %c0_65 = arith.constant 0 : index
        %c0_66 = arith.constant 0 : index
        %c0_67 = arith.constant 0 : index
        %115 = vector.load %arg15[%c0_65, %c0_66, %c0_67] : memref<2x32x128xf32, #tpu.memory_space<vmem>>, vector<1x16x128xf32>
        %116 = vector.shape_cast %115 : vector<1x16x128xf32> to vector<16x128xf32>
        %117 = vector.broadcast %111 : vector<16x1xf32> to vector<16x128xf32>
        %118 = arith.mulf %116, %117 : vector<16x128xf32>
        %119 = vector.broadcast %114 : vector<16x1xf32> to vector<16x128xf32>
        %120 = arith.addf %118, %119 : vector<16x128xf32>
        %cst_68 = arith.constant 0.000000e+00 : f32
        %121 = vector.broadcast %cst_68 : f32 to vector<16x128xf32>
        %122 = arith.maximumf %120, %121 : vector<16x128xf32>
        %c0_69 = arith.constant 0 : index
        %c0_70 = arith.constant 0 : index
        %c0_71 = arith.constant 0 : index
        %123 = vector.load %arg13[%c0_69, %c0_70, %c0_71] : memref<2x32x128xf32, #tpu.memory_space<vmem>>, vector<1x16x128xf32>
        %124 = vector.shape_cast %123 : vector<1x16x128xf32> to vector<16x128xf32>
        %125 = vector.shape_cast %122 : vector<16x128xf32> to vector<1x16x128xf32>
        tpu.vector_store %arg13[%c0_69, %c0_70, %c0_71], %125 {strides = array<i32>} : memref<2x32x128xf32, #tpu.memory_space<vmem>>, vector<1x16x128xf32>,
        %c0_72 = arith.constant 0 : index
        %c16_73 = arith.constant 16 : index
        %c0_74 = arith.constant 0 : index
        %126 = vector.load %arg15[%c0_72, %c16_73, %c0_74] : memref<2x32x128xf32, #tpu.memory_space<vmem>>, vector<1x16x128xf32>
        %127 = vector.shape_cast %126 : vector<1x16x128xf32> to vector<16x128xf32>
        %128 = vector.broadcast %111 : vector<16x1xf32> to vector<16x128xf32>
        %129 = arith.mulf %127, %128 : vector<16x128xf32>
        %130 = vector.broadcast %114 : vector<16x1xf32> to vector<16x128xf32>
        %131 = arith.addf %129, %130 : vector<16x128xf32>
        %cst_75 = arith.constant 0.000000e+00 : f32
        %132 = vector.broadcast %cst_75 : f32 to vector<16x128xf32>
        %133 = arith.maximumf %131, %132 : vector<16x128xf32>
        %c0_76 = arith.constant 0 : index
        %c16_77 = arith.constant 16 : index
        %c0_78 = arith.constant 0 : index
        %134 = vector.load %arg13[%c0_76, %c16_77, %c0_78] : memref<2x32x128xf32, #tpu.memory_space<vmem>>, vector<1x16x128xf32>
        %135 = vector.shape_cast %134 : vector<1x16x128xf32> to vector<16x128xf32>
        %136 = vector.shape_cast %133 : vector<16x128xf32> to vector<1x16x128xf32>
        tpu.vector_store %arg13[%c0_76, %c16_77, %c0_78], %136 {strides = array<i32>} : memref<2x32x128xf32, #tpu.memory_space<vmem>>, vector<1x16x128xf32>,
        %c1_79 = arith.constant 1 : index
        %c0_80 = arith.constant 0 : index
        %c0_81 = arith.constant 0 : index
        %137 = vector.load %arg15[%c1_79, %c0_80, %c0_81] : memref<2x32x128xf32, #tpu.memory_space<vmem>>, vector<1x16x128xf32>
        %138 = vector.shape_cast %137 : vector<1x16x128xf32> to vector<16x128xf32>
        %139 = vector.broadcast %111 : vector<16x1xf32> to vector<16x128xf32>
        %140 = arith.mulf %138, %139 : vector<16x128xf32>
        %141 = vector.broadcast %114 : vector<16x1xf32> to vector<16x128xf32>
        %142 = arith.addf %140, %141 : vector<16x128xf32>
        %cst_82 = arith.constant 0.000000e+00 : f32
        %143 = vector.broadcast %cst_82 : f32 to vector<16x128xf32>
        %144 = arith.maximumf %142, %143 : vector<16x128xf32>
        %c1_83 = arith.constant 1 : index
        %c0_84 = arith.constant 0 : index
        %c0_85 = arith.constant 0 : index
        %145 = vector.load %arg13[%c1_83, %c0_84, %c0_85] : memref<2x32x128xf32, #tpu.memory_space<vmem>>, vector<1x16x128xf32>
        %146 = vector.shape_cast %145 : vector<1x16x128xf32> to vector<16x128xf32>
        %147 = vector.shape_cast %144 : vector<16x128xf32> to vector<1x16x128xf32>
        tpu.vector_store %arg13[%c1_83, %c0_84, %c0_85], %147 {strides = array<i32>} : memref<2x32x128xf32, #tpu.memory_space<vmem>>, vector<1x16x128xf32>,
        %c1_86 = arith.constant 1 : index
        %c16_87 = arith.constant 16 : index
        %c0_88 = arith.constant 0 : index
        %148 = vector.load %arg15[%c1_86, %c16_87, %c0_88] : memref<2x32x128xf32, #tpu.memory_space<vmem>>, vector<1x16x128xf32>
        %149 = vector.shape_cast %148 : vector<1x16x128xf32> to vector<16x128xf32>
        %150 = vector.broadcast %111 : vector<16x1xf32> to vector<16x128xf32>
        %151 = arith.mulf %149, %150 : vector<16x128xf32>
        %152 = vector.broadcast %114 : vector<16x1xf32> to vector<16x128xf32>
        %153 = arith.addf %151, %152 : vector<16x128xf32>
        %cst_89 = arith.constant 0.000000e+00 : f32
        %154 = vector.broadcast %cst_89 : f32 to vector<16x128xf32>
        %155 = arith.maximumf %153, %154 : vector<16x128xf32>
        %c1_90 = arith.constant 1 : index
        %c16_91 = arith.constant 16 : index
        %c0_92 = arith.constant 0 : index
        %156 = vector.load %arg13[%c1_90, %c16_91, %c0_92] : memref<2x32x128xf32, #tpu.memory_space<vmem>>, vector<1x16x128xf32>
        %157 = vector.shape_cast %156 : vector<1x16x128xf32> to vector<16x128xf32>
        %158 = vector.shape_cast %155 : vector<16x128xf32> to vector<1x16x128xf32>
        tpu.vector_store %arg13[%c1_90, %c16_91, %c0_92], %158 {strides = array<i32>} : memref<2x32x128xf32, #tpu.memory_space<vmem>>, vector<1x16x128xf32>,
      } else {
      }
      %cst = arith.constant 0.000000e+00 : f32
      %15 = vector.broadcast %cst : f32 to vector<32x128xf32>
      %c0 = arith.constant 0 : index
      %c0_6 = arith.constant 0 : index
      %c0_7 = arith.constant 0 : index
      %16 = vector.load %arg13[%c0, %c0_6, %c0_7] : memref<2x32x128xf32, #tpu.memory_space<vmem>>, vector<1x32x128xf32>
      %17 = vector.shape_cast %16 : vector<1x32x128xf32> to vector<32x128xf32>
      %c0_8 = arith.constant 0 : index
      %c0_9 = arith.constant 0 : index
      %18 = vector.load %arg2[%c0_8, %c0_9] : memref<256x128xf32, #tpu.memory_space<vmem>>, vector<128x128xf32>
      %cst_10 = arith.constant dense<0.000000e+00> : vector<32x128xf32>
      %19 = tpu.matmul %17, %18, %cst_10 {dimension_numbers = #tpu.dot_dimension_numbers<[1], [0], [0], [1], [0, 0, 1, 1], [], []>} : vector<32x128xf32>, vector<128x128xf32>, vector<32x128xf32> -> vector<32x128xf32>
      %20 = arith.addf %15, %19 : vector<32x128xf32>
      %c1 = arith.constant 1 : index
      %c0_11 = arith.constant 0 : index
      %c0_12 = arith.constant 0 : index
      %21 = vector.load %arg13[%c1, %c0_11, %c0_12] : memref<2x32x128xf32, #tpu.memory_space<vmem>>, vector<1x32x128xf32>
      %22 = vector.shape_cast %21 : vector<1x32x128xf32> to vector<32x128xf32>
      %c128 = arith.constant 128 : index
      %c0_13 = arith.constant 0 : index
      %23 = vector.load %arg2[%c128, %c0_13] : memref<256x128xf32, #tpu.memory_space<vmem>>, vector<128x128xf32>
      %cst_14 = arith.constant dense<0.000000e+00> : vector<32x128xf32>
      %24 = tpu.matmul %22, %23, %cst_14 {dimension_numbers = #tpu.dot_dimension_numbers<[1], [0], [0], [1], [0, 0, 1, 1], [], []>} : vector<32x128xf32>, vector<128x128xf32>, vector<32x128xf32> -> vector<32x128xf32>
      %25 = arith.addf %20, %24 : vector<32x128xf32>
      %26 = arith.index_cast %arg1 : i32 to index
      %c0_15 = arith.constant 0 : index
      %c0_16 = arith.constant 0 : index
      %27 = vector.load %arg14[%26, %c0_15, %c0_16] : memref<2x32x128xf32, #tpu.memory_space<vmem>>, vector<1x32x128xf32>
      %28 = vector.shape_cast %27 : vector<1x32x128xf32> to vector<32x128xf32>
      %29 = vector.shape_cast %25 : vector<32x128xf32> to vector<1x32x128xf32>
      tpu.vector_store %arg14[%26, %c0_15, %c0_16], %29 {strides = array<i32>} : memref<2x32x128xf32, #tpu.memory_space<vmem>>, vector<1x32x128xf32>,
      %c1_17 = arith.constant 1 : index
      %c0_18 = arith.constant 0 : index
      %c0_19 = arith.constant 0 : index
      %30 = vector.load %arg8[%c1_17, %c0_18, %c0_19] : memref<3x8x16xf32, #tpu.memory_space<vmem>>, vector<1x8x16xf32>
      %31 = vector.shape_cast %30 : vector<1x8x16xf32> to vector<8x16xf32>
      %c0_20 = arith.constant 0 : index
      %c0_21 = arith.constant 0 : index
      %c0_22 = arith.constant 0 : index
      %32 = vector.load %arg8[%c0_20, %c0_21, %c0_22] : memref<3x8x16xf32, #tpu.memory_space<vmem>>, vector<1x8x16xf32>
      %33 = vector.shape_cast %32 : vector<1x8x16xf32> to vector<8x16xf32>
      %34 = arith.index_cast %arg1 : i32 to index
      %c0_23 = arith.constant 0 : index
      %c0_24 = arith.constant 0 : index
      %35 = vector.load %arg13[%34, %c0_23, %c0_24] : memref<2x32x128xf32, #tpu.memory_space<vmem>>, vector<1x32x128xf32>
      %36 = vector.shape_cast %35 : vector<1x32x128xf32> to vector<32x128xf32>
      %37 = vector.extract_strided_slice %25 {offsets = [0, 0], sizes = [16, 128], strides = [1, 1]} : vector<32x128xf32> to vector<16x128xf32>
      %cst_25 = arith.constant dense<0.000000e+00> : vector<8x128xf32>
      %38 = tpu.matmul %31, %37, %cst_25 {dimension_numbers = #tpu.dot_dimension_numbers<[1], [0], [0], [1], [0, 0, 1, 1], [], []>} : vector<8x16xf32>, vector<16x128xf32>, vector<8x128xf32> -> vector<8x128xf32>
      %39 = vector.extract_strided_slice %36 {offsets = [0, 0], sizes = [16, 128], strides = [1, 1]} : vector<32x128xf32> to vector<16x128xf32>
      %cst_26 = arith.constant dense<0.000000e+00> : vector<8x128xf32>
      %40 = tpu.matmul %33, %39, %cst_26 {dimension_numbers = #tpu.dot_dimension_numbers<[1], [0], [0], [1], [0, 0, 1, 1], [], []>} : vector<8x16xf32>, vector<16x128xf32>, vector<8x128xf32> -> vector<8x128xf32>
      %41 = arith.addf %38, %40 : vector<8x128xf32>
      %c0_27 = arith.constant 0 : index
      %c0_28 = arith.constant 0 : index
      %42 = vector.load %arg9[%c0_27, %c0_28] : memref<16x1xf32, #tpu.memory_space<vmem>>, vector<8x1xf32>
      %43 = vector.broadcast %42 : vector<8x1xf32> to vector<8x128xf32>
      %44 = arith.addf %41, %43 : vector<8x128xf32>
      %45 = arith.index_cast %arg1 : i32 to index
      %c0_29 = arith.constant 0 : index
      %c0_30 = arith.constant 0 : index
      %46 = vector.load %arg15[%45, %c0_29, %c0_30] : memref<2x32x128xf32, #tpu.memory_space<vmem>>, vector<1x8x128xf32>
      %47 = vector.shape_cast %46 : vector<1x8x128xf32> to vector<8x128xf32>
      %48 = vector.shape_cast %44 : vector<8x128xf32> to vector<1x8x128xf32>
      tpu.vector_store %arg15[%45, %c0_29, %c0_30], %48 {strides = array<i32>} : memref<2x32x128xf32, #tpu.memory_space<vmem>>, vector<1x8x128xf32>,
      %49 = vector.extract_strided_slice %25 {offsets = [16, 0], sizes = [16, 128], strides = [1, 1]} : vector<32x128xf32> to vector<16x128xf32>
      %cst_31 = arith.constant dense<0.000000e+00> : vector<8x128xf32>
      %50 = tpu.matmul %31, %49, %cst_31 {dimension_numbers = #tpu.dot_dimension_numbers<[1], [0], [0], [1], [0, 0, 1, 1], [], []>} : vector<8x16xf32>, vector<16x128xf32>, vector<8x128xf32> -> vector<8x128xf32>
      %51 = vector.extract_strided_slice %36 {offsets = [16, 0], sizes = [16, 128], strides = [1, 1]} : vector<32x128xf32> to vector<16x128xf32>
      %cst_32 = arith.constant dense<0.000000e+00> : vector<8x128xf32>
      %52 = tpu.matmul %33, %51, %cst_32 {dimension_numbers = #tpu.dot_dimension_numbers<[1], [0], [0], [1], [0, 0, 1, 1], [], []>} : vector<8x16xf32>, vector<16x128xf32>, vector<8x128xf32> -> vector<8x128xf32>
      %53 = arith.addf %50, %52 : vector<8x128xf32>
      %c8 = arith.constant 8 : index
      %c0_33 = arith.constant 0 : index
      %54 = vector.load %arg9[%c8, %c0_33] : memref<16x1xf32, #tpu.memory_space<vmem>>, vector<8x1xf32>
      %55 = vector.broadcast %54 : vector<8x1xf32> to vector<8x128xf32>
      %56 = arith.addf %53, %55 : vector<8x128xf32>
      %57 = arith.index_cast %arg1 : i32 to index
      %c8_34 = arith.constant 8 : index
      %c0_35 = arith.constant 0 : index
      %58 = vector.load %arg15[%57, %c8_34, %c0_35] : memref<2x32x128xf32, #tpu.memory_space<vmem>>, vector<1x8x128xf32>
      %59 = vector.shape_cast %58 : vector<1x8x128xf32> to vector<8x128xf32>
      %60 = vector.shape_cast %56 : vector<8x128xf32> to vector<1x8x128xf32>
      tpu.vector_store %arg15[%57, %c8_34, %c0_35], %60 {strides = array<i32>} : memref<2x32x128xf32, #tpu.memory_space<vmem>>, vector<1x8x128xf32>,
    } else {
    }
    %c3_i32 = arith.constant 3 : i32
    %9 = arith.cmpi eq, %arg0, %c3_i32 : i32
    %10 = arith.extui %9 : i1 to i32
    %c0_i32_3 = arith.constant 0 : i32
    %11 = arith.cmpi ne, %10, %c0_i32_3 : i32
    scf.if %11 {
      %cst = arith.constant 0.000000e+00 : f32
      %12 = vector.broadcast %cst : f32 to vector<32x128xf32>
      %c0 = arith.constant 0 : index
      %c0_4 = arith.constant 0 : index
      %c0_5 = arith.constant 0 : index
      %13 = vector.load %arg14[%c0, %c0_4, %c0_5] : memref<2x32x128xf32, #tpu.memory_space<vmem>>, vector<1x32x128xf32>
      %14 = vector.shape_cast %13 : vector<1x32x128xf32> to vector<32x128xf32>
      %c0_6 = arith.constant 0 : index
      %c0_7 = arith.constant 0 : index
      %15 = vector.load %arg2[%c0_6, %c0_7] : memref<256x128xf32, #tpu.memory_space<vmem>>, vector<128x128xf32>
      %cst_8 = arith.constant dense<0.000000e+00> : vector<32x128xf32>
      %16 = tpu.matmul %14, %15, %cst_8 {dimension_numbers = #tpu.dot_dimension_numbers<[1], [0], [0], [1], [0, 0, 1, 1], [], []>} : vector<32x128xf32>, vector<128x128xf32>, vector<32x128xf32> -> vector<32x128xf32>
      %17 = arith.addf %12, %16 : vector<32x128xf32>
      %c1 = arith.constant 1 : index
      %c0_9 = arith.constant 0 : index
      %c0_10 = arith.constant 0 : index
      %18 = vector.load %arg14[%c1, %c0_9, %c0_10] : memref<2x32x128xf32, #tpu.memory_space<vmem>>, vector<1x32x128xf32>
      %19 = vector.shape_cast %18 : vector<1x32x128xf32> to vector<32x128xf32>
      %c128 = arith.constant 128 : index
      %c0_11 = arith.constant 0 : index
      %20 = vector.load %arg2[%c128, %c0_11] : memref<256x128xf32, #tpu.memory_space<vmem>>, vector<128x128xf32>
      %cst_12 = arith.constant dense<0.000000e+00> : vector<32x128xf32>
      %21 = tpu.matmul %19, %20, %cst_12 {dimension_numbers = #tpu.dot_dimension_numbers<[1], [0], [0], [1], [0, 0, 1, 1], [], []>} : vector<32x128xf32>, vector<128x128xf32>, vector<32x128xf32> -> vector<32x128xf32>
      %22 = arith.addf %17, %21 : vector<32x128xf32>
      %cst_13 = arith.constant 2.000000e+00 : f32
      %23 = vector.broadcast %cst_13 : f32 to vector<32x128xf32>
      %24 = arith.mulf %23, %22 : vector<32x128xf32>
      %25 = arith.index_cast %arg1 : i32 to index
      %c0_14 = arith.constant 0 : index
      %c0_15 = arith.constant 0 : index
      %26 = vector.load %arg13[%25, %c0_14, %c0_15] : memref<2x32x128xf32, #tpu.memory_space<vmem>>, vector<1x32x128xf32>
      %27 = vector.shape_cast %26 : vector<1x32x128xf32> to vector<32x128xf32>
      %28 = arith.subf %24, %27 : vector<32x128xf32>
      %c2 = arith.constant 2 : index
      %c0_16 = arith.constant 0 : index
      %c0_17 = arith.constant 0 : index
      %29 = vector.load %arg8[%c2, %c0_16, %c0_17] : memref<3x8x16xf32, #tpu.memory_space<vmem>>, vector<1x8x16xf32>
      %30 = vector.shape_cast %29 : vector<1x8x16xf32> to vector<8x16xf32>
      %31 = vector.extract_strided_slice %28 {offsets = [0, 0], sizes = [16, 128], strides = [1, 1]} : vector<32x128xf32> to vector<16x128xf32>
      %cst_18 = arith.constant dense<0.000000e+00> : vector<8x128xf32>
      %32 = tpu.matmul %30, %31, %cst_18 {dimension_numbers = #tpu.dot_dimension_numbers<[1], [0], [0], [1], [0, 0, 1, 1], [], []>} : vector<8x16xf32>, vector<16x128xf32>, vector<8x128xf32> -> vector<8x128xf32>
      %33 = arith.index_cast %arg1 : i32 to index
      %c0_19 = arith.constant 0 : index
      %c0_20 = arith.constant 0 : index
      %34 = vector.load %arg15[%33, %c0_19, %c0_20] : memref<2x32x128xf32, #tpu.memory_space<vmem>>, vector<1x8x128xf32>
      %35 = vector.shape_cast %34 : vector<1x8x128xf32> to vector<8x128xf32>
      %36 = arith.addf %35, %32 : vector<8x128xf32>
      %37 = arith.index_cast %arg1 : i32 to index
      %c0_21 = arith.constant 0 : index
      %c0_22 = arith.constant 0 : index
      %38 = vector.load %arg15[%37, %c0_21, %c0_22] : memref<2x32x128xf32, #tpu.memory_space<vmem>>, vector<1x8x128xf32>
      %39 = vector.shape_cast %38 : vector<1x8x128xf32> to vector<8x128xf32>
      %40 = vector.shape_cast %36 : vector<8x128xf32> to vector<1x8x128xf32>
      tpu.vector_store %arg15[%37, %c0_21, %c0_22], %40 {strides = array<i32>} : memref<2x32x128xf32, #tpu.memory_space<vmem>>, vector<1x8x128xf32>,
      %41 = vector.extract_strided_slice %28 {offsets = [16, 0], sizes = [16, 128], strides = [1, 1]} : vector<32x128xf32> to vector<16x128xf32>
      %cst_23 = arith.constant dense<0.000000e+00> : vector<8x128xf32>
      %42 = tpu.matmul %30, %41, %cst_23 {dimension_numbers = #tpu.dot_dimension_numbers<[1], [0], [0], [1], [0, 0, 1, 1], [], []>} : vector<8x16xf32>, vector<16x128xf32>, vector<8x128xf32> -> vector<8x128xf32>
      %43 = arith.index_cast %arg1 : i32 to index
      %c8 = arith.constant 8 : index
      %c0_24 = arith.constant 0 : index
      %44 = vector.load %arg15[%43, %c8, %c0_24] : memref<2x32x128xf32, #tpu.memory_space<vmem>>, vector<1x8x128xf32>
      %45 = vector.shape_cast %44 : vector<1x8x128xf32> to vector<8x128xf32>
      %46 = arith.addf %45, %42 : vector<8x128xf32>
      %47 = arith.index_cast %arg1 : i32 to index
      %c8_25 = arith.constant 8 : index
      %c0_26 = arith.constant 0 : index
      %48 = vector.load %arg15[%47, %c8_25, %c0_26] : memref<2x32x128xf32, #tpu.memory_space<vmem>>, vector<1x8x128xf32>
      %49 = vector.shape_cast %48 : vector<1x8x128xf32> to vector<8x128xf32>
      %50 = vector.shape_cast %46 : vector<8x128xf32> to vector<1x8x128xf32>
      tpu.vector_store %arg15[%47, %c8_25, %c0_26], %50 {strides = array<i32>} : memref<2x32x128xf32, #tpu.memory_space<vmem>>, vector<1x8x128xf32>,
      %c1_i32_27 = arith.constant 1 : i32
      %51 = arith.cmpi eq, %arg1, %c1_i32_27 : i32
      %52 = arith.extui %51 : i1 to i32
      %c0_i32_28 = arith.constant 0 : i32
      %53 = arith.cmpi ne, %52, %c0_i32_28 : i32
      scf.if %53 {
        %cst_29 = arith.constant 0.000000e+00 : f32
        %54 = vector.broadcast %cst_29 : f32 to vector<8x1xf32>
        %cst_30 = arith.constant 0.000000e+00 : f32
        %55 = vector.broadcast %cst_30 : f32 to vector<8x1xf32>
        %c0_31 = arith.constant 0 : index
        %c0_32 = arith.constant 0 : index
        %c0_33 = arith.constant 0 : index
        %56 = vector.load %arg15[%c0_31, %c0_32, %c0_33] : memref<2x32x128xf32, #tpu.memory_space<vmem>>, vector<1x8x128xf32>
        %57 = vector.shape_cast %56 : vector<1x8x128xf32> to vector<8x128xf32>
        %cst_34 = arith.constant dense<0.000000e+00> : vector<8xf32>
        %58 = vector.multi_reduction <add>, %57, %cst_34 [1] : vector<8x128xf32> to vector<8xf32>
        %59 = vector.shape_cast %58 : vector<8xf32> to vector<8x1xf32>
        %60 = arith.addf %54, %59 : vector<8x1xf32>
        %61 = arith.mulf %57, %57 : vector<8x128xf32>
        %cst_35 = arith.constant dense<0.000000e+00> : vector<8xf32>
        %62 = vector.multi_reduction <add>, %61, %cst_35 [1] : vector<8x128xf32> to vector<8xf32>
        %63 = vector.shape_cast %62 : vector<8xf32> to vector<8x1xf32>
        %64 = arith.addf %55, %63 : vector<8x1xf32>
        %c0_36 = arith.constant 0 : index
        %c8_37 = arith.constant 8 : index
        %c0_38 = arith.constant 0 : index
        %65 = vector.load %arg15[%c0_36, %c8_37, %c0_38] : memref<2x32x128xf32, #tpu.memory_space<vmem>>, vector<1x8x128xf32>
        %66 = vector.shape_cast %65 : vector<1x8x128xf32> to vector<8x128xf32>
        %cst_39 = arith.constant dense<0.000000e+00> : vector<8xf32>
        %67 = vector.multi_reduction <add>, %66, %cst_39 [1] : vector<8x128xf32> to vector<8xf32>
        %68 = vector.shape_cast %67 : vector<8xf32> to vector<8x1xf32>
        %69 = arith.addf %60, %68 : vector<8x1xf32>
        %70 = arith.mulf %66, %66 : vector<8x128xf32>
        %cst_40 = arith.constant dense<0.000000e+00> : vector<8xf32>
        %71 = vector.multi_reduction <add>, %70, %cst_40 [1] : vector<8x128xf32> to vector<8xf32>
        %72 = vector.shape_cast %71 : vector<8xf32> to vector<8x1xf32>
        %73 = arith.addf %64, %72 : vector<8x1xf32>
        %c1_41 = arith.constant 1 : index
        %c0_42 = arith.constant 0 : index
        %c0_43 = arith.constant 0 : index
        %74 = vector.load %arg15[%c1_41, %c0_42, %c0_43] : memref<2x32x128xf32, #tpu.memory_space<vmem>>, vector<1x8x128xf32>
        %75 = vector.shape_cast %74 : vector<1x8x128xf32> to vector<8x128xf32>
        %cst_44 = arith.constant dense<0.000000e+00> : vector<8xf32>
        %76 = vector.multi_reduction <add>, %75, %cst_44 [1] : vector<8x128xf32> to vector<8xf32>
        %77 = vector.shape_cast %76 : vector<8xf32> to vector<8x1xf32>
        %78 = arith.addf %69, %77 : vector<8x1xf32>
        %79 = arith.mulf %75, %75 : vector<8x128xf32>
        %cst_45 = arith.constant dense<0.000000e+00> : vector<8xf32>
        %80 = vector.multi_reduction <add>, %79, %cst_45 [1] : vector<8x128xf32> to vector<8xf32>
        %81 = vector.shape_cast %80 : vector<8xf32> to vector<8x1xf32>
        %82 = arith.addf %73, %81 : vector<8x1xf32>
        %c1_46 = arith.constant 1 : index
        %c8_47 = arith.constant 8 : index
        %c0_48 = arith.constant 0 : index
        %83 = vector.load %arg15[%c1_46, %c8_47, %c0_48] : memref<2x32x128xf32, #tpu.memory_space<vmem>>, vector<1x8x128xf32>
        %84 = vector.shape_cast %83 : vector<1x8x128xf32> to vector<8x128xf32>
        %cst_49 = arith.constant dense<0.000000e+00> : vector<8xf32>
        %85 = vector.multi_reduction <add>, %84, %cst_49 [1] : vector<8x128xf32> to vector<8xf32>
        %86 = vector.shape_cast %85 : vector<8xf32> to vector<8x1xf32>
        %87 = arith.addf %78, %86 : vector<8x1xf32>
        %88 = arith.mulf %84, %84 : vector<8x128xf32>
        %cst_50 = arith.constant dense<0.000000e+00> : vector<8xf32>
        %89 = vector.multi_reduction <add>, %88, %cst_50 [1] : vector<8x128xf32> to vector<8xf32>
        %90 = vector.shape_cast %89 : vector<8xf32> to vector<8x1xf32>
        %91 = arith.addf %82, %90 : vector<8x1xf32>
        %cst_51 = arith.constant 5.120000e+02 : f32
        %92 = vector.broadcast %cst_51 : f32 to vector<8x1xf32>
        %93 = arith.divf %87, %92 : vector<8x1xf32>
        %cst_52 = arith.constant 5.120000e+02 : f32
        %94 = vector.broadcast %cst_52 : f32 to vector<8x1xf32>
        %95 = arith.divf %91, %94 : vector<8x1xf32>
        %96 = arith.mulf %93, %93 : vector<8x1xf32>
        %97 = arith.subf %95, %96 : vector<8x1xf32>
        %cst_53 = arith.constant 0.000000e+00 : f32
        %98 = vector.broadcast %cst_53 : f32 to vector<8x1xf32>
        %99 = arith.maximumf %97, %98 : vector<8x1xf32>
        %c0_54 = arith.constant 0 : index
        %c0_55 = arith.constant 0 : index
        %100 = vector.load %arg10[%c0_54, %c0_55] : memref<8x1xf32, #tpu.memory_space<vmem>>, vector<8x1xf32>
        %cst_56 = arith.constant 9.99999974E-6 : f32
        %101 = vector.broadcast %cst_56 : f32 to vector<8x1xf32>
        %102 = arith.addf %99, %101 : vector<8x1xf32>
        %103 = math.rsqrt %102 : vector<8x1xf32>
        %104 = arith.mulf %100, %103 : vector<8x1xf32>
        %c0_57 = arith.constant 0 : index
        %c0_58 = arith.constant 0 : index
        %105 = vector.load %arg11[%c0_57, %c0_58] : memref<8x1xf32, #tpu.memory_space<vmem>>, vector<8x1xf32>
        %106 = arith.mulf %93, %104 : vector<8x1xf32>
        %107 = arith.subf %105, %106 : vector<8x1xf32>
        %c0_59 = arith.constant 0 : index
        %c0_60 = arith.constant 0 : index
        %c0_61 = arith.constant 0 : index
        %108 = vector.load %arg15[%c0_59, %c0_60, %c0_61] : memref<2x32x128xf32, #tpu.memory_space<vmem>>, vector<1x8x128xf32>
        %109 = vector.shape_cast %108 : vector<1x8x128xf32> to vector<8x128xf32>
        %110 = vector.broadcast %104 : vector<8x1xf32> to vector<8x128xf32>
        %111 = arith.mulf %109, %110 : vector<8x128xf32>
        %112 = vector.broadcast %107 : vector<8x1xf32> to vector<8x128xf32>
        %113 = arith.addf %111, %112 : vector<8x128xf32>
        %cst_62 = arith.constant 0.000000e+00 : f32
        %114 = vector.broadcast %cst_62 : f32 to vector<8x128xf32>
        %115 = arith.maximumf %113, %114 : vector<8x128xf32>
        %c0_63 = arith.constant 0 : index
        %c0_64 = arith.constant 0 : index
        %116 = vector.load %arg12[%c0_63, %c0_64] : memref<16x256xf32, #tpu.memory_space<vmem>>, vector<8x128xf32>
        tpu.vector_store %arg12[%c0_63, %c0_64], %115 {strides = array<i32>} : memref<16x256xf32, #tpu.memory_space<vmem>>, vector<8x128xf32>,
        %c0_65 = arith.constant 0 : index
        %c8_66 = arith.constant 8 : index
        %c0_67 = arith.constant 0 : index
        %117 = vector.load %arg15[%c0_65, %c8_66, %c0_67] : memref<2x32x128xf32, #tpu.memory_space<vmem>>, vector<1x8x128xf32>
        %118 = vector.shape_cast %117 : vector<1x8x128xf32> to vector<8x128xf32>
        %119 = vector.broadcast %104 : vector<8x1xf32> to vector<8x128xf32>
        %120 = arith.mulf %118, %119 : vector<8x128xf32>
        %121 = vector.broadcast %107 : vector<8x1xf32> to vector<8x128xf32>
        %122 = arith.addf %120, %121 : vector<8x128xf32>
        %cst_68 = arith.constant 0.000000e+00 : f32
        %123 = vector.broadcast %cst_68 : f32 to vector<8x128xf32>
        %124 = arith.maximumf %122, %123 : vector<8x128xf32>
        %c8_69 = arith.constant 8 : index
        %c0_70 = arith.constant 0 : index
        %125 = vector.load %arg12[%c8_69, %c0_70] : memref<16x256xf32, #tpu.memory_space<vmem>>, vector<8x128xf32>
        tpu.vector_store %arg12[%c8_69, %c0_70], %124 {strides = array<i32>} : memref<16x256xf32, #tpu.memory_space<vmem>>, vector<8x128xf32>,
        %c1_71 = arith.constant 1 : index
        %c0_72 = arith.constant 0 : index
        %c0_73 = arith.constant 0 : index
        %126 = vector.load %arg15[%c1_71, %c0_72, %c0_73] : memref<2x32x128xf32, #tpu.memory_space<vmem>>, vector<1x8x128xf32>
        %127 = vector.shape_cast %126 : vector<1x8x128xf32> to vector<8x128xf32>
        %128 = vector.broadcast %104 : vector<8x1xf32> to vector<8x128xf32>
        %129 = arith.mulf %127, %128 : vector<8x128xf32>
        %130 = vector.broadcast %107 : vector<8x1xf32> to vector<8x128xf32>
        %131 = arith.addf %129, %130 : vector<8x128xf32>
        %cst_74 = arith.constant 0.000000e+00 : f32
        %132 = vector.broadcast %cst_74 : f32 to vector<8x128xf32>
        %133 = arith.maximumf %131, %132 : vector<8x128xf32>
        %c0_75 = arith.constant 0 : index
        %c128_76 = arith.constant 128 : index
        %134 = vector.load %arg12[%c0_75, %c128_76] : memref<16x256xf32, #tpu.memory_space<vmem>>, vector<8x128xf32>
        tpu.vector_store %arg12[%c0_75, %c128_76], %133 {strides = array<i32>} : memref<16x256xf32, #tpu.memory_space<vmem>>, vector<8x128xf32>,
        %c1_77 = arith.constant 1 : index
        %c8_78 = arith.constant 8 : index
        %c0_79 = arith.constant 0 : index
        %135 = vector.load %arg15[%c1_77, %c8_78, %c0_79] : memref<2x32x128xf32, #tpu.memory_space<vmem>>, vector<1x8x128xf32>
        %136 = vector.shape_cast %135 : vector<1x8x128xf32> to vector<8x128xf32>
        %137 = vector.broadcast %104 : vector<8x1xf32> to vector<8x128xf32>
        %138 = arith.mulf %136, %137 : vector<8x128xf32>
        %139 = vector.broadcast %107 : vector<8x1xf32> to vector<8x128xf32>
        %140 = arith.addf %138, %139 : vector<8x128xf32>
        %cst_80 = arith.constant 0.000000e+00 : f32
        %141 = vector.broadcast %cst_80 : f32 to vector<8x128xf32>
        %142 = arith.maximumf %140, %141 : vector<8x128xf32>
        %c8_81 = arith.constant 8 : index
        %c128_82 = arith.constant 128 : index
        %143 = vector.load %arg12[%c8_81, %c128_82] : memref<16x256xf32, #tpu.memory_space<vmem>>, vector<8x128xf32>
        tpu.vector_store %arg12[%c8_81, %c128_82], %142 {strides = array<i32>} : memref<16x256xf32, #tpu.memory_space<vmem>>, vector<8x128xf32>,
      } else {
      }
    } else {
    }
    return
  }
  func.func @transform_0(%arg0: i32, %arg1: i32) -> (i32, i32) {
    %c0_i32 = arith.constant 0 : i32
    %c0_i32_0 = arith.constant 0 : i32
    return %c0_i32, %arg1 : i32, i32
  }
  func.func @transform_1(%arg0: i32, %arg1: i32) -> (i32, i32, i32) {
    %c0_i32 = arith.constant 0 : i32
    %c0_i32_0 = arith.constant 0 : i32
    %c0_i32_1 = arith.constant 0 : i32
    %c0_i32_2 = arith.constant 0 : i32
    return %c0_i32, %c0_i32_0, %c0_i32_1 : i32, i32, i32
  }
  func.func @transform_2(%arg0: i32, %arg1: i32) -> (i32, i32, i32) {
    %c0_i32 = arith.constant 0 : i32
    %c0_i32_0 = arith.constant 0 : i32
    %c0_i32_1 = arith.constant 0 : i32
    %c0_i32_2 = arith.constant 0 : i32
    return %c0_i32, %c0_i32_0, %c0_i32_1 : i32, i32, i32
  }
  func.func @transform_3(%arg0: i32, %arg1: i32) -> (i32, i32) {
    %c0_i32 = arith.constant 0 : i32
    %c0_i32_0 = arith.constant 0 : i32
    %c0_i32_1 = arith.constant 0 : i32
    return %c0_i32, %c0_i32_0 : i32, i32
  }
  func.func @transform_4(%arg0: i32, %arg1: i32) -> (i32, i32) {
    %c0_i32 = arith.constant 0 : i32
    %c0_i32_0 = arith.constant 0 : i32
    %c0_i32_1 = arith.constant 0 : i32
    return %c0_i32, %c0_i32_0 : i32, i32
  }
  func.func @transform_5(%arg0: i32, %arg1: i32) -> (i32, i32) {
    %c0_i32 = arith.constant 0 : i32
    %c0_i32_0 = arith.constant 0 : i32
    %c0_i32_1 = arith.constant 0 : i32
    return %c0_i32, %c0_i32_0 : i32, i32
  }
  func.func @transform_6(%arg0: i32, %arg1: i32) -> (i32, i32, i32) {
    %c0_i32 = arith.constant 0 : i32
    %c0_i32_0 = arith.constant 0 : i32
    %c0_i32_1 = arith.constant 0 : i32
    %c0_i32_2 = arith.constant 0 : i32
    return %c0_i32, %c0_i32_0, %c0_i32_1 : i32, i32, i32
  }
  func.func @transform_7(%arg0: i32, %arg1: i32) -> (i32, i32) {
    %c0_i32 = arith.constant 0 : i32
    %c0_i32_0 = arith.constant 0 : i32
    %c0_i32_1 = arith.constant 0 : i32
    return %c0_i32, %c0_i32_0 : i32, i32
  }
  func.func @transform_8(%arg0: i32, %arg1: i32) -> (i32, i32) {
    %c0_i32 = arith.constant 0 : i32
    %c0_i32_0 = arith.constant 0 : i32
    %c0_i32_1 = arith.constant 0 : i32
    return %c0_i32, %c0_i32_0 : i32, i32
  }
  func.func @transform_9(%arg0: i32, %arg1: i32) -> (i32, i32) {
    %c0_i32 = arith.constant 0 : i32
    %c0_i32_0 = arith.constant 0 : i32
    %c0_i32_1 = arith.constant 0 : i32
    return %c0_i32, %c0_i32_0 : i32, i32
  }
  func.func @transform_10(%arg0: i32, %arg1: i32) -> (i32, i32) {
    %c0_i32 = arith.constant 0 : i32
    %c0_i32_0 = arith.constant 0 : i32
    %c0_i32_1 = arith.constant 0 : i32
    return %c0_i32, %c0_i32_0 : i32, i32
  }
}

module attributes {stable_mosaic.version = 11 : i64} {
  func.func @_fused_kernel(%arg0: i32, %arg1: i32, %arg2: memref<256x128xf32, #tpu.memory_space<vmem>>, %arg3: memref<2x16x128xf32, #tpu.memory_space<vmem>>, %arg4: memref<3x16x8xf32, #tpu.memory_space<vmem>>, %arg5: memref<32x1xf32, #tpu.memory_space<vmem>>, %arg6: memref<16x1xf32, #tpu.memory_space<vmem>>, %arg7: memref<16x1xf32, #tpu.memory_space<vmem>>, %arg8: memref<3x8x16xf32, #tpu.memory_space<vmem>>, %arg9: memref<16x1xf32, #tpu.memory_space<vmem>>, %arg10: memref<8x1xf32, #tpu.memory_space<vmem>>, %arg11: memref<8x1xf32, #tpu.memory_space<vmem>>, %arg12: memref<16x256xf32, #tpu.memory_space<vmem>>, %arg13: memref<2x32x128xf32, #tpu.memory_space<vmem>>, %arg14: memref<2x32x128xf32, #tpu.memory_space<vmem>>, %arg15: memref<2x32x128xf32, #tpu.memory_space<vmem>>) attributes {dimension_semantics = [#tpu.dimension_semantics<arbitrary>, #tpu.dimension_semantics<arbitrary>], iteration_bounds = array<i64: 4, 2>, scalar_prefetch = 0 : i64, scratch_operands = 3 : i64, tpu.core_type = #tpu.core_type<tc>, window_params = [{transform_indices = @transform_0, window_bounds = array<i64: 256, 128>}, {pipeline_mode = #tpu.pipeline_mode<synchronous>, transform_indices = @transform_1, window_bounds = array<i64: 2, 16, 128>}, {pipeline_mode = #tpu.pipeline_mode<synchronous>, transform_indices = @transform_2, window_bounds = array<i64: 3, 16, 8>}, {pipeline_mode = #tpu.pipeline_mode<synchronous>, transform_indices = @transform_3, window_bounds = array<i64: 32, 1>}, {pipeline_mode = #tpu.pipeline_mode<synchronous>, transform_indices = @transform_4, window_bounds = array<i64: 16, 1>}, {pipeline_mode = #tpu.pipeline_mode<synchronous>, transform_indices = @transform_5, window_bounds = array<i64: 16, 1>}, {pipeline_mode = #tpu.pipeline_mode<synchronous>, transform_indices = @transform_6, window_bounds = array<i64: 3, 8, 16>}, {pipeline_mode = #tpu.pipeline_mode<synchronous>, transform_indices = @transform_7, window_bounds = array<i64: 16, 1>}, {pipeline_mode = #tpu.pipeline_mode<synchronous>, transform_indices = @transform_8, window_bounds = array<i64: 8, 1>}, {pipeline_mode = #tpu.pipeline_mode<synchronous>, transform_indices = @transform_9, window_bounds = array<i64: 8, 1>}, {pipeline_mode = #tpu.pipeline_mode<synchronous>, transform_indices = @transform_10, window_bounds = array<i64: 16, 256>}]} {
    %c0_i32 = arith.constant 0 : i32
    %0 = arith.cmpi eq, %arg0, %c0_i32 : i32
    %1 = arith.extui %0 : i1 to i32
    %c0_i32_0 = arith.constant 0 : i32
    %2 = arith.cmpi ne, %1, %c0_i32_0 : i32
    scf.if %2 {
      %cst = arith.constant 0.000000e+00 : f32
      %12 = vector.broadcast %cst : f32 to vector<16x128xf32>
      %c0 = arith.constant 0 : index
      %c0_4 = arith.constant 0 : index
      %c0_5 = arith.constant 0 : index
      %13 = vector.load %arg3[%c0, %c0_4, %c0_5] : memref<2x16x128xf32, #tpu.memory_space<vmem>>, vector<1x16x128xf32>
      %14 = vector.shape_cast %13 : vector<1x16x128xf32> to vector<16x128xf32>
      %c0_6 = arith.constant 0 : index
      %c0_7 = arith.constant 0 : index
      %15 = vector.load %arg2[%c0_6, %c0_7] : memref<256x128xf32, #tpu.memory_space<vmem>>, vector<128x128xf32>
      %cst_8 = arith.constant dense<0.000000e+00> : vector<16x128xf32>
      %16 = tpu.matmul %14, %15, %cst_8 {dimension_numbers = #tpu.dot_dimension_numbers<[1], [0], [0], [1], [0, 0, 1, 1], [], []>} : vector<16x128xf32>, vector<128x128xf32>, vector<16x128xf32> -> vector<16x128xf32>
      %17 = arith.addf %12, %16 : vector<16x128xf32>
      %c1 = arith.constant 1 : index
      %c0_9 = arith.constant 0 : index
      %c0_10 = arith.constant 0 : index
      %18 = vector.load %arg3[%c1, %c0_9, %c0_10] : memref<2x16x128xf32, #tpu.memory_space<vmem>>, vector<1x16x128xf32>
      %19 = vector.shape_cast %18 : vector<1x16x128xf32> to vector<16x128xf32>
      %c128 = arith.constant 128 : index
      %c0_11 = arith.constant 0 : index
      %20 = vector.load %arg2[%c128, %c0_11] : memref<256x128xf32, #tpu.memory_space<vmem>>, vector<128x128xf32>
      %cst_12 = arith.constant dense<0.000000e+00> : vector<16x128xf32>
      %21 = tpu.matmul %19, %20, %cst_12 {dimension_numbers = #tpu.dot_dimension_numbers<[1], [0], [0], [1], [0, 0, 1, 1], [], []>} : vector<16x128xf32>, vector<128x128xf32>, vector<16x128xf32> -> vector<16x128xf32>
      %22 = arith.addf %17, %21 : vector<16x128xf32>
      %23 = arith.index_cast %arg1 : i32 to index
      %c0_13 = arith.constant 0 : index
      %c0_14 = arith.constant 0 : index
      %24 = vector.load %arg13[%23, %c0_13, %c0_14] : memref<2x32x128xf32, #tpu.memory_space<vmem>>, vector<1x16x128xf32>
      %25 = vector.shape_cast %24 : vector<1x16x128xf32> to vector<16x128xf32>
      %26 = vector.shape_cast %22 : vector<16x128xf32> to vector<1x16x128xf32>
      tpu.vector_store %arg13[%23, %c0_13, %c0_14], %26 {strides = array<i32>} : memref<2x32x128xf32, #tpu.memory_space<vmem>>, vector<1x16x128xf32>,
      %c1_15 = arith.constant 1 : index
      %c0_16 = arith.constant 0 : index
      %c0_17 = arith.constant 0 : index
      %27 = vector.load %arg4[%c1_15, %c0_16, %c0_17] : memref<3x16x8xf32, #tpu.memory_space<vmem>>, vector<1x16x8xf32>
      %28 = vector.shape_cast %27 : vector<1x16x8xf32> to vector<16x8xf32>
      %c0_18 = arith.constant 0 : index
      %c0_19 = arith.constant 0 : index
      %c0_20 = arith.constant 0 : index
      %29 = vector.load %arg4[%c0_18, %c0_19, %c0_20] : memref<3x16x8xf32, #tpu.memory_space<vmem>>, vector<1x16x8xf32>
      %30 = vector.shape_cast %29 : vector<1x16x8xf32> to vector<16x8xf32>
      %31 = arith.index_cast %arg1 : i32 to index
      %c0_21 = arith.constant 0 : index
      %c0_22 = arith.constant 0 : index
      %32 = vector.load %arg3[%31, %c0_21, %c0_22] : memref<2x16x128xf32, #tpu.memory_space<vmem>>, vector<1x16x128xf32>
      %33 = vector.shape_cast %32 : vector<1x16x128xf32> to vector<16x128xf32>
      %34 = vector.extract_strided_slice %22 {offsets = [0, 0], sizes = [8, 128], strides = [1, 1]} : vector<16x128xf32> to vector<8x128xf32>
      %cst_23 = arith.constant dense<0.000000e+00> : vector<16x128xf32>
      %35 = tpu.matmul %28, %34, %cst_23 {dimension_numbers = #tpu.dot_dimension_numbers<[1], [0], [0], [1], [0, 0, 1, 1], [], []>} : vector<16x8xf32>, vector<8x128xf32>, vector<16x128xf32> -> vector<16x128xf32>
      %36 = vector.extract_strided_slice %33 {offsets = [0, 0], sizes = [8, 128], strides = [1, 1]} : vector<16x128xf32> to vector<8x128xf32>
      %cst_24 = arith.constant dense<0.000000e+00> : vector<16x128xf32>
      %37 = tpu.matmul %30, %36, %cst_24 {dimension_numbers = #tpu.dot_dimension_numbers<[1], [0], [0], [1], [0, 0, 1, 1], [], []>} : vector<16x8xf32>, vector<8x128xf32>, vector<16x128xf32> -> vector<16x128xf32>
      %38 = arith.addf %35, %37 : vector<16x128xf32>
      %c0_25 = arith.constant 0 : index
      %c0_26 = arith.constant 0 : index
      %39 = vector.load %arg5[%c0_25, %c0_26] : memref<32x1xf32, #tpu.memory_space<vmem>>, vector<16x1xf32>
      %40 = vector.broadcast %39 : vector<16x1xf32> to vector<16x128xf32>
      %41 = arith.addf %38, %40 : vector<16x128xf32>
      %42 = arith.index_cast %arg1 : i32 to index
      %c0_27 = arith.constant 0 : index
      %c0_28 = arith.constant 0 : index
      %43 = vector.load %arg15[%42, %c0_27, %c0_28] : memref<2x32x128xf32, #tpu.memory_space<vmem>>, vector<1x16x128xf32>
      %44 = vector.shape_cast %43 : vector<1x16x128xf32> to vector<16x128xf32>
      %45 = vector.shape_cast %41 : vector<16x128xf32> to vector<1x16x128xf32>
      tpu.vector_store %arg15[%42, %c0_27, %c0_28], %45 {strides = array<i32>} : memref<2x32x128xf32, #tpu.memory_space<vmem>>, vector<1x16x128xf32>,
      %46 = vector.extract_strided_slice %22 {offsets = [8, 0], sizes = [8, 128], strides = [1, 1]} : vector<16x128xf32> to vector<8x128xf32>
      %cst_29 = arith.constant dense<0.000000e+00> : vector<16x128xf32>
      %47 = tpu.matmul %28, %46, %cst_29 {dimension_numbers = #tpu.dot_dimension_numbers<[1], [0], [0], [1], [0, 0, 1, 1], [], []>} : vector<16x8xf32>, vector<8x128xf32>, vector<16x128xf32> -> vector<16x128xf32>
      %48 = vector.extract_strided_slice %33 {offsets = [8, 0], sizes = [8, 128], strides = [1, 1]} : vector<16x128xf32> to vector<8x128xf32>
      %cst_30 = arith.constant dense<0.000000e+00> : vector<16x128xf32>
      %49 = tpu.matmul %30, %48, %cst_30 {dimension_numbers = #tpu.dot_dimension_numbers<[1], [0], [0], [1], [0, 0, 1, 1], [], []>} : vector<16x8xf32>, vector<8x128xf32>, vector<16x128xf32> -> vector<16x128xf32>
      %50 = arith.addf %47, %49 : vector<16x128xf32>
      %c16 = arith.constant 16 : index
      %c0_31 = arith.constant 0 : index
      %51 = vector.load %arg5[%c16, %c0_31] : memref<32x1xf32, #tpu.memory_space<vmem>>, vector<16x1xf32>
      %52 = vector.broadcast %51 : vector<16x1xf32> to vector<16x128xf32>
      %53 = arith.addf %50, %52 : vector<16x128xf32>
      %54 = arith.index_cast %arg1 : i32 to index
      %c16_32 = arith.constant 16 : index
      %c0_33 = arith.constant 0 : index
      %55 = vector.load %arg15[%54, %c16_32, %c0_33] : memref<2x32x128xf32, #tpu.memory_space<vmem>>, vector<1x16x128xf32>
      %56 = vector.shape_cast %55 : vector<1x16x128xf32> to vector<16x128xf32>
      %57 = vector.shape_cast %53 : vector<16x128xf32> to vector<1x16x128xf32>
      tpu.vector_store %arg15[%54, %c16_32, %c0_33], %57 {strides = array<i32>} : memref<2x32x128xf32, #tpu.memory_space<vmem>>, vector<1x16x128xf32>,
    } else {
    }
    %c1_i32 = arith.constant 1 : i32
    %3 = arith.cmpi eq, %arg0, %c1_i32 : i32
    %4 = arith.extui %3 : i1 to i32
    %c0_i32_1 = arith.constant 0 : i32
    %5 = arith.cmpi ne, %4, %c0_i32_1 : i32
    scf.if %5 {
      %cst = arith.constant 0.000000e+00 : f32
      %12 = vector.broadcast %cst : f32 to vector<16x128xf32>
      %c0 = arith.constant 0 : index
      %c0_4 = arith.constant 0 : index
      %c0_5 = arith.constant 0 : index
      %13 = vector.load %arg13[%c0, %c0_4, %c0_5] : memref<2x32x128xf32, #tpu.memory_space<vmem>>, vector<1x16x128xf32>
      %14 = vector.shape_cast %13 : vector<1x16x128xf32> to vector<16x128xf32>
      %c0_6 = arith.constant 0 : index
      %c0_7 = arith.constant 0 : index
      %15 = vector.load %arg2[%c0_6, %c0_7] : memref<256x128xf32, #tpu.memory_space<vmem>>, vector<128x128xf32>
      %cst_8 = arith.constant dense<0.000000e+00> : vector<16x128xf32>
      %16 = tpu.matmul %14, %15, %cst_8 {dimension_numbers = #tpu.dot_dimension_numbers<[1], [0], [0], [1], [0, 0, 1, 1], [], []>} : vector<16x128xf32>, vector<128x128xf32>, vector<16x128xf32> -> vector<16x128xf32>
      %17 = arith.addf %12, %16 : vector<16x128xf32>
      %c1 = arith.constant 1 : index
      %c0_9 = arith.constant 0 : index
      %c0_10 = arith.constant 0 : index
      %18 = vector.load %arg13[%c1, %c0_9, %c0_10] : memref<2x32x128xf32, #tpu.memory_space<vmem>>, vector<1x16x128xf32>
      %19 = vector.shape_cast %18 : vector<1x16x128xf32> to vector<16x128xf32>
      %c128 = arith.constant 128 : index
      %c0_11 = arith.constant 0 : index
      %20 = vector.load %arg2[%c128, %c0_11] : memref<256x128xf32, #tpu.memory_space<vmem>>, vector<128x128xf32>
      %cst_12 = arith.constant dense<0.000000e+00> : vector<16x128xf32>
      %21 = tpu.matmul %19, %20, %cst_12 {dimension_numbers = #tpu.dot_dimension_numbers<[1], [0], [0], [1], [0, 0, 1, 1], [], []>} : vector<16x128xf32>, vector<128x128xf32>, vector<16x128xf32> -> vector<16x128xf32>
      %22 = arith.addf %17, %21 : vector<16x128xf32>
      %cst_13 = arith.constant 2.000000e+00 : f32
      %23 = vector.broadcast %cst_13 : f32 to vector<16x128xf32>
      %24 = arith.mulf %23, %22 : vector<16x128xf32>
      %25 = arith.index_cast %arg1 : i32 to index
      %c0_14 = arith.constant 0 : index
      %c0_15 = arith.constant 0 : index
      %26 = vector.load %arg3[%25, %c0_14, %c0_15] : memref<2x16x128xf32, #tpu.memory_space<vmem>>, vector<1x16x128xf32>
      %27 = vector.shape_cast %26 : vector<1x16x128xf32> to vector<16x128xf32>
      %28 = arith.subf %24, %27 : vector<16x128xf32>
      %c2 = arith.constant 2 : index
      %c0_16 = arith.constant 0 : index
      %c0_17 = arith.constant 0 : index
      %29 = vector.load %arg4[%c2, %c0_16, %c0_17] : memref<3x16x8xf32, #tpu.memory_space<vmem>>, vector<1x16x8xf32>
      %30 = vector.shape_cast %29 : vector<1x16x8xf32> to vector<16x8xf32>
      %31 = vector.extract_strided_slice %28 {offsets = [0, 0], sizes = [8, 128], strides = [1, 1]} : vector<16x128xf32> to vector<8x128xf32>
      %cst_18 = arith.constant dense<0.000000e+00> : vector<16x128xf32>
      %32 = tpu.matmul %30, %31, %cst_18 {dimension_numbers = #tpu.dot_dimension_numbers<[1], [0], [0], [1], [0, 0, 1, 1], [], []>} : vector<16x8xf32>, vector<8x128xf32>, vector<16x128xf32> -> vector<16x128xf32>
      %33 = arith.index_cast %arg1 : i32 to index
      %c0_19 = arith.constant 0 : index
      %c0_20 = arith.constant 0 : index
      %34 = vector.load %arg15[%33, %c0_19, %c0_20] : memref<2x32x128xf32, #tpu.memory_space<vmem>>, vector<1x16x128xf32>
      %35 = vector.shape_cast %34 : vector<1x16x128xf32> to vector<16x128xf32>
      %36 = arith.addf %35, %32 : vector<16x128xf32>
      %37 = arith.index_cast %arg1 : i32 to index
      %c0_21 = arith.constant 0 : index
      %c0_22 = arith.constant 0 : index
      %38 = vector.load %arg15[%37, %c0_21, %c0_22] : memref<2x32x128xf32, #tpu.memory_space<vmem>>, vector<1x16x128xf32>
      %39 = vector.shape_cast %38 : vector<1x16x128xf32> to vector<16x128xf32>
      %40 = vector.shape_cast %36 : vector<16x128xf32> to vector<1x16x128xf32>
      tpu.vector_store %arg15[%37, %c0_21, %c0_22], %40 {strides = array<i32>} : memref<2x32x128xf32, #tpu.memory_space<vmem>>, vector<1x16x128xf32>,
      %41 = vector.extract_strided_slice %28 {offsets = [8, 0], sizes = [8, 128], strides = [1, 1]} : vector<16x128xf32> to vector<8x128xf32>
      %cst_23 = arith.constant dense<0.000000e+00> : vector<16x128xf32>
      %42 = tpu.matmul %30, %41, %cst_23 {dimension_numbers = #tpu.dot_dimension_numbers<[1], [0], [0], [1], [0, 0, 1, 1], [], []>} : vector<16x8xf32>, vector<8x128xf32>, vector<16x128xf32> -> vector<16x128xf32>
      %43 = arith.index_cast %arg1 : i32 to index
      %c16 = arith.constant 16 : index
      %c0_24 = arith.constant 0 : index
      %44 = vector.load %arg15[%43, %c16, %c0_24] : memref<2x32x128xf32, #tpu.memory_space<vmem>>, vector<1x16x128xf32>
      %45 = vector.shape_cast %44 : vector<1x16x128xf32> to vector<16x128xf32>
      %46 = arith.addf %45, %42 : vector<16x128xf32>
      %47 = arith.index_cast %arg1 : i32 to index
      %c16_25 = arith.constant 16 : index
      %c0_26 = arith.constant 0 : index
      %48 = vector.load %arg15[%47, %c16_25, %c0_26] : memref<2x32x128xf32, #tpu.memory_space<vmem>>, vector<1x16x128xf32>
      %49 = vector.shape_cast %48 : vector<1x16x128xf32> to vector<16x128xf32>
      %50 = vector.shape_cast %46 : vector<16x128xf32> to vector<1x16x128xf32>
      tpu.vector_store %arg15[%47, %c16_25, %c0_26], %50 {strides = array<i32>} : memref<2x32x128xf32, #tpu.memory_space<vmem>>, vector<1x16x128xf32>,
    } else {
    }
    %c2_i32 = arith.constant 2 : i32
    %6 = arith.cmpi eq, %arg0, %c2_i32 : i32
    %7 = arith.extui %6 : i1 to i32
    %c0_i32_2 = arith.constant 0 : i32
    %8 = arith.cmpi ne, %7, %c0_i32_2 : i32
    scf.if %8 {
      %c0_i32_4 = arith.constant 0 : i32
      %12 = arith.cmpi eq, %arg1, %c0_i32_4 : i32
      %13 = arith.extui %12 : i1 to i32
      %c0_i32_5 = arith.constant 0 : i32
      %14 = arith.cmpi ne, %13, %c0_i32_5 : i32
      scf.if %14 {
        %cst_36 = arith.constant 0.000000e+00 : f32
        %61 = vector.broadcast %cst_36 : f32 to vector<16x1xf32>
        %cst_37 = arith.constant 0.000000e+00 : f32
        %62 = vector.broadcast %cst_37 : f32 to vector<16x1xf32>
        %c0_38 = arith.constant 0 : index
        %c0_39 = arith.constant 0 : index
        %c0_40 = arith.constant 0 : index
        %63 = vector.load %arg15[%c0_38, %c0_39, %c0_40] : memref<2x32x128xf32, #tpu.memory_space<vmem>>, vector<1x16x128xf32>
        %64 = vector.shape_cast %63 : vector<1x16x128xf32> to vector<16x128xf32>
        %cst_41 = arith.constant dense<0.000000e+00> : vector<16xf32>
        %65 = vector.multi_reduction <add>, %64, %cst_41 [1] : vector<16x128xf32> to vector<16xf32>
        %66 = vector.shape_cast %65 : vector<16xf32> to vector<16x1xf32>
        %67 = arith.addf %61, %66 : vector<16x1xf32>
        %68 = arith.mulf %64, %64 : vector<16x128xf32>
        %cst_42 = arith.constant dense<0.000000e+00> : vector<16xf32>
        %69 = vector.multi_reduction <add>, %68, %cst_42 [1] : vector<16x128xf32> to vector<16xf32>
        %70 = vector.shape_cast %69 : vector<16xf32> to vector<16x1xf32>
        %71 = arith.addf %62, %70 : vector<16x1xf32>
        %c0_43 = arith.constant 0 : index
        %c16 = arith.constant 16 : index
        %c0_44 = arith.constant 0 : index
        %72 = vector.load %arg15[%c0_43, %c16, %c0_44] : memref<2x32x128xf32, #tpu.memory_space<vmem>>, vector<1x16x128xf32>
        %73 = vector.shape_cast %72 : vector<1x16x128xf32> to vector<16x128xf32>
        %cst_45 = arith.constant dense<0.000000e+00> : vector<16xf32>
        %74 = vector.multi_reduction <add>, %73, %cst_45 [1] : vector<16x128xf32> to vector<16xf32>
        %75 = vector.shape_cast %74 : vector<16xf32> to vector<16x1xf32>
        %76 = arith.addf %67, %75 : vector<16x1xf32>
        %77 = arith.mulf %73, %73 : vector<16x128xf32>
        %cst_46 = arith.constant dense<0.000000e+00> : vector<16xf32>
        %78 = vector.multi_reduction <add>, %77, %cst_46 [1] : vector<16x128xf32> to vector<16xf32>
        %79 = vector.shape_cast %78 : vector<16xf32> to vector<16x1xf32>
        %80 = arith.addf %71, %79 : vector<16x1xf32>
        %c1_47 = arith.constant 1 : index
        %c0_48 = arith.constant 0 : index
        %c0_49 = arith.constant 0 : index
        %81 = vector.load %arg15[%c1_47, %c0_48, %c0_49] : memref<2x32x128xf32, #tpu.memory_space<vmem>>, vector<1x16x128xf32>
        %82 = vector.shape_cast %81 : vector<1x16x128xf32> to vector<16x128xf32>
        %cst_50 = arith.constant dense<0.000000e+00> : vector<16xf32>
        %83 = vector.multi_reduction <add>, %82, %cst_50 [1] : vector<16x128xf32> to vector<16xf32>
        %84 = vector.shape_cast %83 : vector<16xf32> to vector<16x1xf32>
        %85 = arith.addf %76, %84 : vector<16x1xf32>
        %86 = arith.mulf %82, %82 : vector<16x128xf32>
        %cst_51 = arith.constant dense<0.000000e+00> : vector<16xf32>
        %87 = vector.multi_reduction <add>, %86, %cst_51 [1] : vector<16x128xf32> to vector<16xf32>
        %88 = vector.shape_cast %87 : vector<16xf32> to vector<16x1xf32>
        %89 = arith.addf %80, %88 : vector<16x1xf32>
        %c1_52 = arith.constant 1 : index
        %c16_53 = arith.constant 16 : index
        %c0_54 = arith.constant 0 : index
        %90 = vector.load %arg15[%c1_52, %c16_53, %c0_54] : memref<2x32x128xf32, #tpu.memory_space<vmem>>, vector<1x16x128xf32>
        %91 = vector.shape_cast %90 : vector<1x16x128xf32> to vector<16x128xf32>
        %cst_55 = arith.constant dense<0.000000e+00> : vector<16xf32>
        %92 = vector.multi_reduction <add>, %91, %cst_55 [1] : vector<16x128xf32> to vector<16xf32>
        %93 = vector.shape_cast %92 : vector<16xf32> to vector<16x1xf32>
        %94 = arith.addf %85, %93 : vector<16x1xf32>
        %95 = arith.mulf %91, %91 : vector<16x128xf32>
        %cst_56 = arith.constant dense<0.000000e+00> : vector<16xf32>
        %96 = vector.multi_reduction <add>, %95, %cst_56 [1] : vector<16x128xf32> to vector<16xf32>
        %97 = vector.shape_cast %96 : vector<16xf32> to vector<16x1xf32>
        %98 = arith.addf %89, %97 : vector<16x1xf32>
        %cst_57 = arith.constant 5.120000e+02 : f32
        %99 = vector.broadcast %cst_57 : f32 to vector<16x1xf32>
        %100 = arith.divf %94, %99 : vector<16x1xf32>
        %cst_58 = arith.constant 5.120000e+02 : f32
        %101 = vector.broadcast %cst_58 : f32 to vector<16x1xf32>
        %102 = arith.divf %98, %101 : vector<16x1xf32>
        %103 = arith.mulf %100, %100 : vector<16x1xf32>
        %104 = arith.subf %102, %103 : vector<16x1xf32>
        %cst_59 = arith.constant 0.000000e+00 : f32
        %105 = vector.broadcast %cst_59 : f32 to vector<16x1xf32>
        %106 = arith.maximumf %104, %105 : vector<16x1xf32>
        %c0_60 = arith.constant 0 : index
        %c0_61 = arith.constant 0 : index
        %107 = vector.load %arg6[%c0_60, %c0_61] : memref<16x1xf32, #tpu.memory_space<vmem>>, vector<16x1xf32>
        %cst_62 = arith.constant 9.99999974E-6 : f32
        %108 = vector.broadcast %cst_62 : f32 to vector<16x1xf32>
        %109 = arith.addf %106, %108 : vector<16x1xf32>
        %110 = math.rsqrt %109 : vector<16x1xf32>
        %111 = arith.mulf %107, %110 : vector<16x1xf32>
        %c0_63 = arith.constant 0 : index
        %c0_64 = arith.constant 0 : index
        %112 = vector.load %arg7[%c0_63, %c0_64] : memref<16x1xf32, #tpu.memory_space<vmem>>, vector<16x1xf32>
        %113 = arith.mulf %100, %111 : vector<16x1xf32>
        %114 = arith.subf %112, %113 : vector<16x1xf32>
        %c0_65 = arith.constant 0 : index
        %c0_66 = arith.constant 0 : index
        %c0_67 = arith.constant 0 : index
        %115 = vector.load %arg15[%c0_65, %c0_66, %c0_67] : memref<2x32x128xf32, #tpu.memory_space<vmem>>, vector<1x16x128xf32>
        %116 = vector.shape_cast %115 : vector<1x16x128xf32> to vector<16x128xf32>
        %117 = vector.broadcast %111 : vector<16x1xf32> to vector<16x128xf32>
        %118 = arith.mulf %116, %117 : vector<16x128xf32>
        %119 = vector.broadcast %114 : vector<16x1xf32> to vector<16x128xf32>
        %120 = arith.addf %118, %119 : vector<16x128xf32>
        %cst_68 = arith.constant 0.000000e+00 : f32
        %121 = vector.broadcast %cst_68 : f32 to vector<16x128xf32>
        %122 = arith.maximumf %120, %121 : vector<16x128xf32>
        %c0_69 = arith.constant 0 : index
        %c0_70 = arith.constant 0 : index
        %c0_71 = arith.constant 0 : index
        %123 = vector.load %arg13[%c0_69, %c0_70, %c0_71] : memref<2x32x128xf32, #tpu.memory_space<vmem>>, vector<1x16x128xf32>
        %124 = vector.shape_cast %123 : vector<1x16x128xf32> to vector<16x128xf32>
        %125 = vector.shape_cast %122 : vector<16x128xf32> to vector<1x16x128xf32>
        tpu.vector_store %arg13[%c0_69, %c0_70, %c0_71], %125 {strides = array<i32>} : memref<2x32x128xf32, #tpu.memory_space<vmem>>, vector<1x16x128xf32>,
        %c0_72 = arith.constant 0 : index
        %c16_73 = arith.constant 16 : index
        %c0_74 = arith.constant 0 : index
        %126 = vector.load %arg15[%c0_72, %c16_73, %c0_74] : memref<2x32x128xf32, #tpu.memory_space<vmem>>, vector<1x16x128xf32>
        %127 = vector.shape_cast %126 : vector<1x16x128xf32> to vector<16x128xf32>
        %128 = vector.broadcast %111 : vector<16x1xf32> to vector<16x128xf32>
        %129 = arith.mulf %127, %128 : vector<16x128xf32>
        %130 = vector.broadcast %114 : vector<16x1xf32> to vector<16x128xf32>
        %131 = arith.addf %129, %130 : vector<16x128xf32>
        %cst_75 = arith.constant 0.000000e+00 : f32
        %132 = vector.broadcast %cst_75 : f32 to vector<16x128xf32>
        %133 = arith.maximumf %131, %132 : vector<16x128xf32>
        %c0_76 = arith.constant 0 : index
        %c16_77 = arith.constant 16 : index
        %c0_78 = arith.constant 0 : index
        %134 = vector.load %arg13[%c0_76, %c16_77, %c0_78] : memref<2x32x128xf32, #tpu.memory_space<vmem>>, vector<1x16x128xf32>
        %135 = vector.shape_cast %134 : vector<1x16x128xf32> to vector<16x128xf32>
        %136 = vector.shape_cast %133 : vector<16x128xf32> to vector<1x16x128xf32>
        tpu.vector_store %arg13[%c0_76, %c16_77, %c0_78], %136 {strides = array<i32>} : memref<2x32x128xf32, #tpu.memory_space<vmem>>, vector<1x16x128xf32>,
        %c1_79 = arith.constant 1 : index
        %c0_80 = arith.constant 0 : index
        %c0_81 = arith.constant 0 : index
        %137 = vector.load %arg15[%c1_79, %c0_80, %c0_81] : memref<2x32x128xf32, #tpu.memory_space<vmem>>, vector<1x16x128xf32>
        %138 = vector.shape_cast %137 : vector<1x16x128xf32> to vector<16x128xf32>
        %139 = vector.broadcast %111 : vector<16x1xf32> to vector<16x128xf32>
        %140 = arith.mulf %138, %139 : vector<16x128xf32>
        %141 = vector.broadcast %114 : vector<16x1xf32> to vector<16x128xf32>
        %142 = arith.addf %140, %141 : vector<16x128xf32>
        %cst_82 = arith.constant 0.000000e+00 : f32
        %143 = vector.broadcast %cst_82 : f32 to vector<16x128xf32>
        %144 = arith.maximumf %142, %143 : vector<16x128xf32>
        %c1_83 = arith.constant 1 : index
        %c0_84 = arith.constant 0 : index
        %c0_85 = arith.constant 0 : index
        %145 = vector.load %arg13[%c1_83, %c0_84, %c0_85] : memref<2x32x128xf32, #tpu.memory_space<vmem>>, vector<1x16x128xf32>
        %146 = vector.shape_cast %145 : vector<1x16x128xf32> to vector<16x128xf32>
        %147 = vector.shape_cast %144 : vector<16x128xf32> to vector<1x16x128xf32>
        tpu.vector_store %arg13[%c1_83, %c0_84, %c0_85], %147 {strides = array<i32>} : memref<2x32x128xf32, #tpu.memory_space<vmem>>, vector<1x16x128xf32>,
        %c1_86 = arith.constant 1 : index
        %c16_87 = arith.constant 16 : index
        %c0_88 = arith.constant 0 : index
        %148 = vector.load %arg15[%c1_86, %c16_87, %c0_88] : memref<2x32x128xf32, #tpu.memory_space<vmem>>, vector<1x16x128xf32>
        %149 = vector.shape_cast %148 : vector<1x16x128xf32> to vector<16x128xf32>
        %150 = vector.broadcast %111 : vector<16x1xf32> to vector<16x128xf32>
        %151 = arith.mulf %149, %150 : vector<16x128xf32>
        %152 = vector.broadcast %114 : vector<16x1xf32> to vector<16x128xf32>
        %153 = arith.addf %151, %152 : vector<16x128xf32>
        %cst_89 = arith.constant 0.000000e+00 : f32
        %154 = vector.broadcast %cst_89 : f32 to vector<16x128xf32>
        %155 = arith.maximumf %153, %154 : vector<16x128xf32>
        %c1_90 = arith.constant 1 : index
        %c16_91 = arith.constant 16 : index
        %c0_92 = arith.constant 0 : index
        %156 = vector.load %arg13[%c1_90, %c16_91, %c0_92] : memref<2x32x128xf32, #tpu.memory_space<vmem>>, vector<1x16x128xf32>
        %157 = vector.shape_cast %156 : vector<1x16x128xf32> to vector<16x128xf32>
        %158 = vector.shape_cast %155 : vector<16x128xf32> to vector<1x16x128xf32>
        tpu.vector_store %arg13[%c1_90, %c16_91, %c0_92], %158 {strides = array<i32>} : memref<2x32x128xf32, #tpu.memory_space<vmem>>, vector<1x16x128xf32>,
      } else {
      }
      %cst = arith.constant 0.000000e+00 : f32
      %15 = vector.broadcast %cst : f32 to vector<32x128xf32>
      %c0 = arith.constant 0 : index
      %c0_6 = arith.constant 0 : index
      %c0_7 = arith.constant 0 : index
      %16 = vector.load %arg13[%c0, %c0_6, %c0_7] : memref<2x32x128xf32, #tpu.memory_space<vmem>>, vector<1x32x128xf32>
      %17 = vector.shape_cast %16 : vector<1x32x128xf32> to vector<32x128xf32>
      %c0_8 = arith.constant 0 : index
      %c0_9 = arith.constant 0 : index
      %18 = vector.load %arg2[%c0_8, %c0_9] : memref<256x128xf32, #tpu.memory_space<vmem>>, vector<128x128xf32>
      %cst_10 = arith.constant dense<0.000000e+00> : vector<32x128xf32>
      %19 = tpu.matmul %17, %18, %cst_10 {dimension_numbers = #tpu.dot_dimension_numbers<[1], [0], [0], [1], [0, 0, 1, 1], [], []>} : vector<32x128xf32>, vector<128x128xf32>, vector<32x128xf32> -> vector<32x128xf32>
      %20 = arith.addf %15, %19 : vector<32x128xf32>
      %c1 = arith.constant 1 : index
      %c0_11 = arith.constant 0 : index
      %c0_12 = arith.constant 0 : index
      %21 = vector.load %arg13[%c1, %c0_11, %c0_12] : memref<2x32x128xf32, #tpu.memory_space<vmem>>, vector<1x32x128xf32>
      %22 = vector.shape_cast %21 : vector<1x32x128xf32> to vector<32x128xf32>
      %c128 = arith.constant 128 : index
      %c0_13 = arith.constant 0 : index
      %23 = vector.load %arg2[%c128, %c0_13] : memref<256x128xf32, #tpu.memory_space<vmem>>, vector<128x128xf32>
      %cst_14 = arith.constant dense<0.000000e+00> : vector<32x128xf32>
      %24 = tpu.matmul %22, %23, %cst_14 {dimension_numbers = #tpu.dot_dimension_numbers<[1], [0], [0], [1], [0, 0, 1, 1], [], []>} : vector<32x128xf32>, vector<128x128xf32>, vector<32x128xf32> -> vector<32x128xf32>
      %25 = arith.addf %20, %24 : vector<32x128xf32>
      %26 = arith.index_cast %arg1 : i32 to index
      %c0_15 = arith.constant 0 : index
      %c0_16 = arith.constant 0 : index
      %27 = vector.load %arg14[%26, %c0_15, %c0_16] : memref<2x32x128xf32, #tpu.memory_space<vmem>>, vector<1x32x128xf32>
      %28 = vector.shape_cast %27 : vector<1x32x128xf32> to vector<32x128xf32>
      %29 = vector.shape_cast %25 : vector<32x128xf32> to vector<1x32x128xf32>
      tpu.vector_store %arg14[%26, %c0_15, %c0_16], %29 {strides = array<i32>} : memref<2x32x128xf32, #tpu.memory_space<vmem>>, vector<1x32x128xf32>,
      %c1_17 = arith.constant 1 : index
      %c0_18 = arith.constant 0 : index
      %c0_19 = arith.constant 0 : index
      %30 = vector.load %arg8[%c1_17, %c0_18, %c0_19] : memref<3x8x16xf32, #tpu.memory_space<vmem>>, vector<1x8x16xf32>
      %31 = vector.shape_cast %30 : vector<1x8x16xf32> to vector<8x16xf32>
      %c0_20 = arith.constant 0 : index
      %c0_21 = arith.constant 0 : index
      %c0_22 = arith.constant 0 : index
      %32 = vector.load %arg8[%c0_20, %c0_21, %c0_22] : memref<3x8x16xf32, #tpu.memory_space<vmem>>, vector<1x8x16xf32>
      %33 = vector.shape_cast %32 : vector<1x8x16xf32> to vector<8x16xf32>
      %34 = arith.index_cast %arg1 : i32 to index
      %c0_23 = arith.constant 0 : index
      %c0_24 = arith.constant 0 : index
      %35 = vector.load %arg13[%34, %c0_23, %c0_24] : memref<2x32x128xf32, #tpu.memory_space<vmem>>, vector<1x32x128xf32>
      %36 = vector.shape_cast %35 : vector<1x32x128xf32> to vector<32x128xf32>
      %37 = vector.extract_strided_slice %25 {offsets = [0, 0], sizes = [16, 128], strides = [1, 1]} : vector<32x128xf32> to vector<16x128xf32>
      %cst_25 = arith.constant dense<0.000000e+00> : vector<8x128xf32>
      %38 = tpu.matmul %31, %37, %cst_25 {dimension_numbers = #tpu.dot_dimension_numbers<[1], [0], [0], [1], [0, 0, 1, 1], [], []>} : vector<8x16xf32>, vector<16x128xf32>, vector<8x128xf32> -> vector<8x128xf32>
      %39 = vector.extract_strided_slice %36 {offsets = [0, 0], sizes = [16, 128], strides = [1, 1]} : vector<32x128xf32> to vector<16x128xf32>
      %cst_26 = arith.constant dense<0.000000e+00> : vector<8x128xf32>
      %40 = tpu.matmul %33, %39, %cst_26 {dimension_numbers = #tpu.dot_dimension_numbers<[1], [0], [0], [1], [0, 0, 1, 1], [], []>} : vector<8x16xf32>, vector<16x128xf32>, vector<8x128xf32> -> vector<8x128xf32>
      %41 = arith.addf %38, %40 : vector<8x128xf32>
      %c0_27 = arith.constant 0 : index
      %c0_28 = arith.constant 0 : index
      %42 = vector.load %arg9[%c0_27, %c0_28] : memref<16x1xf32, #tpu.memory_space<vmem>>, vector<8x1xf32>
      %43 = vector.broadcast %42 : vector<8x1xf32> to vector<8x128xf32>
      %44 = arith.addf %41, %43 : vector<8x128xf32>
      %45 = arith.index_cast %arg1 : i32 to index
      %c0_29 = arith.constant 0 : index
      %c0_30 = arith.constant 0 : index
      %46 = vector.load %arg15[%45, %c0_29, %c0_30] : memref<2x32x128xf32, #tpu.memory_space<vmem>>, vector<1x8x128xf32>
      %47 = vector.shape_cast %46 : vector<1x8x128xf32> to vector<8x128xf32>
      %48 = vector.shape_cast %44 : vector<8x128xf32> to vector<1x8x128xf32>
      tpu.vector_store %arg15[%45, %c0_29, %c0_30], %48 {strides = array<i32>} : memref<2x32x128xf32, #tpu.memory_space<vmem>>, vector<1x8x128xf32>,
      %49 = vector.extract_strided_slice %25 {offsets = [16, 0], sizes = [16, 128], strides = [1, 1]} : vector<32x128xf32> to vector<16x128xf32>
      %cst_31 = arith.constant dense<0.000000e+00> : vector<8x128xf32>
      %50 = tpu.matmul %31, %49, %cst_31 {dimension_numbers = #tpu.dot_dimension_numbers<[1], [0], [0], [1], [0, 0, 1, 1], [], []>} : vector<8x16xf32>, vector<16x128xf32>, vector<8x128xf32> -> vector<8x128xf32>
      %51 = vector.extract_strided_slice %36 {offsets = [16, 0], sizes = [16, 128], strides = [1, 1]} : vector<32x128xf32> to vector<16x128xf32>
      %cst_32 = arith.constant dense<0.000000e+00> : vector<8x128xf32>
      %52 = tpu.matmul %33, %51, %cst_32 {dimension_numbers = #tpu.dot_dimension_numbers<[1], [0], [0], [1], [0, 0, 1, 1], [], []>} : vector<8x16xf32>, vector<16x128xf32>, vector<8x128xf32> -> vector<8x128xf32>
      %53 = arith.addf %50, %52 : vector<8x128xf32>
      %c8 = arith.constant 8 : index
      %c0_33 = arith.constant 0 : index
      %54 = vector.load %arg9[%c8, %c0_33] : memref<16x1xf32, #tpu.memory_space<vmem>>, vector<8x1xf32>
      %55 = vector.broadcast %54 : vector<8x1xf32> to vector<8x128xf32>
      %56 = arith.addf %53, %55 : vector<8x128xf32>
      %57 = arith.index_cast %arg1 : i32 to index
      %c8_34 = arith.constant 8 : index
      %c0_35 = arith.constant 0 : index
      %58 = vector.load %arg15[%57, %c8_34, %c0_35] : memref<2x32x128xf32, #tpu.memory_space<vmem>>, vector<1x8x128xf32>
      %59 = vector.shape_cast %58 : vector<1x8x128xf32> to vector<8x128xf32>
      %60 = vector.shape_cast %56 : vector<8x128xf32> to vector<1x8x128xf32>
      tpu.vector_store %arg15[%57, %c8_34, %c0_35], %60 {strides = array<i32>} : memref<2x32x128xf32, #tpu.memory_space<vmem>>, vector<1x8x128xf32>,
    } else {
    }
    %c3_i32 = arith.constant 3 : i32
    %9 = arith.cmpi eq, %arg0, %c3_i32 : i32
    %10 = arith.extui %9 : i1 to i32
    %c0_i32_3 = arith.constant 0 : i32
    %11 = arith.cmpi ne, %10, %c0_i32_3 : i32
    scf.if %11 {
      %cst = arith.constant 0.000000e+00 : f32
      %12 = vector.broadcast %cst : f32 to vector<32x128xf32>
      %c0 = arith.constant 0 : index
      %c0_4 = arith.constant 0 : index
      %c0_5 = arith.constant 0 : index
      %13 = vector.load %arg14[%c0, %c0_4, %c0_5] : memref<2x32x128xf32, #tpu.memory_space<vmem>>, vector<1x32x128xf32>
      %14 = vector.shape_cast %13 : vector<1x32x128xf32> to vector<32x128xf32>
      %c0_6 = arith.constant 0 : index
      %c0_7 = arith.constant 0 : index
      %15 = vector.load %arg2[%c0_6, %c0_7] : memref<256x128xf32, #tpu.memory_space<vmem>>, vector<128x128xf32>
      %cst_8 = arith.constant dense<0.000000e+00> : vector<32x128xf32>
      %16 = tpu.matmul %14, %15, %cst_8 {dimension_numbers = #tpu.dot_dimension_numbers<[1], [0], [0], [1], [0, 0, 1, 1], [], []>} : vector<32x128xf32>, vector<128x128xf32>, vector<32x128xf32> -> vector<32x128xf32>
      %17 = arith.addf %12, %16 : vector<32x128xf32>
      %c1 = arith.constant 1 : index
      %c0_9 = arith.constant 0 : index
      %c0_10 = arith.constant 0 : index
      %18 = vector.load %arg14[%c1, %c0_9, %c0_10] : memref<2x32x128xf32, #tpu.memory_space<vmem>>, vector<1x32x128xf32>
      %19 = vector.shape_cast %18 : vector<1x32x128xf32> to vector<32x128xf32>
      %c128 = arith.constant 128 : index
      %c0_11 = arith.constant 0 : index
      %20 = vector.load %arg2[%c128, %c0_11] : memref<256x128xf32, #tpu.memory_space<vmem>>, vector<128x128xf32>
      %cst_12 = arith.constant dense<0.000000e+00> : vector<32x128xf32>
      %21 = tpu.matmul %19, %20, %cst_12 {dimension_numbers = #tpu.dot_dimension_numbers<[1], [0], [0], [1], [0, 0, 1, 1], [], []>} : vector<32x128xf32>, vector<128x128xf32>, vector<32x128xf32> -> vector<32x128xf32>
      %22 = arith.addf %17, %21 : vector<32x128xf32>
      %cst_13 = arith.constant 2.000000e+00 : f32
      %23 = vector.broadcast %cst_13 : f32 to vector<32x128xf32>
      %24 = arith.mulf %23, %22 : vector<32x128xf32>
      %25 = arith.index_cast %arg1 : i32 to index
      %c0_14 = arith.constant 0 : index
      %c0_15 = arith.constant 0 : index
      %26 = vector.load %arg13[%25, %c0_14, %c0_15] : memref<2x32x128xf32, #tpu.memory_space<vmem>>, vector<1x32x128xf32>
      %27 = vector.shape_cast %26 : vector<1x32x128xf32> to vector<32x128xf32>
      %28 = arith.subf %24, %27 : vector<32x128xf32>
      %c2 = arith.constant 2 : index
      %c0_16 = arith.constant 0 : index
      %c0_17 = arith.constant 0 : index
      %29 = vector.load %arg8[%c2, %c0_16, %c0_17] : memref<3x8x16xf32, #tpu.memory_space<vmem>>, vector<1x8x16xf32>
      %30 = vector.shape_cast %29 : vector<1x8x16xf32> to vector<8x16xf32>
      %31 = vector.extract_strided_slice %28 {offsets = [0, 0], sizes = [16, 128], strides = [1, 1]} : vector<32x128xf32> to vector<16x128xf32>
      %cst_18 = arith.constant dense<0.000000e+00> : vector<8x128xf32>
      %32 = tpu.matmul %30, %31, %cst_18 {dimension_numbers = #tpu.dot_dimension_numbers<[1], [0], [0], [1], [0, 0, 1, 1], [], []>} : vector<8x16xf32>, vector<16x128xf32>, vector<8x128xf32> -> vector<8x128xf32>
      %33 = arith.index_cast %arg1 : i32 to index
      %c0_19 = arith.constant 0 : index
      %c0_20 = arith.constant 0 : index
      %34 = vector.load %arg15[%33, %c0_19, %c0_20] : memref<2x32x128xf32, #tpu.memory_space<vmem>>, vector<1x8x128xf32>
      %35 = vector.shape_cast %34 : vector<1x8x128xf32> to vector<8x128xf32>
      %36 = arith.addf %35, %32 : vector<8x128xf32>
      %37 = arith.index_cast %arg1 : i32 to index
      %c0_21 = arith.constant 0 : index
      %c0_22 = arith.constant 0 : index
      %38 = vector.load %arg15[%37, %c0_21, %c0_22] : memref<2x32x128xf32, #tpu.memory_space<vmem>>, vector<1x8x128xf32>
      %39 = vector.shape_cast %38 : vector<1x8x128xf32> to vector<8x128xf32>
      %40 = vector.shape_cast %36 : vector<8x128xf32> to vector<1x8x128xf32>
      tpu.vector_store %arg15[%37, %c0_21, %c0_22], %40 {strides = array<i32>} : memref<2x32x128xf32, #tpu.memory_space<vmem>>, vector<1x8x128xf32>,
      %41 = vector.extract_strided_slice %28 {offsets = [16, 0], sizes = [16, 128], strides = [1, 1]} : vector<32x128xf32> to vector<16x128xf32>
      %cst_23 = arith.constant dense<0.000000e+00> : vector<8x128xf32>
      %42 = tpu.matmul %30, %41, %cst_23 {dimension_numbers = #tpu.dot_dimension_numbers<[1], [0], [0], [1], [0, 0, 1, 1], [], []>} : vector<8x16xf32>, vector<16x128xf32>, vector<8x128xf32> -> vector<8x128xf32>
      %43 = arith.index_cast %arg1 : i32 to index
      %c8 = arith.constant 8 : index
      %c0_24 = arith.constant 0 : index
      %44 = vector.load %arg15[%43, %c8, %c0_24] : memref<2x32x128xf32, #tpu.memory_space<vmem>>, vector<1x8x128xf32>
      %45 = vector.shape_cast %44 : vector<1x8x128xf32> to vector<8x128xf32>
      %46 = arith.addf %45, %42 : vector<8x128xf32>
      %47 = arith.index_cast %arg1 : i32 to index
      %c8_25 = arith.constant 8 : index
      %c0_26 = arith.constant 0 : index
      %48 = vector.load %arg15[%47, %c8_25, %c0_26] : memref<2x32x128xf32, #tpu.memory_space<vmem>>, vector<1x8x128xf32>
      %49 = vector.shape_cast %48 : vector<1x8x128xf32> to vector<8x128xf32>
      %50 = vector.shape_cast %46 : vector<8x128xf32> to vector<1x8x128xf32>
      tpu.vector_store %arg15[%47, %c8_25, %c0_26], %50 {strides = array<i32>} : memref<2x32x128xf32, #tpu.memory_space<vmem>>, vector<1x8x128xf32>,
      %c1_i32_27 = arith.constant 1 : i32
      %51 = arith.cmpi eq, %arg1, %c1_i32_27 : i32
      %52 = arith.extui %51 : i1 to i32
      %c0_i32_28 = arith.constant 0 : i32
      %53 = arith.cmpi ne, %52, %c0_i32_28 : i32
      scf.if %53 {
        %cst_29 = arith.constant 0.000000e+00 : f32
        %54 = vector.broadcast %cst_29 : f32 to vector<8x1xf32>
        %cst_30 = arith.constant 0.000000e+00 : f32
        %55 = vector.broadcast %cst_30 : f32 to vector<8x1xf32>
        %c0_31 = arith.constant 0 : index
        %c0_32 = arith.constant 0 : index
        %c0_33 = arith.constant 0 : index
        %56 = vector.load %arg15[%c0_31, %c0_32, %c0_33] : memref<2x32x128xf32, #tpu.memory_space<vmem>>, vector<1x8x128xf32>
        %57 = vector.shape_cast %56 : vector<1x8x128xf32> to vector<8x128xf32>
        %cst_34 = arith.constant dense<0.000000e+00> : vector<8xf32>
        %58 = vector.multi_reduction <add>, %57, %cst_34 [1] : vector<8x128xf32> to vector<8xf32>
        %59 = vector.shape_cast %58 : vector<8xf32> to vector<8x1xf32>
        %60 = arith.addf %54, %59 : vector<8x1xf32>
        %61 = arith.mulf %57, %57 : vector<8x128xf32>
        %cst_35 = arith.constant dense<0.000000e+00> : vector<8xf32>
        %62 = vector.multi_reduction <add>, %61, %cst_35 [1] : vector<8x128xf32> to vector<8xf32>
        %63 = vector.shape_cast %62 : vector<8xf32> to vector<8x1xf32>
        %64 = arith.addf %55, %63 : vector<8x1xf32>
        %c0_36 = arith.constant 0 : index
        %c8_37 = arith.constant 8 : index
        %c0_38 = arith.constant 0 : index
        %65 = vector.load %arg15[%c0_36, %c8_37, %c0_38] : memref<2x32x128xf32, #tpu.memory_space<vmem>>, vector<1x8x128xf32>
        %66 = vector.shape_cast %65 : vector<1x8x128xf32> to vector<8x128xf32>
        %cst_39 = arith.constant dense<0.000000e+00> : vector<8xf32>
        %67 = vector.multi_reduction <add>, %66, %cst_39 [1] : vector<8x128xf32> to vector<8xf32>
        %68 = vector.shape_cast %67 : vector<8xf32> to vector<8x1xf32>
        %69 = arith.addf %60, %68 : vector<8x1xf32>
        %70 = arith.mulf %66, %66 : vector<8x128xf32>
        %cst_40 = arith.constant dense<0.000000e+00> : vector<8xf32>
        %71 = vector.multi_reduction <add>, %70, %cst_40 [1] : vector<8x128xf32> to vector<8xf32>
        %72 = vector.shape_cast %71 : vector<8xf32> to vector<8x1xf32>
        %73 = arith.addf %64, %72 : vector<8x1xf32>
        %c1_41 = arith.constant 1 : index
        %c0_42 = arith.constant 0 : index
        %c0_43 = arith.constant 0 : index
        %74 = vector.load %arg15[%c1_41, %c0_42, %c0_43] : memref<2x32x128xf32, #tpu.memory_space<vmem>>, vector<1x8x128xf32>
        %75 = vector.shape_cast %74 : vector<1x8x128xf32> to vector<8x128xf32>
        %cst_44 = arith.constant dense<0.000000e+00> : vector<8xf32>
        %76 = vector.multi_reduction <add>, %75, %cst_44 [1] : vector<8x128xf32> to vector<8xf32>
        %77 = vector.shape_cast %76 : vector<8xf32> to vector<8x1xf32>
        %78 = arith.addf %69, %77 : vector<8x1xf32>
        %79 = arith.mulf %75, %75 : vector<8x128xf32>
        %cst_45 = arith.constant dense<0.000000e+00> : vector<8xf32>
        %80 = vector.multi_reduction <add>, %79, %cst_45 [1] : vector<8x128xf32> to vector<8xf32>
        %81 = vector.shape_cast %80 : vector<8xf32> to vector<8x1xf32>
        %82 = arith.addf %73, %81 : vector<8x1xf32>
        %c1_46 = arith.constant 1 : index
        %c8_47 = arith.constant 8 : index
        %c0_48 = arith.constant 0 : index
        %83 = vector.load %arg15[%c1_46, %c8_47, %c0_48] : memref<2x32x128xf32, #tpu.memory_space<vmem>>, vector<1x8x128xf32>
        %84 = vector.shape_cast %83 : vector<1x8x128xf32> to vector<8x128xf32>
        %cst_49 = arith.constant dense<0.000000e+00> : vector<8xf32>
        %85 = vector.multi_reduction <add>, %84, %cst_49 [1] : vector<8x128xf32> to vector<8xf32>
        %86 = vector.shape_cast %85 : vector<8xf32> to vector<8x1xf32>
        %87 = arith.addf %78, %86 : vector<8x1xf32>
        %88 = arith.mulf %84, %84 : vector<8x128xf32>
        %cst_50 = arith.constant dense<0.000000e+00> : vector<8xf32>
        %89 = vector.multi_reduction <add>, %88, %cst_50 [1] : vector<8x128xf32> to vector<8xf32>
        %90 = vector.shape_cast %89 : vector<8xf32> to vector<8x1xf32>
        %91 = arith.addf %82, %90 : vector<8x1xf32>
        %cst_51 = arith.constant 5.120000e+02 : f32
        %92 = vector.broadcast %cst_51 : f32 to vector<8x1xf32>
        %93 = arith.divf %87, %92 : vector<8x1xf32>
        %cst_52 = arith.constant 5.120000e+02 : f32
        %94 = vector.broadcast %cst_52 : f32 to vector<8x1xf32>
        %95 = arith.divf %91, %94 : vector<8x1xf32>
        %96 = arith.mulf %93, %93 : vector<8x1xf32>
        %97 = arith.subf %95, %96 : vector<8x1xf32>
        %cst_53 = arith.constant 0.000000e+00 : f32
        %98 = vector.broadcast %cst_53 : f32 to vector<8x1xf32>
        %99 = arith.maximumf %97, %98 : vector<8x1xf32>
        %c0_54 = arith.constant 0 : index
        %c0_55 = arith.constant 0 : index
        %100 = vector.load %arg10[%c0_54, %c0_55] : memref<8x1xf32, #tpu.memory_space<vmem>>, vector<8x1xf32>
        %cst_56 = arith.constant 9.99999974E-6 : f32
        %101 = vector.broadcast %cst_56 : f32 to vector<8x1xf32>
        %102 = arith.addf %99, %101 : vector<8x1xf32>
        %103 = math.rsqrt %102 : vector<8x1xf32>
        %104 = arith.mulf %100, %103 : vector<8x1xf32>
        %c0_57 = arith.constant 0 : index
        %c0_58 = arith.constant 0 : index
        %105 = vector.load %arg11[%c0_57, %c0_58] : memref<8x1xf32, #tpu.memory_space<vmem>>, vector<8x1xf32>
        %106 = arith.mulf %93, %104 : vector<8x1xf32>
        %107 = arith.subf %105, %106 : vector<8x1xf32>
        %c0_59 = arith.constant 0 : index
        %c0_60 = arith.constant 0 : index
        %c0_61 = arith.constant 0 : index
        %108 = vector.load %arg15[%c0_59, %c0_60, %c0_61] : memref<2x32x128xf32, #tpu.memory_space<vmem>>, vector<1x8x128xf32>
        %109 = vector.shape_cast %108 : vector<1x8x128xf32> to vector<8x128xf32>
        %110 = vector.broadcast %104 : vector<8x1xf32> to vector<8x128xf32>
        %111 = arith.mulf %109, %110 : vector<8x128xf32>
        %112 = vector.broadcast %107 : vector<8x1xf32> to vector<8x128xf32>
        %113 = arith.addf %111, %112 : vector<8x128xf32>
        %cst_62 = arith.constant 0.000000e+00 : f32
        %114 = vector.broadcast %cst_62 : f32 to vector<8x128xf32>
        %115 = arith.maximumf %113, %114 : vector<8x128xf32>
        %c0_63 = arith.constant 0 : index
        %c0_64 = arith.constant 0 : index
        %116 = vector.load %arg12[%c0_63, %c0_64] : memref<16x256xf32, #tpu.memory_space<vmem>>, vector<8x128xf32>
        tpu.vector_store %arg12[%c0_63, %c0_64], %115 {strides = array<i32>} : memref<16x256xf32, #tpu.memory_space<vmem>>, vector<8x128xf32>,
        %c0_65 = arith.constant 0 : index
        %c8_66 = arith.constant 8 : index
        %c0_67 = arith.constant 0 : index
        %117 = vector.load %arg15[%c0_65, %c8_66, %c0_67] : memref<2x32x128xf32, #tpu.memory_space<vmem>>, vector<1x8x128xf32>
        %118 = vector.shape_cast %117 : vector<1x8x128xf32> to vector<8x128xf32>
        %119 = vector.broadcast %104 : vector<8x1xf32> to vector<8x128xf32>
        %120 = arith.mulf %118, %119 : vector<8x128xf32>
        %121 = vector.broadcast %107 : vector<8x1xf32> to vector<8x128xf32>
        %122 = arith.addf %120, %121 : vector<8x128xf32>
        %cst_68 = arith.constant 0.000000e+00 : f32
        %123 = vector.broadcast %cst_68 : f32 to vector<8x128xf32>
        %124 = arith.maximumf %122, %123 : vector<8x128xf32>
        %c8_69 = arith.constant 8 : index
        %c0_70 = arith.constant 0 : index
        %125 = vector.load %arg12[%c8_69, %c0_70] : memref<16x256xf32, #tpu.memory_space<vmem>>, vector<8x128xf32>
        tpu.vector_store %arg12[%c8_69, %c0_70], %124 {strides = array<i32>} : memref<16x256xf32, #tpu.memory_space<vmem>>, vector<8x128xf32>,
        %c1_71 = arith.constant 1 : index
        %c0_72 = arith.constant 0 : index
        %c0_73 = arith.constant 0 : index
        %126 = vector.load %arg15[%c1_71, %c0_72, %c0_73] : memref<2x32x128xf32, #tpu.memory_space<vmem>>, vector<1x8x128xf32>
        %127 = vector.shape_cast %126 : vector<1x8x128xf32> to vector<8x128xf32>
        %128 = vector.broadcast %104 : vector<8x1xf32> to vector<8x128xf32>
        %129 = arith.mulf %127, %128 : vector<8x128xf32>
        %130 = vector.broadcast %107 : vector<8x1xf32> to vector<8x128xf32>
        %131 = arith.addf %129, %130 : vector<8x128xf32>
        %cst_74 = arith.constant 0.000000e+00 : f32
        %132 = vector.broadcast %cst_74 : f32 to vector<8x128xf32>
        %133 = arith.maximumf %131, %132 : vector<8x128xf32>
        %c0_75 = arith.constant 0 : index
        %c128_76 = arith.constant 128 : index
        %134 = vector.load %arg12[%c0_75, %c128_76] : memref<16x256xf32, #tpu.memory_space<vmem>>, vector<8x128xf32>
        tpu.vector_store %arg12[%c0_75, %c128_76], %133 {strides = array<i32>} : memref<16x256xf32, #tpu.memory_space<vmem>>, vector<8x128xf32>,
        %c1_77 = arith.constant 1 : index
        %c8_78 = arith.constant 8 : index
        %c0_79 = arith.constant 0 : index
        %135 = vector.load %arg15[%c1_77, %c8_78, %c0_79] : memref<2x32x128xf32, #tpu.memory_space<vmem>>, vector<1x8x128xf32>
        %136 = vector.shape_cast %135 : vector<1x8x128xf32> to vector<8x128xf32>
        %137 = vector.broadcast %104 : vector<8x1xf32> to vector<8x128xf32>
        %138 = arith.mulf %136, %137 : vector<8x128xf32>
        %139 = vector.broadcast %107 : vector<8x1xf32> to vector<8x128xf32>
        %140 = arith.addf %138, %139 : vector<8x128xf32>
        %cst_80 = arith.constant 0.000000e+00 : f32
        %141 = vector.broadcast %cst_80 : f32 to vector<8x128xf32>
        %142 = arith.maximumf %140, %141 : vector<8x128xf32>
        %c8_81 = arith.constant 8 : index
        %c128_82 = arith.constant 128 : index
        %143 = vector.load %arg12[%c8_81, %c128_82] : memref<16x256xf32, #tpu.memory_space<vmem>>, vector<8x128xf32>
        tpu.vector_store %arg12[%c8_81, %c128_82], %142 {strides = array<i32>} : memref<16x256xf32, #tpu.memory_space<vmem>>, vector<8x128xf32>,
      } else {
      }
    } else {
    }
    return
  }
  func.func @transform_0(%arg0: i32, %arg1: i32) -> (i32, i32) {
    %c0_i32 = arith.constant 0 : i32
    %c0_i32_0 = arith.constant 0 : i32
    return %c0_i32, %arg1 : i32, i32
  }
  func.func @transform_1(%arg0: i32, %arg1: i32) -> (i32, i32, i32) {
    %c0_i32 = arith.constant 0 : i32
    %c0_i32_0 = arith.constant 0 : i32
    %c0_i32_1 = arith.constant 0 : i32
    %c0_i32_2 = arith.constant 0 : i32
    return %c0_i32, %c0_i32_0, %c0_i32_1 : i32, i32, i32
  }
  func.func @transform_2(%arg0: i32, %arg1: i32) -> (i32, i32, i32) {
    %c0_i32 = arith.constant 0 : i32
    %c0_i32_0 = arith.constant 0 : i32
    %c0_i32_1 = arith.constant 0 : i32
    %c0_i32_2 = arith.constant 0 : i32
    return %c0_i32, %c0_i32_0, %c0_i32_1 : i32, i32, i32
  }
  func.func @transform_3(%arg0: i32, %arg1: i32) -> (i32, i32) {
    %c0_i32 = arith.constant 0 : i32
    %c0_i32_0 = arith.constant 0 : i32
    %c0_i32_1 = arith.constant 0 : i32
    return %c0_i32, %c0_i32_0 : i32, i32
  }
  func.func @transform_4(%arg0: i32, %arg1: i32) -> (i32, i32) {
    %c0_i32 = arith.constant 0 : i32
    %c0_i32_0 = arith.constant 0 : i32
    %c0_i32_1 = arith.constant 0 : i32
    return %c0_i32, %c0_i32_0 : i32, i32
  }
  func.func @transform_5(%arg0: i32, %arg1: i32) -> (i32, i32) {
    %c0_i32 = arith.constant 0 : i32
    %c0_i32_0 = arith.constant 0 : i32
    %c0_i32_1 = arith.constant 0 : i32
    return %c0_i32, %c0_i32_0 : i32, i32
  }
  func.func @transform_6(%arg0: i32, %arg1: i32) -> (i32, i32, i32) {
    %c0_i32 = arith.constant 0 : i32
    %c0_i32_0 = arith.constant 0 : i32
    %c0_i32_1 = arith.constant 0 : i32
    %c0_i32_2 = arith.constant 0 : i32
    return %c0_i32, %c0_i32_0, %c0_i32_1 : i32, i32, i32
  }
  func.func @transform_7(%arg0: i32, %arg1: i32) -> (i32, i32) {
    %c0_i32 = arith.constant 0 : i32
    %c0_i32_0 = arith.constant 0 : i32
    %c0_i32_1 = arith.constant 0 : i32
    return %c0_i32, %c0_i32_0 : i32, i32
  }
  func.func @transform_8(%arg0: i32, %arg1: i32) -> (i32, i32) {
    %c0_i32 = arith.constant 0 : i32
    %c0_i32_0 = arith.constant 0 : i32
    %c0_i32_1 = arith.constant 0 : i32
    return %c0_i32, %c0_i32_0 : i32, i32
  }
  func.func @transform_9(%arg0: i32, %arg1: i32) -> (i32, i32) {
    %c0_i32 = arith.constant 0 : i32
    %c0_i32_0 = arith.constant 0 : i32
    %c0_i32_1 = arith.constant 0 : i32
    return %c0_i32, %c0_i32_0 : i32, i32
  }
  func.func @transform_10(%arg0: i32, %arg1: i32) -> (i32, i32) {
    %c0_i32 = arith.constant 0 : i32
    %c0_i32_0 = arith.constant 0 : i32
    %c0_i32_1 = arith.constant 0 : i32
    return %c0_i32, %c0_i32_0 : i32, i32
  }
}

</mosaic_0001>

<llo_original>
// kernel: tpu_custom_call.1
$region0: #{tpu_custom_call.1}
  #allocation0 [shape = 'u32[]', space=smem, size = 0x4, offset = 0x4, fixed_abs, tag = 'smem constant byte address 0x4 - core index']
  #allocation1 [shape = 'u32[72,128]{1,0:T(1,128)}', space=vmem, size = 0x9000, scoped, tag = 'internal scratch']
  #allocation2 [shape = 'f32[2,32,128]{2,1,0:T(8,128)}', space=vmem, size = 0x8000, scoped, tag = 'scratch operand']
  #allocation3 [shape = 'f32[2,32,128]{2,1,0:T(8,128)}', space=vmem, size = 0x8000, scoped, tag = 'scratch operand']
  #allocation4 [shape = 'f32[2,32,128]{2,1,0:T(8,128)}', space=vmem, size = 0x8000, scoped, tag = 'scratch operand']
  %s0 = inlined_call_operand.hbm [shape: f32[256,256], index: 0, kind: input, shape index: {}]
  %s1 = inlined_call_operand.vmem [shape: f32[2,16,128], index: 1, kind: input, shape index: {}]
  %s2 = inlined_call_operand.vmem [shape: f32[3,16,8], index: 2, kind: input, shape index: {}]
  %s3 = inlined_call_operand.vmem [shape: f32[32,1], index: 3, kind: input, shape index: {}]
  %s4 = inlined_call_operand.vmem [shape: f32[16,1], index: 4, kind: input, shape index: {}]
  %s5 = inlined_call_operand.vmem [shape: f32[16,1], index: 5, kind: input, shape index: {}]
  %s6 = inlined_call_operand.vmem [shape: f32[3,8,16], index: 6, kind: input, shape index: {}]
  %s7 = inlined_call_operand.vmem [shape: f32[16,1], index: 7, kind: input, shape index: {}]
  %s8 = inlined_call_operand.vmem [shape: f32[8,1], index: 8, kind: input, shape index: {}]
  %s9 = inlined_call_operand.vmem [shape: f32[8,1], index: 9, kind: input, shape index: {}]
  %s10 = inlined_call_operand.hbm [shape: f32[16,256], index: 10, kind: output, shape index: {}]
  %s11 = sld [smem:[#allocation0]]
  $region101: #{tpu_custom_call.1} parent=0
    _
  %s13 = ssub.s32 1, %s11
  %s14 = scalar_select 0, %s13, %s11
  $region1: #{tpu_custom_call.1} parent=0
    #allocation5 [shape = 'u8[262144]{0}', space=vmem, size = 0x40000, scoped, tag = 'input window, operand 0']
    #allocation6 [shape = 's32[2]{0}', space=sflag, size = 0x8, scoped, tag = 'scoped memory for tpu_custom_call.1']
    #allocation7 [shape = 's32[2]{0}', space=sflag, size = 0x8, scoped, tag = 'scoped memory for tpu_custom_call.1']
    #allocation8 [shape = 'u8[16384]{0}', space=vmem, size = 0x4000, scoped, tag = 'output window, operand 0, single buffered']
    %15 = vsyncpa [#allocation6], 0
    %s16 = scalar_lea.sflag [#allocation6], 1
    %17 = vsyncpa %s16, 0
    %18 = vsyncpa [#allocation7], 0
    loop: start=0, step=1, limit=10
    $region2: #{tpu_custom_call.1} parent=1 // loop_pre_header
      _
    $region3: #{tpu_custom_call.1} parent=1 // loop_header
      %s20 = sphi 0, %s24
      %p21 = scmp.ge.s32.totalorder %s20, 10
      %s27 = sphi 0, %s39
      %s28 = sphi 0, %s35
      %s29 = sphi 0, %s27
      %s30 = sphi 0, %s28
      %s31 = sphi 0, %s29
      %s32 = sphi 0, %s30
      %s42 = sphi 0, %s44
      %s45 = sphi 0, %s42
      %s46 = sphi 0, %s45
      %s62 = sphi 0, %s46
      %s66 = sphi 0, %s66
      %s68 = sphi 0, %s66
      %s69 = sphi 0, %s68
      %s83 = sphi 0, %s69
      %s87 = sphi 0, %s87
      %s89 = sphi 0, %s87
      %s90 = sphi 0, %s89
      %s104 = sphi 0, %s90
      %s108 = sphi 0, %s108
      %s110 = sphi 0, %s108
      %s111 = sphi 0, %s110
      %s125 = sphi 0, %s111
      %s129 = sphi 0, %s129
      %s131 = sphi 0, %s129
      %s132 = sphi 0, %s131
      %s146 = sphi 0, %s132
      %s150 = sphi 0, %s150
      %s152 = sphi 0, %s150
      %s153 = sphi 0, %s152
      %s167 = sphi 0, %s153
      %s171 = sphi 0, %s171
      %s173 = sphi 0, %s171
      %s174 = sphi 0, %s173
      %s188 = sphi 0, %s174
      %s192 = sphi 0, %s192
      %s194 = sphi 0, %s192
      %s195 = sphi 0, %s194
      %s209 = sphi 0, %s195
      %s213 = sphi 0, %s213
      %s215 = sphi 0, %s213
      %s216 = sphi 0, %s215
      %s230 = sphi 0, %s216
      %s234 = sphi 0, %s234
      %s236 = sphi 0, %s234
      %s237 = sphi 0, %s236
      %s251 = sphi 0, %s237
      %s255 = sphi 0, %s255
      %s257 = sphi 0, %s255
      %s258 = sphi 0, %s257
      %s272 = sphi 0, %s258
    $region4: #{tpu_custom_call.1} parent=1 // loop_header_branch
      %23 = sbr.rel (%p21) target = $region8
    $region5: #{tpu_custom_call.1} parent=1 // loop_body
      %s25 = ssub.s32 %s20, 1
      %s26 = ssub.s32 %s20, 2
      %s33 = sadd.s32 1, %s28
      %p34 = scmp.ge.s32.totalorder %s33, 2
      %s35 = scalar_select %p34, 0, %s33
      %s36 = sadd.s32 1, %s27
      %s37 = scalar_select %p34, %s36, %s27
      %p38 = scmp.ge.s32.totalorder %s37, 4
      %s39 = scalar_select %p38, 0, %s37
      %s40 = ssub.s32 %s28, %s35
      %p41 = scmp.eq.s32.totalorder %s40, 0
      %s43 = sadd.s32 %s42, 1
      %s44 = scalar_select %p41, %s42, %s43
      %p47 = pneg %p41
      %p48 = scmp.eq.s32.totalorder %s20, 7
      %p49 = por %p47, %p48
      %p50 = scmp.ne.s32.totalorder %s42, %s45
      %p51 = scmp.eq.s32.totalorder %s20, 0
      %p52 = por %p50, %p51
      %p53 = scmp.ne.s32.totalorder %s42, %s45
      %p54 = scmp.eq.s32.totalorder %s25, 7
      %p55 = por %p53, %p54
      %p56 = scmp.ne.s32.totalorder %s45, %s46
      %p57 = scmp.eq.s32.totalorder %s25, 0
      %p58 = por %p56, %p57
      %p59 = scmp.ne.s32.totalorder %s45, %s46
      %p60 = scmp.eq.s32.totalorder %s26, 7
      %p61 = por %p59, %p60
      %p63 = scmp.ne.s32.totalorder %s46, %s62
      %p64 = scmp.eq.s32.totalorder %s26, 0
      %p65 = por %p63, %p64
      %s67 = sadd.s32 %s66, 1
      %p70 = scmp.eq.s32.totalorder %s20, 7
      %p71 = scmp.ne.s32.totalorder %s66, %s68
      %p72 = scmp.eq.s32.totalorder %s20, 0
      %p73 = por %p71, %p72
      %p74 = scmp.ne.s32.totalorder %s66, %s68
      %p75 = scmp.eq.s32.totalorder %s25, 7
      %p76 = por %p74, %p75
      %p77 = scmp.ne.s32.totalorder %s68, %s69
      %p78 = scmp.eq.s32.totalorder %s25, 0
      %p79 = por %p77, %p78
      %p80 = scmp.ne.s32.totalorder %s68, %s69
      %p81 = scmp.eq.s32.totalorder %s26, 7
      %p82 = por %p80, %p81
      %p84 = scmp.ne.s32.totalorder %s69, %s83
      %p85 = scmp.eq.s32.totalorder %s26, 0
      %p86 = por %p84, %p85
      %s88 = sadd.s32 %s87, 1
      %p91 = scmp.eq.s32.totalorder %s20, 7
      %p92 = scmp.ne.s32.totalorder %s87, %s89
      %p93 = scmp.eq.s32.totalorder %s20, 0
      %p94 = por %p92, %p93
      %p95 = scmp.ne.s32.totalorder %s87, %s89
      %p96 = scmp.eq.s32.totalorder %s25, 7
      %p97 = por %p95, %p96
      %p98 = scmp.ne.s32.totalorder %s89, %s90
      %p99 = scmp.eq.s32.totalorder %s25, 0
      %p100 = por %p98, %p99
      %p101 = scmp.ne.s32.totalorder %s89, %s90
      %p102 = scmp.eq.s32.totalorder %s26, 7
      %p103 = por %p101, %p102
      %p105 = scmp.ne.s32.totalorder %s90, %s104
      %p106 = scmp.eq.s32.totalorder %s26, 0
      %p107 = por %p105, %p106
      %s109 = sadd.s32 %s108, 1
      %p112 = scmp.eq.s32.totalorder %s20, 7
      %p113 = scmp.ne.s32.totalorder %s108, %s110
      %p114 = scmp.eq.s32.totalorder %s20, 0
      %p115 = por %p113, %p114
      %p116 = scmp.ne.s32.totalorder %s108, %s110
      %p117 = scmp.eq.s32.totalorder %s25, 7
      %p118 = por %p116, %p117
      %p119 = scmp.ne.s32.totalorder %s110, %s111
      %p120 = scmp.eq.s32.totalorder %s25, 0
      %p121 = por %p119, %p120
      %p122 = scmp.ne.s32.totalorder %s110, %s111
      %p123 = scmp.eq.s32.totalorder %s26, 7
      %p124 = por %p122, %p123
      %p126 = scmp.ne.s32.totalorder %s111, %s125
      %p127 = scmp.eq.s32.totalorder %s26, 0
      %p128 = por %p126, %p127
      %s130 = sadd.s32 %s129, 1
      %p133 = scmp.eq.s32.totalorder %s20, 7
      %p134 = scmp.ne.s32.totalorder %s129, %s131
      %p135 = scmp.eq.s32.totalorder %s20, 0
      %p136 = por %p134, %p135
      %p137 = scmp.ne.s32.totalorder %s129, %s131
      %p138 = scmp.eq.s32.totalorder %s25, 7
      %p139 = por %p137, %p138
      %p140 = scmp.ne.s32.totalorder %s131, %s132
      %p141 = scmp.eq.s32.totalorder %s25, 0
      %p142 = por %p140, %p141
      %p143 = scmp.ne.s32.totalorder %s131, %s132
      %p144 = scmp.eq.s32.totalorder %s26, 7
      %p145 = por %p143, %p144
      %p147 = scmp.ne.s32.totalorder %s132, %s146
      %p148 = scmp.eq.s32.totalorder %s26, 0
      %p149 = por %p147, %p148
      %s151 = sadd.s32 %s150, 1
      %p154 = scmp.eq.s32.totalorder %s20, 7
      %p155 = scmp.ne.s32.totalorder %s150, %s152
      %p156 = scmp.eq.s32.totalorder %s20, 0
      %p157 = por %p155, %p156
      %p158 = scmp.ne.s32.totalorder %s150, %s152
      %p159 = scmp.eq.s32.totalorder %s25, 7
      %p160 = por %p158, %p159
      %p161 = scmp.ne.s32.totalorder %s152, %s153
      %p162 = scmp.eq.s32.totalorder %s25, 0
      %p163 = por %p161, %p162
      %p164 = scmp.ne.s32.totalorder %s152, %s153
      %p165 = scmp.eq.s32.totalorder %s26, 7
      %p166 = por %p164, %p165
      %p168 = scmp.ne.s32.totalorder %s153, %s167
      %p169 = scmp.eq.s32.totalorder %s26, 0
      %p170 = por %p168, %p169
      %s172 = sadd.s32 %s171, 1
      %p175 = scmp.eq.s32.totalorder %s20, 7
      %p176 = scmp.ne.s32.totalorder %s171, %s173
      %p177 = scmp.eq.s32.totalorder %s20, 0
      %p178 = por %p176, %p177
      %p179 = scmp.ne.s32.totalorder %s171, %s173
      %p180 = scmp.eq.s32.totalorder %s25, 7
      %p181 = por %p179, %p180
      %p182 = scmp.ne.s32.totalorder %s173, %s174
      %p183 = scmp.eq.s32.totalorder %s25, 0
      %p184 = por %p182, %p183
      %p185 = scmp.ne.s32.totalorder %s173, %s174
      %p186 = scmp.eq.s32.totalorder %s26, 7
      %p187 = por %p185, %p186
      %p189 = scmp.ne.s32.totalorder %s174, %s188
      %p190 = scmp.eq.s32.totalorder %s26, 0
      %p191 = por %p189, %p190
      %s193 = sadd.s32 %s192, 1
      %p196 = scmp.eq.s32.totalorder %s20, 7
      %p197 = scmp.ne.s32.totalorder %s192, %s194
      %p198 = scmp.eq.s32.totalorder %s20, 0
      %p199 = por %p197, %p198
      %p200 = scmp.ne.s32.totalorder %s192, %s194
      %p201 = scmp.eq.s32.totalorder %s25, 7
      %p202 = por %p200, %p201
      %p203 = scmp.ne.s32.totalorder %s194, %s195
      %p204 = scmp.eq.s32.totalorder %s25, 0
      %p205 = por %p203, %p204
      %p206 = scmp.ne.s32.totalorder %s194, %s195
      %p207 = scmp.eq.s32.totalorder %s26, 7
      %p208 = por %p206, %p207
      %p210 = scmp.ne.s32.totalorder %s195, %s209
      %p211 = scmp.eq.s32.totalorder %s26, 0
      %p212 = por %p210, %p211
      %s214 = sadd.s32 %s213, 1
      %p217 = scmp.eq.s32.totalorder %s20, 7
      %p218 = scmp.ne.s32.totalorder %s213, %s215
      %p219 = scmp.eq.s32.totalorder %s20, 0
      %p220 = por %p218, %p219
      %p221 = scmp.ne.s32.totalorder %s213, %s215
      %p222 = scmp.eq.s32.totalorder %s25, 7
      %p223 = por %p221, %p222
      %p224 = scmp.ne.s32.totalorder %s215, %s216
      %p225 = scmp.eq.s32.totalorder %s25, 0
      %p226 = por %p224, %p225
      %p227 = scmp.ne.s32.totalorder %s215, %s216
      %p228 = scmp.eq.s32.totalorder %s26, 7
      %p229 = por %p227, %p228
      %p231 = scmp.ne.s32.totalorder %s216, %s230
      %p232 = scmp.eq.s32.totalorder %s26, 0
      %p233 = por %p231, %p232
      %s235 = sadd.s32 %s234, 1
      %p238 = scmp.eq.s32.totalorder %s20, 7
      %p239 = scmp.ne.s32.totalorder %s234, %s236
      %p240 = scmp.eq.s32.totalorder %s20, 0
      %p241 = por %p239, %p240
      %p242 = scmp.ne.s32.totalorder %s234, %s236
      %p243 = scmp.eq.s32.totalorder %s25, 7
      %p244 = por %p242, %p243
      %p245 = scmp.ne.s32.totalorder %s236, %s237
      %p246 = scmp.eq.s32.totalorder %s25, 0
      %p247 = por %p245, %p246
      %p248 = scmp.ne.s32.totalorder %s236, %s237
      %p249 = scmp.eq.s32.totalorder %s26, 7
      %p250 = por %p248, %p249
      %p252 = scmp.ne.s32.totalorder %s237, %s251
      %p253 = scmp.eq.s32.totalorder %s26, 0
      %p254 = por %p252, %p253
      %s256 = sadd.s32 %s255, 1
      %p259 = scmp.eq.s32.totalorder %s20, 7
      %p260 = scmp.ne.s32.totalorder %s255, %s257
      %p261 = scmp.eq.s32.totalorder %s20, 0
      %p262 = por %p260, %p261
      %p263 = scmp.ne.s32.totalorder %s255, %s257
      %p264 = scmp.eq.s32.totalorder %s25, 7
      %p265 = por %p263, %p264
      %p266 = scmp.ne.s32.totalorder %s257, %s258
      %p267 = scmp.eq.s32.totalorder %s25, 0
      %p268 = por %p266, %p267
      %p269 = scmp.ne.s32.totalorder %s257, %s258
      %p270 = scmp.eq.s32.totalorder %s26, 7
      %p271 = por %p269, %p270
      %p273 = scmp.ne.s32.totalorder %s258, %s272
      %p274 = scmp.eq.s32.totalorder %s26, 0
      %p275 = por %p273, %p274
      %p276 = scmp.le.s32.totalorder 1, %s20
      %p277 = scmp.lt.s32.totalorder %s20, 9
      %p278 = pnand %p276, %p277
      %p279 = pneg %p278
      // Predicated region
      $region9: #{tpu_custom_call.1} parent=5 // pred_check
        _
      $region10: #{tpu_custom_call.1} parent=5 // pred_check_branch
        %281 = sbr.rel (%p278) target = $region12
      $region11: #{tpu_custom_call.1} parent=5 // pred_region
        %s282 = ssub.s32 %s20, 1
        // Predicated region
        $region13: #{tpu_custom_call.1} parent=11 // pred_check
          %p283 = pneg %p79
        $region14: #{tpu_custom_call.1} parent=11 // pred_check_branch
          %285 = sbr.rel (%p283) target = $region16
        $region15: #{tpu_custom_call.1} parent=11 // pred_region
          _
        $region16: #{tpu_custom_call.1} parent=11 // pred_fallthru
          _
        // Predicated region
        $region17: #{tpu_custom_call.1} parent=11 // pred_check
          %p286 = pneg %p100
        $region18: #{tpu_custom_call.1} parent=11 // pred_check_branch
          %288 = sbr.rel (%p286) target = $region20
        $region19: #{tpu_custom_call.1} parent=11 // pred_region
          _
        $region20: #{tpu_custom_call.1} parent=11 // pred_fallthru
          _
        // Predicated region
        $region21: #{tpu_custom_call.1} parent=11 // pred_check
          %p289 = pneg %p121
        $region22: #{tpu_custom_call.1} parent=11 // pred_check_branch
          %291 = sbr.rel (%p289) target = $region24
        $region23: #{tpu_custom_call.1} parent=11 // pred_region
          _
        $region24: #{tpu_custom_call.1} parent=11 // pred_fallthru
          _
        // Predicated region
        $region25: #{tpu_custom_call.1} parent=11 // pred_check
          %p292 = pneg %p142
        $region26: #{tpu_custom_call.1} parent=11 // pred_check_branch
          %294 = sbr.rel (%p292) target = $region28
        $region27: #{tpu_custom_call.1} parent=11 // pred_region
          _
        $region28: #{tpu_custom_call.1} parent=11 // pred_fallthru
          _
        // Predicated region
        $region29: #{tpu_custom_call.1} parent=11 // pred_check
          %p295 = pneg %p163
        $region30: #{tpu_custom_call.1} parent=11 // pred_check_branch
          %297 = sbr.rel (%p295) target = $region32
        $region31: #{tpu_custom_call.1} parent=11 // pred_region
          _
        $region32: #{tpu_custom_call.1} parent=11 // pred_fallthru
          _
        // Predicated region
        $region33: #{tpu_custom_call.1} parent=11 // pred_check
          %p298 = pneg %p184
        $region34: #{tpu_custom_call.1} parent=11 // pred_check_branch
          %300 = sbr.rel (%p298) target = $region36
        $region35: #{tpu_custom_call.1} parent=11 // pred_region
          _
        $region36: #{tpu_custom_call.1} parent=11 // pred_fallthru
          _
        // Predicated region
        $region37: #{tpu_custom_call.1} parent=11 // pred_check
          %p301 = pneg %p205
        $region38: #{tpu_custom_call.1} parent=11 // pred_check_branch
          %303 = sbr.rel (%p301) target = $region40
        $region39: #{tpu_custom_call.1} parent=11 // pred_region
          _
        $region40: #{tpu_custom_call.1} parent=11 // pred_fallthru
          _
        // Predicated region
        $region41: #{tpu_custom_call.1} parent=11 // pred_check
          %p304 = pneg %p226
        $region42: #{tpu_custom_call.1} parent=11 // pred_check_branch
          %306 = sbr.rel (%p304) target = $region44
        $region43: #{tpu_custom_call.1} parent=11 // pred_region
          _
        $region44: #{tpu_custom_call.1} parent=11 // pred_fallthru
          _
        // Predicated region
        $region45: #{tpu_custom_call.1} parent=11 // pred_check
          %p307 = pneg %p247
        $region46: #{tpu_custom_call.1} parent=11 // pred_check_branch
          %309 = sbr.rel (%p307) target = $region48
        $region47: #{tpu_custom_call.1} parent=11 // pred_region
          _
        $region48: #{tpu_custom_call.1} parent=11 // pred_fallthru
          _
      $region12: #{tpu_custom_call.1} parent=5 // pred_fallthru
        _
      %p310 = scmp.lt.s32.totalorder %s20, 8
      // Predicated region
      $region49: #{tpu_custom_call.1} parent=5 // pred_check
        %p311 = pneg %p310
      $region50: #{tpu_custom_call.1} parent=5 // pred_check_branch
        %313 = sbr.rel (%p311) target = $region52
      $region51: #{tpu_custom_call.1} parent=5 // pred_region
        // Predicated region
        $region53: #{tpu_custom_call.1} parent=51 // pred_check
          %p314 = pneg %p52
        $region54: #{tpu_custom_call.1} parent=51 // pred_check_branch
          %316 = sbr.rel (%p314) target = $region56
        $region55: #{tpu_custom_call.1} parent=51 // pred_region
          %s317 = sand.u32 %s42, 1
          %s318 = scalar_lea.sflag [#allocation6], %s317
          %s319 = sand.u32 %s42, 1
          %s320 = smul.addr %s319, 256
          %s321 = scalar_lea.vmem [#allocation5], %s320
          %323 = vsyncadd %s318, 0
          %s324 = smul.addr %s28, 8
          %s325 = scalar_lea.hbm %s0, %s324
          %s326 = sshll.u32 %s325, 4
          %s327 = int_to_ptr.hbm [resolvable:$true] %s326
          %s328 = sshll.u32 %s321, 4
          %s329 = int_to_ptr.vmem [resolvable:$true] %s328
          %334 = dma.hbm_to_vmem [thread:$0]  %s327, 4096, %s329, %s318, 256, 128, 8
        $region56: #{tpu_custom_call.1} parent=51 // pred_fallthru
          _
      $region52: #{tpu_custom_call.1} parent=5 // pred_fallthru
        _
      %p335 = scmp.le.s32.totalorder 1, %s20
      %p336 = scmp.lt.s32.totalorder %s20, 9
      %p337 = pnand %p335, %p336
      %p338 = pneg %p337
      // Predicated region
      $region57: #{tpu_custom_call.1} parent=5 // pred_check
        _
      $region58: #{tpu_custom_call.1} parent=5 // pred_check_branch
        %340 = sbr.rel (%p337) target = $region60
      $region59: #{tpu_custom_call.1} parent=5 // pred_region
        %s341 = ssub.s32 %s20, 1
        %s342 = sand.u32 %s45, 1
        %s343 = scalar_lea.sflag [#allocation6], %s342
        %s344 = sand.u32 %s45, 1
        %s345 = smul.addr %s344, 256
        %s346 = scalar_lea.vmem [#allocation5], %s345
        // Predicated region
        $region61: #{tpu_custom_call.1} parent=59 // pred_check
          %p347 = pneg %p58
        $region62: #{tpu_custom_call.1} parent=59 // pred_check_branch
          %349 = sbr.rel (%p347) target = $region64
        $region63: #{tpu_custom_call.1} parent=59 // pred_region
          %351 = dma.done %s343, 4096
        $region64: #{tpu_custom_call.1} parent=59 // pred_fallthru
          _
        %s352 = sand.u32 %s45, 1
        %s353 = scalar_lea.sflag [#allocation6], %s352
        %s354 = sand.u32 %s45, 1
        %s355 = smul.addr %s354, 256
        %s356 = scalar_lea.vmem [#allocation5], %s355
        %p357 = pneg %p58
        %p358 = pneg %p55
        %p359 = pneg %p79
        %p360 = pneg %p76
        %p361 = pneg %p100
        %p362 = pneg %p97
        %p363 = pneg %p121
        %p364 = pneg %p118
        %p365 = pneg %p142
        %p366 = pneg %p139
        %p367 = pneg %p163
        %p368 = pneg %p160
        %p369 = pneg %p184
        %p370 = pneg %p181
        %p371 = pneg %p205
        %p372 = pneg %p202
        %p373 = pneg %p226
        %p374 = pneg %p223
        %p375 = pneg %p247
        %p376 = pneg %p244
        %p377 = pneg %p268
        %p378 = pneg %p265
        %p379 = scmp.eq.s32.totalorder %s29, 0
        // Predicated region
        $region65: #{tpu_custom_call.1} parent=59 // pred_check
          %p380 = pneg %p379
        $region66: #{tpu_custom_call.1} parent=59 // pred_check_branch
          %382 = sbr.rel (%p380) target = $region68
        $region67: #{tpu_custom_call.1} parent=59 // pred_region
          %v383 = vld [vmem:[%s1] sm:$0xff]
          %v384 = vld [vmem:[%s1 + $0x8] sm:$0xff]
          %v385 = vld [vmem:[%s346] sm:$0xff]
          %v386 = vld [vmem:[%s346 + $0x8] sm:$0xff]
          %v387 = vld [vmem:[%s346 + $0x10] sm:$0xff]
          %v388 = vld [vmem:[%s346 + $0x18] sm:$0xff]
          %v389 = vld [vmem:[%s346 + $0x20] sm:$0xff]
          %v390 = vld [vmem:[%s346 + $0x28] sm:$0xff]
          %v391 = vld [vmem:[%s346 + $0x30] sm:$0xff]
          %v392 = vld [vmem:[%s346 + $0x38] sm:$0xff]
          %v393 = vld [vmem:[%s346 + $0x40] sm:$0xff]
          %v394 = vld [vmem:[%s346 + $0x48] sm:$0xff]
          %v395 = vld [vmem:[%s346 + $0x50] sm:$0xff]
          %v396 = vld [vmem:[%s346 + $0x58] sm:$0xff]
          %v397 = vld [vmem:[%s346 + $0x60] sm:$0xff]
          %v398 = vld [vmem:[%s346 + $0x68] sm:$0xff]
          %v399 = vld [vmem:[%s346 + $0x70] sm:$0xff]
          %v400 = vld [vmem:[%s346 + $0x78] sm:$0xff]
          %s401 = scalar_lea.vmem %s1, 16
          %v402 = vld [vmem:[%s401] sm:$0xff]
          %v403 = vld [vmem:[%s401 + $0x8] sm:$0xff]
          %v404 = vld [vmem:[%s346 + $0x80] sm:$0xff]
          %v405 = vld [vmem:[%s346 + $0x88] sm:$0xff]
          %v406 = vld [vmem:[%s346 + $0x90] sm:$0xff]
          %v407 = vld [vmem:[%s346 + $0x98] sm:$0xff]
          %v408 = vld [vmem:[%s346 + $0xa0] sm:$0xff]
          %v409 = vld [vmem:[%s346 + $0xa8] sm:$0xff]
          %v410 = vld [vmem:[%s346 + $0xb0] sm:$0xff]
          %v411 = vld [vmem:[%s346 + $0xb8] sm:$0xff]
          %v412 = vld [vmem:[%s346 + $0xc0] sm:$0xff]
          %v413 = vld [vmem:[%s346 + $0xc8] sm:$0xff]
          %v414 = vld [vmem:[%s346 + $0xd0] sm:$0xff]
          %v415 = vld [vmem:[%s346 + $0xd8] sm:$0xff]
          %v416 = vld [vmem:[%s346 + $0xe0] sm:$0xff]
          %v417 = vld [vmem:[%s346 + $0xe8] sm:$0xff]
          %v418 = vld [vmem:[%s346 + $0xf0] sm:$0xff]
          %v419 = vld [vmem:[%s346 + $0xf8] sm:$0xff]
          %420 = vmatpush.msra.mxu0 %v419
          %421 = vmatpush.msra.mxu0 %v418
          %422 = vmatpush.msra.mxu0 %v417
          %423 = vmatpush.msra.mxu0 %v416
          %424 = vmatpush.msra.mxu0 %v415
          %425 = vmatpush.msra.mxu0 %v414
          %426 = vmatpush.msra.mxu0 %v413
          %427 = vmatpush.msra.mxu0 %v412
          %428 = vmatpush.msra.mxu0 %v411
          %429 = vmatpush.msra.mxu0 %v410
          %430 = vmatpush.msra.mxu0 %v409
          %431 = vmatpush.msra.mxu0 %v408
          %432 = vmatpush.msra.mxu0 %v407
          %433 = vmatpush.msra.mxu0 %v406
          %434 = vmatpush.msra.mxu0 %v405
          %435 = vmatpush.msra.mxu0 %v404
          %436 = vmatmul.f32.gmra.mxu0 %v402
          %v437 = vpop.f32.mrf.mxu0
          %v438 = vadd.f32 0.0, %v437
          %439 = vmatmul.f32.gmra.mxu0 %v403
          %v440 = vpop.f32.mrf.mxu0
          %v441 = vadd.f32 0.0, %v440
          %442 = vdwg.mxu0
          %443 = vmatpush.msra.mxu0 %v400
          %444 = vmatpush.msra.mxu0 %v399
          %445 = vmatpush.msra.mxu0 %v398
          %446 = vmatpush.msra.mxu0 %v397
          %447 = vmatpush.msra.mxu0 %v396
          %448 = vmatpush.msra.mxu0 %v395
          %449 = vmatpush.msra.mxu0 %v394
          %450 = vmatpush.msra.mxu0 %v393
          %451 = vmatpush.msra.mxu0 %v392
          %452 = vmatpush.msra.mxu0 %v391
          %453 = vmatpush.msra.mxu0 %v390
          %454 = vmatpush.msra.mxu0 %v389
          %455 = vmatpush.msra.mxu0 %v388
          %456 = vmatpush.msra.mxu0 %v387
          %457 = vmatpush.msra.mxu0 %v386
          %458 = vmatpush.msra.mxu0 %v385
          %459 = vmatmul.f32.gmra.mxu0 %v383
          %v460 = vpop.f32.mrf.mxu0
          %v461 = vadd.f32 %v438, %v460
          %462 = vmatmul.f32.gmra.mxu0 %v384
          %v463 = vpop.f32.mrf.mxu0
          %v464 = vadd.f32 %v441, %v463
          %465 = vdwg.mxu0
          %s466 = smul.u32 %s30, 32
          %s467 = scalar_lea.vmem [#allocation2], %s466
          %468 = vst [vmem:[%s467] sm:$0xff] %v461
          %469 = vst [vmem:[%s467 + $0x8] sm:$0xff] %v464
          %s470 = scalar_lea.vmem %s2, 16
          %v471 = vld [vmem:[%s470] sm:$0xff]
          %v472 = vld [vmem:[%s470 + $0x8] sm:$0xff]
          %v473 = vld [vmem:[%s2] sm:$0xff]
          %v474 = vld [vmem:[%s2 + $0x8] sm:$0xff]
          %s475 = smul.u32 %s30, 16
          %s476 = scalar_lea.vmem %s1, %s475
          %v477 = vld [vmem:[%s476] sm:$0xff]
          %v478 = vld [vmem:[%s476 + $0x8] sm:$0xff]
          %vm479 = vcmask 64512
          %v481 = vsel %vm479, %v473, 0
          %v484 = vsel %vm479, %v474, 0
          %486 = vmatpush.msra.mxu0 0.0
          %487 = vmatpush.msra.mxu0 0.0
          %488 = vmatpush.msra.mxu0 0.0
          %489 = vmatpush.msra.mxu0 0.0
          %490 = vmatpush.msra.mxu0 0.0
          %491 = vmatpush.msra.mxu0 0.0
          %492 = vmatpush.msra.mxu0 0.0
          %493 = vmatpush.msra.mxu0 0.0
          %494 = vmatpush.msra.mxu0 0.0
          %495 = vmatpush.msra.mxu0 0.0
          %496 = vmatpush.msra.mxu0 0.0
          %497 = vmatpush.msra.mxu0 0.0
          %498 = vmatpush.msra.mxu0 0.0
          %499 = vmatpush.msra.mxu0 0.0
          %500 = vmatpush.msra.mxu0 0.0
          %501 = vmatpush.msra.mxu0 %v477
          %502 = vmatmul.f32.gmra.mxu0 %v481
          %v503 = vpop.f32.mrf.mxu0
          %v504 = vadd.f32 0.0, %v503
          %505 = vmatmul.f32.gmra.mxu0 %v484
          %v506 = vpop.f32.mrf.mxu0
          %v507 = vadd.f32 0.0, %v506
          %508 = vdwg.mxu0
          %v510 = vsel %vm479, %v471, 0
          %v513 = vsel %vm479, %v472, 0
          %515 = vmatpush.msra.mxu0 0.0
          %516 = vmatpush.msra.mxu0 0.0
          %517 = vmatpush.msra.mxu0 0.0
          %518 = vmatpush.msra.mxu0 0.0
          %519 = vmatpush.msra.mxu0 0.0
          %520 = vmatpush.msra.mxu0 0.0
          %521 = vmatpush.msra.mxu0 0.0
          %522 = vmatpush.msra.mxu0 0.0
          %523 = vmatpush.msra.mxu0 0.0
          %524 = vmatpush.msra.mxu0 0.0
          %525 = vmatpush.msra.mxu0 0.0
          %526 = vmatpush.msra.mxu0 0.0
          %527 = vmatpush.msra.mxu0 0.0
          %528 = vmatpush.msra.mxu0 0.0
          %529 = vmatpush.msra.mxu0 0.0
          %530 = vmatpush.msra.mxu0 %v461
          %531 = vmatmul.f32.gmra.mxu0 %v510
          %v532 = vpop.f32.mrf.mxu0
          %v533 = vadd.f32 %v504, %v532
          %534 = vmatmul.f32.gmra.mxu0 %v513
          %v535 = vpop.f32.mrf.mxu0
          %v536 = vadd.f32 %v507, %v535
          %537 = vdwg.mxu0
          %v538 = vld [vmem:[%s3] sm:$0xff]
          %v539 = vld [vmem:[%s3 + $0x8] sm:$0xff]
          %541 = vset.pattern.permute.xlu0 0
          %542 = vperm.xlu0 %541, %v538
          %v543 = vpop.permute.xlu0 %542
          %546 = vset.pattern.permute.xlu0 0
          %547 = vperm.xlu0 %546, %v539
          %v548 = vpop.permute.xlu0 %547
          %v550 = vadd.f32 %v533, %v543
          %v551 = vadd.f32 %v536, %v548
          %s552 = scalar_lea.vmem [#allocation4], %s466
          %553 = vst [vmem:[%s552] sm:$0xff] %v550
          %554 = vst [vmem:[%s552 + $0x8] sm:$0xff] %v551
          %555 = vmatpush.msra.mxu0 0.0
          %556 = vmatpush.msra.mxu0 0.0
          %557 = vmatpush.msra.mxu0 0.0
          %558 = vmatpush.msra.mxu0 0.0
          %559 = vmatpush.msra.mxu0 0.0
          %560 = vmatpush.msra.mxu0 0.0
          %561 = vmatpush.msra.mxu0 0.0
          %562 = vmatpush.msra.mxu0 0.0
          %563 = vmatpush.msra.mxu0 0.0
          %564 = vmatpush.msra.mxu0 0.0
          %565 = vmatpush.msra.mxu0 0.0
          %566 = vmatpush.msra.mxu0 0.0
          %567 = vmatpush.msra.mxu0 0.0
          %568 = vmatpush.msra.mxu0 0.0
          %569 = vmatpush.msra.mxu0 0.0
          %570 = vmatpush.msra.mxu0 %v478
          %571 = vmatmul.f32.gmra.mxu0 %v481
          %v572 = vpop.f32.mrf.mxu0
          %v573 = vadd.f32 0.0, %v572
          %574 = vmatmul.f32.gmra.mxu0 %v484
          %v575 = vpop.f32.mrf.mxu0
          %v576 = vadd.f32 0.0, %v575
          %577 = vdwg.mxu0
          %578 = vmatpush.msra.mxu0 0.0
          %579 = vmatpush.msra.mxu0 0.0
          %580 = vmatpush.msra.mxu0 0.0
          %581 = vmatpush.msra.mxu0 0.0
          %582 = vmatpush.msra.mxu0 0.0
          %583 = vmatpush.msra.mxu0 0.0
          %584 = vmatpush.msra.mxu0 0.0
          %585 = vmatpush.msra.mxu0 0.0
          %586 = vmatpush.msra.mxu0 0.0
          %587 = vmatpush.msra.mxu0 0.0
          %588 = vmatpush.msra.mxu0 0.0
          %589 = vmatpush.msra.mxu0 0.0
          %590 = vmatpush.msra.mxu0 0.0
          %591 = vmatpush.msra.mxu0 0.0
          %592 = vmatpush.msra.mxu0 0.0
          %593 = vmatpush.msra.mxu0 %v464
          %594 = vmatmul.f32.gmra.mxu0 %v510
          %v595 = vpop.f32.mrf.mxu0
          %v596 = vadd.f32 %v573, %v595
          %597 = vmatmul.f32.gmra.mxu0 %v513
          %v598 = vpop.f32.mrf.mxu0
          %v599 = vadd.f32 %v576, %v598
          %600 = vdwg.mxu0
          %v601 = vld [vmem:[%s3 + $0x10] sm:$0xff]
          %v602 = vld [vmem:[%s3 + $0x18] sm:$0xff]
          %604 = vset.pattern.permute.xlu0 0
          %605 = vperm.xlu0 %604, %v601
          %v606 = vpop.permute.xlu0 %605
          %609 = vset.pattern.permute.xlu0 0
          %610 = vperm.xlu0 %609, %v602
          %v611 = vpop.permute.xlu0 %610
          %v613 = vadd.f32 %v596, %v606
          %v614 = vadd.f32 %v599, %v611
          %615 = vst [vmem:[%s552 + $0x10] sm:$0xff] %v613
          %616 = vst [vmem:[%s552 + $0x18] sm:$0xff] %v614
        $region68: #{tpu_custom_call.1} parent=59 // pred_fallthru
          _
        %p617 = scmp.eq.s32.totalorder %s29, 1
        // Predicated region
        $region69: #{tpu_custom_call.1} parent=59 // pred_check
          %p618 = pneg %p617
        $region70: #{tpu_custom_call.1} parent=59 // pred_check_branch
          %620 = sbr.rel (%p618) target = $region72
        $region71: #{tpu_custom_call.1} parent=59 // pred_region
          %v621 = vld [vmem:[#allocation2] sm:$0xff]
          %v622 = vld [vmem:[#allocation2 + $0x8] sm:$0xff]
          %v623 = vld [vmem:[%s346] sm:$0xff]
          %v624 = vld [vmem:[%s346 + $0x8] sm:$0xff]
          %v625 = vld [vmem:[%s346 + $0x10] sm:$0xff]
          %v626 = vld [vmem:[%s346 + $0x18] sm:$0xff]
          %v627 = vld [vmem:[%s346 + $0x20] sm:$0xff]
          %v628 = vld [vmem:[%s346 + $0x28] sm:$0xff]
          %v629 = vld [vmem:[%s346 + $0x30] sm:$0xff]
          %v630 = vld [vmem:[%s346 + $0x38] sm:$0xff]
          %v631 = vld [vmem:[%s346 + $0x40] sm:$0xff]
          %v632 = vld [vmem:[%s346 + $0x48] sm:$0xff]
          %v633 = vld [vmem:[%s346 + $0x50] sm:$0xff]
          %v634 = vld [vmem:[%s346 + $0x58] sm:$0xff]
          %v635 = vld [vmem:[%s346 + $0x60] sm:$0xff]
          %v636 = vld [vmem:[%s346 + $0x68] sm:$0xff]
          %v637 = vld [vmem:[%s346 + $0x70] sm:$0xff]
          %v638 = vld [vmem:[%s346 + $0x78] sm:$0xff]
          %s639 = scalar_lea.vmem [#allocation2], 32
          %v640 = vld [vmem:[%s639] sm:$0xff]
          %v641 = vld [vmem:[%s639 + $0x8] sm:$0xff]
          %v642 = vld [vmem:[%s346 + $0x80] sm:$0xff]
          %v643 = vld [vmem:[%s346 + $0x88] sm:$0xff]
          %v644 = vld [vmem:[%s346 + $0x90] sm:$0xff]
          %v645 = vld [vmem:[%s346 + $0x98] sm:$0xff]
          %v646 = vld [vmem:[%s346 + $0xa0] sm:$0xff]
          %v647 = vld [vmem:[%s346 + $0xa8] sm:$0xff]
          %v648 = vld [vmem:[%s346 + $0xb0] sm:$0xff]
          %v649 = vld [vmem:[%s346 + $0xb8] sm:$0xff]
          %v650 = vld [vmem:[%s346 + $0xc0] sm:$0xff]
          %v651 = vld [vmem:[%s346 + $0xc8] sm:$0xff]
          %v652 = vld [vmem:[%s346 + $0xd0] sm:$0xff]
          %v653 = vld [vmem:[%s346 + $0xd8] sm:$0xff]
          %v654 = vld [vmem:[%s346 + $0xe0] sm:$0xff]
          %v655 = vld [vmem:[%s346 + $0xe8] sm:$0xff]
          %v656 = vld [vmem:[%s346 + $0xf0] sm:$0xff]
          %v657 = vld [vmem:[%s346 + $0xf8] sm:$0xff]
          %658 = vmatpush.msra.mxu0 %v657
          %659 = vmatpush.msra.mxu0 %v656
          %660 = vmatpush.msra.mxu0 %v655
          %661 = vmatpush.msra.mxu0 %v654
          %662 = vmatpush.msra.mxu0 %v653
          %663 = vmatpush.msra.mxu0 %v652
          %664 = vmatpush.msra.mxu0 %v651
          %665 = vmatpush.msra.mxu0 %v650
          %666 = vmatpush.msra.mxu0 %v649
          %667 = vmatpush.msra.mxu0 %v648
          %668 = vmatpush.msra.mxu0 %v647
          %669 = vmatpush.msra.mxu0 %v646
          %670 = vmatpush.msra.mxu0 %v645
          %671 = vmatpush.msra.mxu0 %v644
          %672 = vmatpush.msra.mxu0 %v643
          %673 = vmatpush.msra.mxu0 %v642
          %674 = vmatmul.f32.gmra.mxu0 %v640
          %v675 = vpop.f32.mrf.mxu0
          %v676 = vadd.f32 0.0, %v675
          %677 = vmatmul.f32.gmra.mxu0 %v641
          %v678 = vpop.f32.mrf.mxu0
          %v679 = vadd.f32 0.0, %v678
          %680 = vdwg.mxu0
          %681 = vmatpush.msra.mxu0 %v638
          %682 = vmatpush.msra.mxu0 %v637
          %683 = vmatpush.msra.mxu0 %v636
          %684 = vmatpush.msra.mxu0 %v635
          %685 = vmatpush.msra.mxu0 %v634
          %686 = vmatpush.msra.mxu0 %v633
          %687 = vmatpush.msra.mxu0 %v632
          %688 = vmatpush.msra.mxu0 %v631
          %689 = vmatpush.msra.mxu0 %v630
          %690 = vmatpush.msra.mxu0 %v629
          %691 = vmatpush.msra.mxu0 %v628
          %692 = vmatpush.msra.mxu0 %v627
          %693 = vmatpush.msra.mxu0 %v626
          %694 = vmatpush.msra.mxu0 %v625
          %695 = vmatpush.msra.mxu0 %v624
          %696 = vmatpush.msra.mxu0 %v623
          %697 = vmatmul.f32.gmra.mxu0 %v621
          %v698 = vpop.f32.mrf.mxu0
          %v699 = vadd.f32 %v676, %v698
          %700 = vmatmul.f32.gmra.mxu0 %v622
          %v701 = vpop.f32.mrf.mxu0
          %v702 = vadd.f32 %v679, %v701
          %703 = vdwg.mxu0
          %v704 = vmul.f32 %v699, 2.0
          %v705 = vmul.f32 %v702, 2.0
          %s706 = smul.u32 %s30, 16
          %s707 = scalar_lea.vmem %s1, %s706
          %v708 = vld [vmem:[%s707] sm:$0xff]
          %v709 = vld [vmem:[%s707 + $0x8] sm:$0xff]
          %v710 = vsub.f32 %v704, %v708
          %v711 = vsub.f32 %v705, %v709
          %s712 = scalar_lea.vmem %s2, 32
          %v713 = vld [vmem:[%s712] sm:$0xff]
          %v714 = vld [vmem:[%s712 + $0x8] sm:$0xff]
          %vm715 = vcmask 64512
          %v717 = vsel %vm715, %v713, 0
          %v720 = vsel %vm715, %v714, 0
          %722 = vmatpush.msra.mxu0 0.0
          %723 = vmatpush.msra.mxu0 0.0
          %724 = vmatpush.msra.mxu0 0.0
          %725 = vmatpush.msra.mxu0 0.0
          %726 = vmatpush.msra.mxu0 0.0
          %727 = vmatpush.msra.mxu0 0.0
          %728 = vmatpush.msra.mxu0 0.0
          %729 = vmatpush.msra.mxu0 0.0
          %730 = vmatpush.msra.mxu0 0.0
          %731 = vmatpush.msra.mxu0 0.0
          %732 = vmatpush.msra.mxu0 0.0
          %733 = vmatpush.msra.mxu0 0.0
          %734 = vmatpush.msra.mxu0 0.0
          %735 = vmatpush.msra.mxu0 0.0
          %736 = vmatpush.msra.mxu0 0.0
          %737 = vmatpush.msra.mxu0 %v710
          %738 = vmatmul.f32.gmra.mxu0 %v717
          %v739 = vpop.f32.mrf.mxu0
          %v740 = vadd.f32 0.0, %v739
          %741 = vmatmul.f32.gmra.mxu0 %v720
          %v742 = vpop.f32.mrf.mxu0
          %v743 = vadd.f32 0.0, %v742
          %744 = vdwg.mxu0
          %s745 = smul.u32 %s30, 32
          %s746 = scalar_lea.vmem [#allocation4], %s745
          %v747 = vld [vmem:[%s746] sm:$0xff]
          %v748 = vld [vmem:[%s746 + $0x8] sm:$0xff]
          %v749 = vadd.f32 %v747, %v740
          %v750 = vadd.f32 %v748, %v743
          %751 = vst [vmem:[%s746] sm:$0xff] %v749
          %752 = vst [vmem:[%s746 + $0x8] sm:$0xff] %v750
          %753 = vmatpush.msra.mxu0 0.0
          %754 = vmatpush.msra.mxu0 0.0
          %755 = vmatpush.msra.mxu0 0.0
          %756 = vmatpush.msra.mxu0 0.0
          %757 = vmatpush.msra.mxu0 0.0
          %758 = vmatpush.msra.mxu0 0.0
          %759 = vmatpush.msra.mxu0 0.0
          %760 = vmatpush.msra.mxu0 0.0
          %761 = vmatpush.msra.mxu0 0.0
          %762 = vmatpush.msra.mxu0 0.0
          %763 = vmatpush.msra.mxu0 0.0
          %764 = vmatpush.msra.mxu0 0.0
          %765 = vmatpush.msra.mxu0 0.0
          %766 = vmatpush.msra.mxu0 0.0
          %767 = vmatpush.msra.mxu0 0.0
          %768 = vmatpush.msra.mxu0 %v711
          %769 = vmatmul.f32.gmra.mxu0 %v717
          %v770 = vpop.f32.mrf.mxu0
          %v771 = vadd.f32 0.0, %v770
          %772 = vmatmul.f32.gmra.mxu0 %v720
          %v773 = vpop.f32.mrf.mxu0
          %v774 = vadd.f32 0.0, %v773
          %775 = vdwg.mxu0
          %v776 = vld [vmem:[%s746 + $0x10] sm:$0xff]
          %v777 = vld [vmem:[%s746 + $0x18] sm:$0xff]
          %v778 = vadd.f32 %v776, %v771
          %v779 = vadd.f32 %v777, %v774
          %780 = vst [vmem:[%s746 + $0x10] sm:$0xff] %v778
          %781 = vst [vmem:[%s746 + $0x18] sm:$0xff] %v779
        $region72: #{tpu_custom_call.1} parent=59 // pred_fallthru
          _
        %p782 = scmp.eq.s32.totalorder %s29, 2
        // Predicated region
        $region73: #{tpu_custom_call.1} parent=59 // pred_check
          %p783 = pneg %p782
        $region74: #{tpu_custom_call.1} parent=59 // pred_check_branch
          %785 = sbr.rel (%p783) target = $region76
        $region75: #{tpu_custom_call.1} parent=59 // pred_region
          %p786 = scmp.eq.s32.totalorder %s30, 0
          // Predicated region
          $region77: #{tpu_custom_call.1} parent=75 // pred_check
            %p787 = pneg %p786
          $region78: #{tpu_custom_call.1} parent=75 // pred_check_branch
            %789 = sbr.rel (%p787) target = $region80
          $region79: #{tpu_custom_call.1} parent=75 // pred_region
            %v790 = vld [vmem:[#allocation4] sm:$0xff]
            %v791 = vld [vmem:[#allocation4 + $0x8] sm:$0xff]
            %792 = vadd.xlane.f32.xlu0 %v790
            %v793 = vpop.xlane.xlu0 %792
            %794 = vadd.xlane.f32.xlu0 %v791
            %v795 = vpop.xlane.xlu0 %794
            %v796 = vadd.f32 %v793, 0.0
            %v797 = vadd.f32 %v795, 0.0
            %v798 = vmul.f32 %v790, %v790
            %v799 = vmul.f32 %v791, %v791
            %800 = vadd.xlane.f32.xlu0 %v798
            %v801 = vpop.xlane.xlu0 %800
            %802 = vadd.xlane.f32.xlu0 %v799
            %v803 = vpop.xlane.xlu0 %802
            %v804 = vadd.f32 %v801, 0.0
            %v805 = vadd.f32 %v803, 0.0
            %v806 = vld [vmem:[#allocation4 + $0x10] sm:$0xff]
            %v807 = vld [vmem:[#allocation4 + $0x18] sm:$0xff]
            %808 = vadd.xlane.f32.xlu0 %v806
            %v809 = vpop.xlane.xlu0 %808
            %810 = vadd.xlane.f32.xlu0 %v807
            %v811 = vpop.xlane.xlu0 %810
            %v812 = vadd.f32 %v796, %v809
            %v813 = vadd.f32 %v797, %v811
            %v814 = vmul.f32 %v806, %v806
            %v815 = vmul.f32 %v807, %v807
            %816 = vadd.xlane.f32.xlu0 %v814
            %v817 = vpop.xlane.xlu0 %816
            %818 = vadd.xlane.f32.xlu0 %v815
            %v819 = vpop.xlane.xlu0 %818
            %v820 = vadd.f32 %v804, %v817
            %v821 = vadd.f32 %v805, %v819
            %s822 = scalar_lea.vmem [#allocation4], 32
            %v823 = vld [vmem:[%s822] sm:$0xff]
            %v824 = vld [vmem:[%s822 + $0x8] sm:$0xff]
            %825 = vadd.xlane.f32.xlu0 %v823
            %v826 = vpop.xlane.xlu0 %825
            %827 = vadd.xlane.f32.xlu0 %v824
            %v828 = vpop.xlane.xlu0 %827
            %v829 = vadd.f32 %v812, %v826
            %v830 = vadd.f32 %v813, %v828
            %v831 = vmul.f32 %v823, %v823
            %v832 = vmul.f32 %v824, %v824
            %833 = vadd.xlane.f32.xlu0 %v831
            %v834 = vpop.xlane.xlu0 %833
            %835 = vadd.xlane.f32.xlu0 %v832
            %v836 = vpop.xlane.xlu0 %835
            %v837 = vadd.f32 %v820, %v834
            %v838 = vadd.f32 %v821, %v836
            %v839 = vld [vmem:[%s822 + $0x10] sm:$0xff]
            %v840 = vld [vmem:[%s822 + $0x18] sm:$0xff]
            %841 = vadd.xlane.f32.xlu0 %v839
            %v842 = vpop.xlane.xlu0 %841
            %843 = vadd.xlane.f32.xlu0 %v840
            %v844 = vpop.xlane.xlu0 %843
            %v845 = vadd.f32 %v829, %v842
            %v846 = vadd.f32 %v830, %v844
            %v847 = vmul.f32 %v839, %v839
            %v848 = vmul.f32 %v840, %v840
            %849 = vadd.xlane.f32.xlu0 %v847
            %v850 = vpop.xlane.xlu0 %849
            %851 = vadd.xlane.f32.xlu0 %v848
            %v852 = vpop.xlane.xlu0 %851
            %v853 = vadd.f32 %v837, %v850
            %v854 = vadd.f32 %v838, %v852
            %v855 = vrcp.pop 512.0
            %v856 = vmul.f32 512.0, %v855
            %v857 = vsub.f32 1.0, %v856
            %v858 = vmul.f32 %v855, %v857
            %v859 = vadd.f32 %v855, %v858
            %vm860 = vweird.f32 %v855
            %v861 = vsel %vm860, %v855, %v859
            %v862 = vmul.f32 %v845, %v861
            %v863 = vmul.f32 %v846, %v861
            %v864 = vmul.f32 %v853, %v861
            %v865 = vmul.f32 %v854, %v861
            %v866 = vmul.f32 %v862, %v862
            %v867 = vmul.f32 %v863, %v863
            %v868 = vsub.f32 %v864, %v866
            %v869 = vsub.f32 %v865, %v867
            %v870 = vmax.f32 %v868, 0.0
            %v871 = vmax.f32 %v869, 0.0
            %v872 = vld [vmem:[%s4] sm:$0xff]
            %v873 = vld [vmem:[%s4 + $0x8] sm:$0xff]
            %v874 = vadd.f32 %v870, 1e-05
            %v875 = vadd.f32 %v871, 1e-05
            %v876 = vrsqrt.pop %v874
            %v877 = vmul.f32 %v876, %v874
            %v878 = vmul.f32 %v877, %v876
            %v879 = vmul.f32 0.5, %v878
            %v880 = vsub.f32 1.5, %v879
            %v881 = vmul.f32 %v876, %v880
            %vm882 = vweird.f32 %v874
            %vm883 = vweird.f32 %v876
            %vm884 = vmor %vm882, %vm883
            %v885 = vsel %vm884, %v876, %v881
            %v886 = vrsqrt.pop %v875
            %v887 = vmul.f32 %v886, %v875
            %v888 = vmul.f32 %v887, %v886
            %v889 = vmul.f32 0.5, %v888
            %v890 = vsub.f32 1.5, %v889
            %v891 = vmul.f32 %v886, %v890
            %vm892 = vweird.f32 %v875
            %vm893 = vweird.f32 %v886
            %vm894 = vmor %vm892, %vm893
            %v895 = vsel %vm894, %v886, %v891
            %v896 = vmul.f32 %v872, %v885
            %v897 = vmul.f32 %v873, %v895
            %v898 = vld [vmem:[%s5] sm:$0xff]
            %v899 = vld [vmem:[%s5 + $0x8] sm:$0xff]
            %v900 = vmul.f32 %v862, %v896
            %v901 = vmul.f32 %v863, %v897
            %v902 = vsub.f32 %v898, %v900
            %v903 = vsub.f32 %v899, %v901
            %905 = vset.pattern.permute.xlu0 0
            %906 = vperm.xlu0 %905, %v896
            %v907 = vpop.permute.xlu0 %906
            %910 = vset.pattern.permute.xlu0 0
            %911 = vperm.xlu0 %910, %v897
            %v912 = vpop.permute.xlu0 %911
            %v914 = vmul.f32 %v790, %v907
            %v915 = vmul.f32 %v791, %v912
            %917 = vset.pattern.permute.xlu0 0
            %918 = vperm.xlu0 %917, %v902
            %v919 = vpop.permute.xlu0 %918
            %922 = vset.pattern.permute.xlu0 0
            %923 = vperm.xlu0 %922, %v903
            %v924 = vpop.permute.xlu0 %923
            %v926 = vadd.f32 %v914, %v919
            %v927 = vadd.f32 %v915, %v924
            %v928 = vmax.f32 %v926, 0.0
            %v929 = vmax.f32 %v927, 0.0
            %930 = vst [vmem:[#allocation2] sm:$0xff] %v928
            %931 = vst [vmem:[#allocation2 + $0x8] sm:$0xff] %v929
            %v932 = vld [vmem:[#allocation4 + $0x10] sm:$0xff]
            %v933 = vld [vmem:[#allocation4 + $0x18] sm:$0xff]
            %v934 = vmul.f32 %v932, %v907
            %v935 = vmul.f32 %v933, %v912
            %v936 = vadd.f32 %v934, %v919
            %v937 = vadd.f32 %v935, %v924
            %v938 = vmax.f32 %v936, 0.0
            %v939 = vmax.f32 %v937, 0.0
            %940 = vst [vmem:[#allocation2 + $0x10] sm:$0xff] %v938
            %941 = vst [vmem:[#allocation2 + $0x18] sm:$0xff] %v939
            %v942 = vld [vmem:[%s822] sm:$0xff]
            %v943 = vld [vmem:[%s822 + $0x8] sm:$0xff]
            %v944 = vmul.f32 %v942, %v907
            %v945 = vmul.f32 %v943, %v912
            %v946 = vadd.f32 %v944, %v919
            %v947 = vadd.f32 %v945, %v924
            %v948 = vmax.f32 %v946, 0.0
            %v949 = vmax.f32 %v947, 0.0
            %s950 = scalar_lea.vmem [#allocation2], 32
            %951 = vst [vmem:[%s950] sm:$0xff] %v948
            %952 = vst [vmem:[%s950 + $0x8] sm:$0xff] %v949
            %v953 = vld [vmem:[%s822 + $0x10] sm:$0xff]
            %v954 = vld [vmem:[%s822 + $0x18] sm:$0xff]
            %v955 = vmul.f32 %v953, %v907
            %v956 = vmul.f32 %v954, %v912
            %v957 = vadd.f32 %v955, %v919
            %v958 = vadd.f32 %v956, %v924
            %v959 = vmax.f32 %v957, 0.0
            %v960 = vmax.f32 %v958, 0.0
            %961 = vst [vmem:[%s950 + $0x10] sm:$0xff] %v959
            %962 = vst [vmem:[%s950 + $0x18] sm:$0xff] %v960
          $region80: #{tpu_custom_call.1} parent=75 // pred_fallthru
            _
          %v963 = vld [vmem:[#allocation2] sm:$0xff]
          %v964 = vld [vmem:[#allocation2 + $0x8] sm:$0xff]
          %v965 = vld [vmem:[#allocation2 + $0x10] sm:$0xff]
          %v966 = vld [vmem:[#allocation2 + $0x18] sm:$0xff]
          %v967 = vld [vmem:[%s346] sm:$0xff]
          %v968 = vld [vmem:[%s346 + $0x8] sm:$0xff]
          %v969 = vld [vmem:[%s346 + $0x10] sm:$0xff]
          %v970 = vld [vmem:[%s346 + $0x18] sm:$0xff]
          %v971 = vld [vmem:[%s346 + $0x20] sm:$0xff]
          %v972 = vld [vmem:[%s346 + $0x28] sm:$0xff]
          %v973 = vld [vmem:[%s346 + $0x30] sm:$0xff]
          %v974 = vld [vmem:[%s346 + $0x38] sm:$0xff]
          %v975 = vld [vmem:[%s346 + $0x40] sm:$0xff]
          %v976 = vld [vmem:[%s346 + $0x48] sm:$0xff]
          %v977 = vld [vmem:[%s346 + $0x50] sm:$0xff]
          %v978 = vld [vmem:[%s346 + $0x58] sm:$0xff]
          %v979 = vld [vmem:[%s346 + $0x60] sm:$0xff]
          %v980 = vld [vmem:[%s346 + $0x68] sm:$0xff]
          %v981 = vld [vmem:[%s346 + $0x70] sm:$0xff]
          %v982 = vld [vmem:[%s346 + $0x78] sm:$0xff]
          %s983 = scalar_lea.vmem [#allocation2], 32
          %v984 = vld [vmem:[%s983] sm:$0xff]
          %v985 = vld [vmem:[%s983 + $0x8] sm:$0xff]
          %v986 = vld [vmem:[%s983 + $0x10] sm:$0xff]
          %v987 = vld [vmem:[%s983 + $0x18] sm:$0xff]
          %v988 = vld [vmem:[%s346 + $0x80] sm:$0xff]
          %v989 = vld [vmem:[%s346 + $0x88] sm:$0xff]
          %v990 = vld [vmem:[%s346 + $0x90] sm:$0xff]
          %v991 = vld [vmem:[%s346 + $0x98] sm:$0xff]
          %v992 = vld [vmem:[%s346 + $0xa0] sm:$0xff]
          %v993 = vld [vmem:[%s346 + $0xa8] sm:$0xff]
          %v994 = vld [vmem:[%s346 + $0xb0] sm:$0xff]
          %v995 = vld [vmem:[%s346 + $0xb8] sm:$0xff]
          %v996 = vld [vmem:[%s346 + $0xc0] sm:$0xff]
          %v997 = vld [vmem:[%s346 + $0xc8] sm:$0xff]
          %v998 = vld [vmem:[%s346 + $0xd0] sm:$0xff]
          %v999 = vld [vmem:[%s346 + $0xd8] sm:$0xff]
          %v1000 = vld [vmem:[%s346 + $0xe0] sm:$0xff]
          %v1001 = vld [vmem:[%s346 + $0xe8] sm:$0xff]
          %v1002 = vld [vmem:[%s346 + $0xf0] sm:$0xff]
          %v1003 = vld [vmem:[%s346 + $0xf8] sm:$0xff]
          %1004 = vmatpush.msra.mxu0 %v1003
          %1005 = vmatpush.msra.mxu0 %v1002
          %1006 = vmatpush.msra.mxu0 %v1001
          %1007 = vmatpush.msra.mxu0 %v1000
          %1008 = vmatpush.msra.mxu0 %v999
          %1009 = vmatpush.msra.mxu0 %v998
          %1010 = vmatpush.msra.mxu0 %v997
          %1011 = vmatpush.msra.mxu0 %v996
          %1012 = vmatpush.msra.mxu0 %v995
          %1013 = vmatpush.msra.mxu0 %v994
          %1014 = vmatpush.msra.mxu0 %v993
          %1015 = vmatpush.msra.mxu0 %v992
          %1016 = vmatpush.msra.mxu0 %v991
          %1017 = vmatpush.msra.mxu0 %v990
          %1018 = vmatpush.msra.mxu0 %v989
          %1019 = vmatpush.msra.mxu0 %v988
          %1020 = vmatmul.f32.gmra.mxu0 %v984
          %v1021 = vpop.f32.mrf.mxu0
          %v1022 = vadd.f32 0.0, %v1021
          %1023 = vmatmul.f32.gmra.mxu0 %v985
          %v1024 = vpop.f32.mrf.mxu0
          %v1025 = vadd.f32 0.0, %v1024
          %1026 = vmatmul.f32.gmra.mxu0 %v986
          %v1027 = vpop.f32.mrf.mxu0
          %v1028 = vadd.f32 0.0, %v1027
          %1029 = vmatmul.f32.gmra.mxu0 %v987
          %v1030 = vpop.f32.mrf.mxu0
          %v1031 = vadd.f32 0.0, %v1030
          %1032 = vdwg.mxu0
          %1033 = vmatpush.msra.mxu0 %v982
          %1034 = vmatpush.msra.mxu0 %v981
          %1035 = vmatpush.msra.mxu0 %v980
          %1036 = vmatpush.msra.mxu0 %v979
          %1037 = vmatpush.msra.mxu0 %v978
          %1038 = vmatpush.msra.mxu0 %v977
          %1039 = vmatpush.msra.mxu0 %v976
          %1040 = vmatpush.msra.mxu0 %v975
          %1041 = vmatpush.msra.mxu0 %v974
          %1042 = vmatpush.msra.mxu0 %v973
          %1043 = vmatpush.msra.mxu0 %v972
          %1044 = vmatpush.msra.mxu0 %v971
          %1045 = vmatpush.msra.mxu0 %v970
          %1046 = vmatpush.msra.mxu0 %v969
          %1047 = vmatpush.msra.mxu0 %v968
          %1048 = vmatpush.msra.mxu0 %v967
          %1049 = vmatmul.f32.gmra.mxu0 %v963
          %v1050 = vpop.f32.mrf.mxu0
          %v1051 = vadd.f32 %v1022, %v1050
          %1052 = vmatmul.f32.gmra.mxu0 %v964
          %v1053 = vpop.f32.mrf.mxu0
          %v1054 = vadd.f32 %v1025, %v1053
          %1055 = vmatmul.f32.gmra.mxu0 %v965
          %v1056 = vpop.f32.mrf.mxu0
          %v1057 = vadd.f32 %v1028, %v1056
          %1058 = vmatmul.f32.gmra.mxu0 %v966
          %v1059 = vpop.f32.mrf.mxu0
          %v1060 = vadd.f32 %v1031, %v1059
          %1061 = vdwg.mxu0
          %s1062 = smul.u32 %s30, 32
          %s1063 = scalar_lea.vmem [#allocation3], %s1062
          %1064 = vst [vmem:[%s1063] sm:$0xff] %v1051
          %1065 = vst [vmem:[%s1063 + $0x8] sm:$0xff] %v1054
          %1066 = vst [vmem:[%s1063 + $0x10] sm:$0xff] %v1057
          %1067 = vst [vmem:[%s1063 + $0x18] sm:$0xff] %v1060
          %s1068 = scalar_lea.vmem %s6, 8
          %v1069 = vld [vmem:[%s1068] sm:$0xff]
          %v1070 = vld [vmem:[%s6] sm:$0xff]
          %s1071 = scalar_lea.vmem [#allocation2], %s1062
          %v1072 = vld [vmem:[%s1071] sm:$0xff]
          %v1073 = vld [vmem:[%s1071 + $0x8] sm:$0xff]
          %v1074 = vld [vmem:[%s1071 + $0x10] sm:$0xff]
          %v1075 = vld [vmem:[%s1071 + $0x18] sm:$0xff]
          %vm1076 = vcmask 130048
          %v1078 = vsel %vm1076, %v1070, 0
          %1080 = vmatpush.msra.mxu0 0.0
          %1081 = vmatpush.msra.mxu0 0.0
          %1082 = vmatpush.msra.mxu0 0.0
          %1083 = vmatpush.msra.mxu0 0.0
          %1084 = vmatpush.msra.mxu0 0.0
          %1085 = vmatpush.msra.mxu0 0.0
          %1086 = vmatpush.msra.mxu0 0.0
          %1087 = vmatpush.msra.mxu0 0.0
          %1088 = vmatpush.msra.mxu0 0.0
          %1089 = vmatpush.msra.mxu0 0.0
          %1090 = vmatpush.msra.mxu0 0.0
          %1091 = vmatpush.msra.mxu0 0.0
          %1092 = vmatpush.msra.mxu0 0.0
          %1093 = vmatpush.msra.mxu0 0.0
          %1094 = vmatpush.msra.mxu0 %v1073
          %1095 = vmatpush.msra.mxu0 %v1072
          %1096 = vmatmul.f32.gmra.mxu0 %v1078
          %v1097 = vpop.f32.mrf.mxu0
          %v1098 = vadd.f32 0.0, %v1097
          %1099 = vdwg.mxu0
          %v1101 = vsel %vm1076, %v1069, 0
          %1103 = vmatpush.msra.mxu0 0.0
          %1104 = vmatpush.msra.mxu0 0.0
          %1105 = vmatpush.msra.mxu0 0.0
          %1106 = vmatpush.msra.mxu0 0.0
          %1107 = vmatpush.msra.mxu0 0.0
          %1108 = vmatpush.msra.mxu0 0.0
          %1109 = vmatpush.msra.mxu0 0.0
          %1110 = vmatpush.msra.mxu0 0.0
          %1111 = vmatpush.msra.mxu0 0.0
          %1112 = vmatpush.msra.mxu0 0.0
          %1113 = vmatpush.msra.mxu0 0.0
          %1114 = vmatpush.msra.mxu0 0.0
          %1115 = vmatpush.msra.mxu0 0.0
          %1116 = vmatpush.msra.mxu0 0.0
          %1117 = vmatpush.msra.mxu0 %v1054
          %1118 = vmatpush.msra.mxu0 %v1051
          %1119 = vmatmul.f32.gmra.mxu0 %v1101
          %v1120 = vpop.f32.mrf.mxu0
          %v1121 = vadd.f32 %v1098, %v1120
          %1122 = vdwg.mxu0
          %v1123 = vld [vmem:[%s7] sm:$0xff]
          %1125 = vset.pattern.permute.xlu0 0
          %1126 = vperm.xlu0 %1125, %v1123
          %v1127 = vpop.permute.xlu0 %1126
          %v1129 = vadd.f32 %v1121, %v1127
          %s1130 = scalar_lea.vmem [#allocation4], %s1062
          %1131 = vst [vmem:[%s1130] sm:$0xff] %v1129
          %1132 = vmatpush.msra.mxu0 0.0
          %1133 = vmatpush.msra.mxu0 0.0
          %1134 = vmatpush.msra.mxu0 0.0
          %1135 = vmatpush.msra.mxu0 0.0
          %1136 = vmatpush.msra.mxu0 0.0
          %1137 = vmatpush.msra.mxu0 0.0
          %1138 = vmatpush.msra.mxu0 0.0
          %1139 = vmatpush.msra.mxu0 0.0
          %1140 = vmatpush.msra.mxu0 0.0
          %1141 = vmatpush.msra.mxu0 0.0
          %1142 = vmatpush.msra.mxu0 0.0
          %1143 = vmatpush.msra.mxu0 0.0
          %1144 = vmatpush.msra.mxu0 0.0
          %1145 = vmatpush.msra.mxu0 0.0
          %1146 = vmatpush.msra.mxu0 %v1075
          %1147 = vmatpush.msra.mxu0 %v1074
          %1148 = vmatmul.f32.gmra.mxu0 %v1078
          %v1149 = vpop.f32.mrf.mxu0
          %v1150 = vadd.f32 0.0, %v1149
          %1151 = vdwg.mxu0
          %1152 = vmatpush.msra.mxu0 0.0
          %1153 = vmatpush.msra.mxu0 0.0
          %1154 = vmatpush.msra.mxu0 0.0
          %1155 = vmatpush.msra.mxu0 0.0
          %1156 = vmatpush.msra.mxu0 0.0
          %1157 = vmatpush.msra.mxu0 0.0
          %1158 = vmatpush.msra.mxu0 0.0
          %1159 = vmatpush.msra.mxu0 0.0
          %1160 = vmatpush.msra.mxu0 0.0
          %1161 = vmatpush.msra.mxu0 0.0
          %1162 = vmatpush.msra.mxu0 0.0
          %1163 = vmatpush.msra.mxu0 0.0
          %1164 = vmatpush.msra.mxu0 0.0
          %1165 = vmatpush.msra.mxu0 0.0
          %1166 = vmatpush.msra.mxu0 %v1060
          %1167 = vmatpush.msra.mxu0 %v1057
          %1168 = vmatmul.f32.gmra.mxu0 %v1101
          %v1169 = vpop.f32.mrf.mxu0
          %v1170 = vadd.f32 %v1150, %v1169
          %1171 = vdwg.mxu0
          %v1172 = vld [vmem:[%s7 + $0x8] sm:$0xff]
          %1174 = vset.pattern.permute.xlu0 0
          %1175 = vperm.xlu0 %1174, %v1172
          %v1176 = vpop.permute.xlu0 %1175
          %v1178 = vadd.f32 %v1170, %v1176
          %1179 = vst [vmem:[%s1130 + $0x8] sm:$0xff] %v1178
        $region76: #{tpu_custom_call.1} parent=59 // pred_fallthru
          _
        %p1180 = scmp.eq.s32.totalorder %s29, 3
        // Predicated region
        $region81: #{tpu_custom_call.1} parent=59 // pred_check
          %p1181 = pneg %p1180
        $region82: #{tpu_custom_call.1} parent=59 // pred_check_branch
          %1183 = sbr.rel (%p1181) target = $region84
        $region83: #{tpu_custom_call.1} parent=59 // pred_region
          %v1184 = vld [vmem:[#allocation3] sm:$0xff]
          %v1185 = vld [vmem:[#allocation3 + $0x8] sm:$0xff]
          %v1186 = vld [vmem:[#allocation3 + $0x10] sm:$0xff]
          %v1187 = vld [vmem:[#allocation3 + $0x18] sm:$0xff]
          %v1188 = vld [vmem:[%s346] sm:$0xff]
          %v1189 = vld [vmem:[%s346 + $0x8] sm:$0xff]
          %v1190 = vld [vmem:[%s346 + $0x10] sm:$0xff]
          %v1191 = vld [vmem:[%s346 + $0x18] sm:$0xff]
          %v1192 = vld [vmem:[%s346 + $0x20] sm:$0xff]
          %v1193 = vld [vmem:[%s346 + $0x28] sm:$0xff]
          %v1194 = vld [vmem:[%s346 + $0x30] sm:$0xff]
          %v1195 = vld [vmem:[%s346 + $0x38] sm:$0xff]
          %v1196 = vld [vmem:[%s346 + $0x40] sm:$0xff]
          %v1197 = vld [vmem:[%s346 + $0x48] sm:$0xff]
          %v1198 = vld [vmem:[%s346 + $0x50] sm:$0xff]
          %v1199 = vld [vmem:[%s346 + $0x58] sm:$0xff]
          %v1200 = vld [vmem:[%s346 + $0x60] sm:$0xff]
          %v1201 = vld [vmem:[%s346 + $0x68] sm:$0xff]
          %v1202 = vld [vmem:[%s346 + $0x70] sm:$0xff]
          %v1203 = vld [vmem:[%s346 + $0x78] sm:$0xff]
          %s1204 = scalar_lea.vmem [#allocation3], 32
          %v1205 = vld [vmem:[%s1204] sm:$0xff]
          %v1206 = vld [vmem:[%s1204 + $0x8] sm:$0xff]
          %v1207 = vld [vmem:[%s1204 + $0x10] sm:$0xff]
          %v1208 = vld [vmem:[%s1204 + $0x18] sm:$0xff]
          %v1209 = vld [vmem:[%s346 + $0x80] sm:$0xff]
          %v1210 = vld [vmem:[%s346 + $0x88] sm:$0xff]
          %v1211 = vld [vmem:[%s346 + $0x90] sm:$0xff]
          %v1212 = vld [vmem:[%s346 + $0x98] sm:$0xff]
          %v1213 = vld [vmem:[%s346 + $0xa0] sm:$0xff]
          %v1214 = vld [vmem:[%s346 + $0xa8] sm:$0xff]
          %v1215 = vld [vmem:[%s346 + $0xb0] sm:$0xff]
          %v1216 = vld [vmem:[%s346 + $0xb8] sm:$0xff]
          %v1217 = vld [vmem:[%s346 + $0xc0] sm:$0xff]
          %v1218 = vld [vmem:[%s346 + $0xc8] sm:$0xff]
          %v1219 = vld [vmem:[%s346 + $0xd0] sm:$0xff]
          %v1220 = vld [vmem:[%s346 + $0xd8] sm:$0xff]
          %v1221 = vld [vmem:[%s346 + $0xe0] sm:$0xff]
          %v1222 = vld [vmem:[%s346 + $0xe8] sm:$0xff]
          %v1223 = vld [vmem:[%s346 + $0xf0] sm:$0xff]
          %v1224 = vld [vmem:[%s346 + $0xf8] sm:$0xff]
          %1225 = vmatpush.msra.mxu0 %v1224
          %1226 = vmatpush.msra.mxu0 %v1223
          %1227 = vmatpush.msra.mxu0 %v1222
          %1228 = vmatpush.msra.mxu0 %v1221
          %1229 = vmatpush.msra.mxu0 %v1220
          %1230 = vmatpush.msra.mxu0 %v1219
          %1231 = vmatpush.msra.mxu0 %v1218
          %1232 = vmatpush.msra.mxu0 %v1217
          %1233 = vmatpush.msra.mxu0 %v1216
          %1234 = vmatpush.msra.mxu0 %v1215
          %1235 = vmatpush.msra.mxu0 %v1214
          %1236 = vmatpush.msra.mxu0 %v1213
          %1237 = vmatpush.msra.mxu0 %v1212
          %1238 = vmatpush.msra.mxu0 %v1211
          %1239 = vmatpush.msra.mxu0 %v1210
          %1240 = vmatpush.msra.mxu0 %v1209
          %1241 = vmatmul.f32.gmra.mxu0 %v1205
          %v1242 = vpop.f32.mrf.mxu0
          %v1243 = vadd.f32 0.0, %v1242
          %1244 = vmatmul.f32.gmra.mxu0 %v1206
          %v1245 = vpop.f32.mrf.mxu0
          %v1246 = vadd.f32 0.0, %v1245
          %1247 = vmatmul.f32.gmra.mxu0 %v1207
          %v1248 = vpop.f32.mrf.mxu0
          %v1249 = vadd.f32 0.0, %v1248
          %1250 = vmatmul.f32.gmra.mxu0 %v1208
          %v1251 = vpop.f32.mrf.mxu0
          %v1252 = vadd.f32 0.0, %v1251
          %1253 = vdwg.mxu0
          %1254 = vmatpush.msra.mxu0 %v1203
          %1255 = vmatpush.msra.mxu0 %v1202
          %1256 = vmatpush.msra.mxu0 %v1201
          %1257 = vmatpush.msra.mxu0 %v1200
          %1258 = vmatpush.msra.mxu0 %v1199
          %1259 = vmatpush.msra.mxu0 %v1198
          %1260 = vmatpush.msra.mxu0 %v1197
          %1261 = vmatpush.msra.mxu0 %v1196
          %1262 = vmatpush.msra.mxu0 %v1195
          %1263 = vmatpush.msra.mxu0 %v1194
          %1264 = vmatpush.msra.mxu0 %v1193
          %1265 = vmatpush.msra.mxu0 %v1192
          %1266 = vmatpush.msra.mxu0 %v1191
          %1267 = vmatpush.msra.mxu0 %v1190
          %1268 = vmatpush.msra.mxu0 %v1189
          %1269 = vmatpush.msra.mxu0 %v1188
          %1270 = vmatmul.f32.gmra.mxu0 %v1184
          %v1271 = vpop.f32.mrf.mxu0
          %v1272 = vadd.f32 %v1243, %v1271
          %1273 = vmatmul.f32.gmra.mxu0 %v1185
          %v1274 = vpop.f32.mrf.mxu0
          %v1275 = vadd.f32 %v1246, %v1274
          %1276 = vmatmul.f32.gmra.mxu0 %v1186
          %v1277 = vpop.f32.mrf.mxu0
          %v1278 = vadd.f32 %v1249, %v1277
          %1279 = vmatmul.f32.gmra.mxu0 %v1187
          %v1280 = vpop.f32.mrf.mxu0
          %v1281 = vadd.f32 %v1252, %v1280
          %1282 = vdwg.mxu0
          %v1283 = vmul.f32 %v1272, 2.0
          %v1284 = vmul.f32 %v1275, 2.0
          %v1285 = vmul.f32 %v1278, 2.0
          %v1286 = vmul.f32 %v1281, 2.0
          %s1287 = smul.u32 %s30, 32
          %s1288 = scalar_lea.vmem [#allocation2], %s1287
          %v1289 = vld [vmem:[%s1288] sm:$0xff]
          %v1290 = vld [vmem:[%s1288 + $0x8] sm:$0xff]
          %v1291 = vld [vmem:[%s1288 + $0x10] sm:$0xff]
          %v1292 = vld [vmem:[%s1288 + $0x18] sm:$0xff]
          %v1293 = vsub.f32 %v1283, %v1289
          %v1294 = vsub.f32 %v1284, %v1290
          %v1295 = vsub.f32 %v1285, %v1291
          %v1296 = vsub.f32 %v1286, %v1292
          %s1297 = scalar_lea.vmem %s6, 16
          %v1298 = vld [vmem:[%s1297] sm:$0xff]
          %vm1299 = vcmask 130048
          %v1301 = vsel %vm1299, %v1298, 0
          %1303 = vmatpush.msra.mxu0 0.0
          %1304 = vmatpush.msra.mxu0 0.0
          %1305 = vmatpush.msra.mxu0 0.0
          %1306 = vmatpush.msra.mxu0 0.0
          %1307 = vmatpush.msra.mxu0 0.0
          %1308 = vmatpush.msra.mxu0 0.0
          %1309 = vmatpush.msra.mxu0 0.0
          %1310 = vmatpush.msra.mxu0 0.0
          %1311 = vmatpush.msra.mxu0 0.0
          %1312 = vmatpush.msra.mxu0 0.0
          %1313 = vmatpush.msra.mxu0 0.0
          %1314 = vmatpush.msra.mxu0 0.0
          %1315 = vmatpush.msra.mxu0 0.0
          %1316 = vmatpush.msra.mxu0 0.0
          %1317 = vmatpush.msra.mxu0 %v1294
          %1318 = vmatpush.msra.mxu0 %v1293
          %1319 = vmatmul.f32.gmra.mxu0 %v1301
          %v1320 = vpop.f32.mrf.mxu0
          %v1321 = vadd.f32 0.0, %v1320
          %1322 = vdwg.mxu0
          %s1323 = scalar_lea.vmem [#allocation4], %s1287
          %v1324 = vld [vmem:[%s1323] sm:$0xff]
          %v1325 = vadd.f32 %v1324, %v1321
          %1326 = vst [vmem:[%s1323] sm:$0xff] %v1325
          %1327 = vmatpush.msra.mxu0 0.0
          %1328 = vmatpush.msra.mxu0 0.0
          %1329 = vmatpush.msra.mxu0 0.0
          %1330 = vmatpush.msra.mxu0 0.0
          %1331 = vmatpush.msra.mxu0 0.0
          %1332 = vmatpush.msra.mxu0 0.0
          %1333 = vmatpush.msra.mxu0 0.0
          %1334 = vmatpush.msra.mxu0 0.0
          %1335 = vmatpush.msra.mxu0 0.0
          %1336 = vmatpush.msra.mxu0 0.0
          %1337 = vmatpush.msra.mxu0 0.0
          %1338 = vmatpush.msra.mxu0 0.0
          %1339 = vmatpush.msra.mxu0 0.0
          %1340 = vmatpush.msra.mxu0 0.0
          %1341 = vmatpush.msra.mxu0 %v1296
          %1342 = vmatpush.msra.mxu0 %v1295
          %1343 = vmatmul.f32.gmra.mxu0 %v1301
          %v1344 = vpop.f32.mrf.mxu0
          %v1345 = vadd.f32 0.0, %v1344
          %1346 = vdwg.mxu0
          %v1347 = vld [vmem:[%s1323 + $0x8] sm:$0xff]
          %v1348 = vadd.f32 %v1347, %v1345
          %1349 = vst [vmem:[%s1323 + $0x8] sm:$0xff] %v1348
          %p1350 = scmp.eq.s32.totalorder %s30, 1
          // Predicated region
          $region85: #{tpu_custom_call.1} parent=83 // pred_check
            %p1351 = pneg %p1350
          $region86: #{tpu_custom_call.1} parent=83 // pred_check_branch
            %1353 = sbr.rel (%p1351) target = $region88
          $region87: #{tpu_custom_call.1} parent=83 // pred_region
            %v1354 = vld [vmem:[#allocation4] sm:$0xff]
            %1355 = vadd.xlane.f32.xlu0 %v1354
            %v1356 = vpop.xlane.xlu0 %1355
            %v1357 = vadd.f32 %v1356, 0.0
            %v1358 = vmul.f32 %v1354, %v1354
            %1359 = vadd.xlane.f32.xlu0 %v1358
            %v1360 = vpop.xlane.xlu0 %1359
            %v1361 = vadd.f32 %v1360, 0.0
            %v1362 = vld [vmem:[#allocation4 + $0x8] sm:$0xff]
            %1363 = vadd.xlane.f32.xlu0 %v1362
            %v1364 = vpop.xlane.xlu0 %1363
            %v1365 = vadd.f32 %v1357, %v1364
            %v1366 = vmul.f32 %v1362, %v1362
            %1367 = vadd.xlane.f32.xlu0 %v1366
            %v1368 = vpop.xlane.xlu0 %1367
            %v1369 = vadd.f32 %v1361, %v1368
            %s1370 = scalar_lea.vmem [#allocation4], 32
            %v1371 = vld [vmem:[%s1370] sm:$0xff]
            %1372 = vadd.xlane.f32.xlu0 %v1371
            %v1373 = vpop.xlane.xlu0 %1372
            %v1374 = vadd.f32 %v1365, %v1373
            %v1375 = vmul.f32 %v1371, %v1371
            %1376 = vadd.xlane.f32.xlu0 %v1375
            %v1377 = vpop.xlane.xlu0 %1376
            %v1378 = vadd.f32 %v1369, %v1377
            %v1379 = vld [vmem:[%s1370 + $0x8] sm:$0xff]
            %1380 = vadd.xlane.f32.xlu0 %v1379
            %v1381 = vpop.xlane.xlu0 %1380
            %v1382 = vadd.f32 %v1374, %v1381
            %v1383 = vmul.f32 %v1379, %v1379
            %1384 = vadd.xlane.f32.xlu0 %v1383
            %v1385 = vpop.xlane.xlu0 %1384
            %v1386 = vadd.f32 %v1378, %v1385
            %v1387 = vrcp.pop 512.0
            %v1388 = vmul.f32 512.0, %v1387
            %v1389 = vsub.f32 1.0, %v1388
            %v1390 = vmul.f32 %v1387, %v1389
            %v1391 = vadd.f32 %v1387, %v1390
            %vm1392 = vweird.f32 %v1387
            %v1393 = vsel %vm1392, %v1387, %v1391
            %v1394 = vmul.f32 %v1382, %v1393
            %v1395 = vmul.f32 %v1386, %v1393
            %v1396 = vmul.f32 %v1394, %v1394
            %v1397 = vsub.f32 %v1395, %v1396
            %v1398 = vmax.f32 %v1397, 0.0
            %v1399 = vld [vmem:[%s8] sm:$0xff]
            %v1400 = vadd.f32 %v1398, 1e-05
            %v1401 = vrsqrt.pop %v1400
            %v1402 = vmul.f32 %v1401, %v1400
            %v1403 = vmul.f32 %v1402, %v1401
            %v1404 = vmul.f32 0.5, %v1403
            %v1405 = vsub.f32 1.5, %v1404
            %v1406 = vmul.f32 %v1401, %v1405
            %vm1407 = vweird.f32 %v1400
            %vm1408 = vweird.f32 %v1401
            %vm1409 = vmor %vm1407, %vm1408
            %v1410 = vsel %vm1409, %v1401, %v1406
            %v1411 = vmul.f32 %v1399, %v1410
            %v1412 = vld [vmem:[%s9] sm:$0xff]
            %v1413 = vmul.f32 %v1394, %v1411
            %v1414 = vsub.f32 %v1412, %v1413
            %1416 = vset.pattern.permute.xlu0 0
            %1417 = vperm.xlu0 %1416, %v1411
            %v1418 = vpop.permute.xlu0 %1417
            %v1420 = vmul.f32 %v1354, %v1418
            %1422 = vset.pattern.permute.xlu0 0
            %1423 = vperm.xlu0 %1422, %v1414
            %v1424 = vpop.permute.xlu0 %1423
            %v1426 = vadd.f32 %v1420, %v1424
            %v1427 = vmax.f32 %v1426, 0.0
            %1428 = vst [vmem:[#allocation8] sm:$0xff] %v1427
            %v1429 = vld [vmem:[#allocation4 + $0x8] sm:$0xff]
            %v1430 = vmul.f32 %v1429, %v1418
            %v1431 = vadd.f32 %v1430, %v1424
            %v1432 = vmax.f32 %v1431, 0.0
            %1433 = vst [vmem:[#allocation8 + $0x10] sm:$0xff] %v1432
            %v1434 = vld [vmem:[%s1370] sm:$0xff]
            %v1435 = vmul.f32 %v1434, %v1418
            %v1436 = vadd.f32 %v1435, %v1424
            %v1437 = vmax.f32 %v1436, 0.0
            %1438 = vst [vmem:[#allocation8 + $0x8] sm:$0xff] %v1437
            %v1439 = vld [vmem:[%s1370 + $0x8] sm:$0xff]
            %v1440 = vmul.f32 %v1439, %v1418
            %v1441 = vadd.f32 %v1440, %v1424
            %v1442 = vmax.f32 %v1441, 0.0
            %1443 = vst [vmem:[#allocation8 + $0x18] sm:$0xff] %v1442
          $region88: #{tpu_custom_call.1} parent=83 // pred_fallthru
            _
        $region84: #{tpu_custom_call.1} parent=59 // pred_fallthru
          _
        // Predicated region
        $region89: #{tpu_custom_call.1} parent=59 // pred_check
          %p1444 = pneg %p265
        $region90: #{tpu_custom_call.1} parent=59 // pred_check_branch
          %1446 = sbr.rel (%p1444) target = $region92
        $region91: #{tpu_custom_call.1} parent=59 // pred_region
          %1448 = vsyncadd [#allocation7], 0
          %s1449 = sshll.u32 [#allocation8], 4
          %s1450 = int_to_ptr.vmem [resolvable:$true] %s1449
          %s1451 = sshll.u32 %s10, 4
          %s1452 = int_to_ptr.hbm [resolvable:$true] %s1451
          %1457 = dma.vmem_to_hbm [thread:$0]  %s1450, 512, %s1452, [#allocation7], 256, 256, 16
        $region92: #{tpu_custom_call.1} parent=59 // pred_fallthru
          _
        // Predicated region
        $region93: #{tpu_custom_call.1} parent=59 // pred_check
          %p1458 = pneg %p265
        $region94: #{tpu_custom_call.1} parent=59 // pred_check_branch
          %1460 = sbr.rel (%p1458) target = $region96
        $region95: #{tpu_custom_call.1} parent=59 // pred_region
          %1462 = dma.done [#allocation7], 512
        $region96: #{tpu_custom_call.1} parent=59 // pred_fallthru
          _
      $region60: #{tpu_custom_call.1} parent=5 // pred_fallthru
        _
      %p1463 = scmp.le.s32.totalorder 2, %s20
      // Predicated region
      $region97: #{tpu_custom_call.1} parent=5 // pred_check
        %p1464 = pneg %p1463
      $region98: #{tpu_custom_call.1} parent=5 // pred_check_branch
        %1466 = sbr.rel (%p1464) target = $region100
      $region99: #{tpu_custom_call.1} parent=5 // pred_region
        %s1467 = ssub.s32 %s20, 2
      $region100: #{tpu_custom_call.1} parent=5 // pred_fallthru
        _
    $region6: #{tpu_custom_call.1} parent=1 // loop_footer
      %s24 = sadd.s32 1, %s20
    $region7: #{tpu_custom_call.1} parent=1 // loop_footer_branch
      %19 = sbr.rel target = $region3
    $region8: #{tpu_custom_call.1} parent=1 // loop_exit
      _
    %1468 = vsyncpa [#allocation6], 1
    %s1469 = scalar_lea.sflag [#allocation6], 1
    %1470 = vsyncpa %s1469, 1
    %1471 = vsyncpa [#allocation7], 1
    %s1472 = scalar_lea.sflag [#allocation7], 1
    %1473 = vsyncpa %s1472, 1

// kernel: tpu_custom_call.1
$region0: #{tpu_custom_call.1}
  #allocation0 [shape = 'u32[]', space=smem, size = 0x4, offset = 0x4, fixed_abs, tag = 'smem constant byte address 0x4 - core index']
  #allocation1 [shape = 'u32[72,128]{1,0:T(1,128)}', space=vmem, size = 0x9000, scoped, tag = 'internal scratch']
  #allocation2 [shape = 'f32[2,32,128]{2,1,0:T(8,128)}', space=vmem, size = 0x8000, scoped, tag = 'scratch operand']
  #allocation3 [shape = 'f32[2,32,128]{2,1,0:T(8,128)}', space=vmem, size = 0x8000, scoped, tag = 'scratch operand']
  #allocation4 [shape = 'f32[2,32,128]{2,1,0:T(8,128)}', space=vmem, size = 0x8000, scoped, tag = 'scratch operand']
  %s0 = inlined_call_operand.hbm [shape: f32[256,256], index: 0, kind: input, shape index: {}]
  %s1 = inlined_call_operand.vmem [shape: f32[2,16,128], index: 1, kind: input, shape index: {}]
  %s2 = inlined_call_operand.vmem [shape: f32[3,16,8], index: 2, kind: input, shape index: {}]
  %s3 = inlined_call_operand.vmem [shape: f32[32,1], index: 3, kind: input, shape index: {}]
  %s4 = inlined_call_operand.vmem [shape: f32[16,1], index: 4, kind: input, shape index: {}]
  %s5 = inlined_call_operand.vmem [shape: f32[16,1], index: 5, kind: input, shape index: {}]
  %s6 = inlined_call_operand.vmem [shape: f32[3,8,16], index: 6, kind: input, shape index: {}]
  %s7 = inlined_call_operand.vmem [shape: f32[16,1], index: 7, kind: input, shape index: {}]
  %s8 = inlined_call_operand.vmem [shape: f32[8,1], index: 8, kind: input, shape index: {}]
  %s9 = inlined_call_operand.vmem [shape: f32[8,1], index: 9, kind: input, shape index: {}]
  %s10 = inlined_call_operand.hbm [shape: f32[16,256], index: 10, kind: output, shape index: {}]
  %s11 = sld [smem:[#allocation0]]
  $region101: #{tpu_custom_call.1} parent=0
    _
  %s13 = ssub.s32 1, %s11
  %s14 = scalar_select 0, %s13, %s11
  $region1: #{tpu_custom_call.1} parent=0
    #allocation5 [shape = 'u8[262144]{0}', space=vmem, size = 0x40000, scoped, tag = 'input window, operand 0']
    #allocation6 [shape = 's32[2]{0}', space=sflag, size = 0x8, scoped, tag = 'scoped memory for tpu_custom_call.1']
    #allocation7 [shape = 's32[2]{0}', space=sflag, size = 0x8, scoped, tag = 'scoped memory for tpu_custom_call.1']
    #allocation8 [shape = 'u8[16384]{0}', space=vmem, size = 0x4000, scoped, tag = 'output window, operand 0, single buffered']
    %15 = vsyncpa [#allocation6], 0
    %s16 = scalar_lea.sflag [#allocation6], 1
    %17 = vsyncpa %s16, 0
    %18 = vsyncpa [#allocation7], 0
    loop: start=0, step=1, limit=10
    $region2: #{tpu_custom_call.1} parent=1 // loop_pre_header
      _
    $region3: #{tpu_custom_call.1} parent=1 // loop_header
      %s20 = sphi 0, %s24
      %p21 = scmp.ge.s32.totalorder %s20, 10
      %s27 = sphi 0, %s39
      %s28 = sphi 0, %s35
      %s29 = sphi 0, %s27
      %s30 = sphi 0, %s28
      %s31 = sphi 0, %s29
      %s32 = sphi 0, %s30
      %s42 = sphi 0, %s44
      %s45 = sphi 0, %s42
      %s46 = sphi 0, %s45
      %s62 = sphi 0, %s46
      %s66 = sphi 0, %s66
      %s68 = sphi 0, %s66
      %s69 = sphi 0, %s68
      %s83 = sphi 0, %s69
      %s87 = sphi 0, %s87
      %s89 = sphi 0, %s87
      %s90 = sphi 0, %s89
      %s104 = sphi 0, %s90
      %s108 = sphi 0, %s108
      %s110 = sphi 0, %s108
      %s111 = sphi 0, %s110
      %s125 = sphi 0, %s111
      %s129 = sphi 0, %s129
      %s131 = sphi 0, %s129
      %s132 = sphi 0, %s131
      %s146 = sphi 0, %s132
      %s150 = sphi 0, %s150
      %s152 = sphi 0, %s150
      %s153 = sphi 0, %s152
      %s167 = sphi 0, %s153
      %s171 = sphi 0, %s171
      %s173 = sphi 0, %s171
      %s174 = sphi 0, %s173
      %s188 = sphi 0, %s174
      %s192 = sphi 0, %s192
      %s194 = sphi 0, %s192
      %s195 = sphi 0, %s194
      %s209 = sphi 0, %s195
      %s213 = sphi 0, %s213
      %s215 = sphi 0, %s213
      %s216 = sphi 0, %s215
      %s230 = sphi 0, %s216
      %s234 = sphi 0, %s234
      %s236 = sphi 0, %s234
      %s237 = sphi 0, %s236
      %s251 = sphi 0, %s237
      %s255 = sphi 0, %s255
      %s257 = sphi 0, %s255
      %s258 = sphi 0, %s257
      %s272 = sphi 0, %s258
    $region4: #{tpu_custom_call.1} parent=1 // loop_header_branch
      %23 = sbr.rel (%p21) target = $region8
    $region5: #{tpu_custom_call.1} parent=1 // loop_body
      %s25 = ssub.s32 %s20, 1
      %s26 = ssub.s32 %s20, 2
      %s33 = sadd.s32 1, %s28
      %p34 = scmp.ge.s32.totalorder %s33, 2
      %s35 = scalar_select %p34, 0, %s33
      %s36 = sadd.s32 1, %s27
      %s37 = scalar_select %p34, %s36, %s27
      %p38 = scmp.ge.s32.totalorder %s37, 4
      %s39 = scalar_select %p38, 0, %s37
      %s40 = ssub.s32 %s28, %s35
      %p41 = scmp.eq.s32.totalorder %s40, 0
      %s43 = sadd.s32 %s42, 1
      %s44 = scalar_select %p41, %s42, %s43
      %p47 = pneg %p41
      %p48 = scmp.eq.s32.totalorder %s20, 7
      %p49 = por %p47, %p48
      %p50 = scmp.ne.s32.totalorder %s42, %s45
      %p51 = scmp.eq.s32.totalorder %s20, 0
      %p52 = por %p50, %p51
      %p53 = scmp.ne.s32.totalorder %s42, %s45
      %p54 = scmp.eq.s32.totalorder %s25, 7
      %p55 = por %p53, %p54
      %p56 = scmp.ne.s32.totalorder %s45, %s46
      %p57 = scmp.eq.s32.totalorder %s25, 0
      %p58 = por %p56, %p57
      %p59 = scmp.ne.s32.totalorder %s45, %s46
      %p60 = scmp.eq.s32.totalorder %s26, 7
      %p61 = por %p59, %p60
      %p63 = scmp.ne.s32.totalorder %s46, %s62
      %p64 = scmp.eq.s32.totalorder %s26, 0
      %p65 = por %p63, %p64
      %s67 = sadd.s32 %s66, 1
      %p70 = scmp.eq.s32.totalorder %s20, 7
      %p71 = scmp.ne.s32.totalorder %s66, %s68
      %p72 = scmp.eq.s32.totalorder %s20, 0
      %p73 = por %p71, %p72
      %p74 = scmp.ne.s32.totalorder %s66, %s68
      %p75 = scmp.eq.s32.totalorder %s25, 7
      %p76 = por %p74, %p75
      %p77 = scmp.ne.s32.totalorder %s68, %s69
      %p78 = scmp.eq.s32.totalorder %s25, 0
      %p79 = por %p77, %p78
      %p80 = scmp.ne.s32.totalorder %s68, %s69
      %p81 = scmp.eq.s32.totalorder %s26, 7
      %p82 = por %p80, %p81
      %p84 = scmp.ne.s32.totalorder %s69, %s83
      %p85 = scmp.eq.s32.totalorder %s26, 0
      %p86 = por %p84, %p85
      %s88 = sadd.s32 %s87, 1
      %p91 = scmp.eq.s32.totalorder %s20, 7
      %p92 = scmp.ne.s32.totalorder %s87, %s89
      %p93 = scmp.eq.s32.totalorder %s20, 0
      %p94 = por %p92, %p93
      %p95 = scmp.ne.s32.totalorder %s87, %s89
      %p96 = scmp.eq.s32.totalorder %s25, 7
      %p97 = por %p95, %p96
      %p98 = scmp.ne.s32.totalorder %s89, %s90
      %p99 = scmp.eq.s32.totalorder %s25, 0
      %p100 = por %p98, %p99
      %p101 = scmp.ne.s32.totalorder %s89, %s90
      %p102 = scmp.eq.s32.totalorder %s26, 7
      %p103 = por %p101, %p102
      %p105 = scmp.ne.s32.totalorder %s90, %s104
      %p106 = scmp.eq.s32.totalorder %s26, 0
      %p107 = por %p105, %p106
      %s109 = sadd.s32 %s108, 1
      %p112 = scmp.eq.s32.totalorder %s20, 7
      %p113 = scmp.ne.s32.totalorder %s108, %s110
      %p114 = scmp.eq.s32.totalorder %s20, 0
      %p115 = por %p113, %p114
      %p116 = scmp.ne.s32.totalorder %s108, %s110
      %p117 = scmp.eq.s32.totalorder %s25, 7
      %p118 = por %p116, %p117
      %p119 = scmp.ne.s32.totalorder %s110, %s111
      %p120 = scmp.eq.s32.totalorder %s25, 0
      %p121 = por %p119, %p120
      %p122 = scmp.ne.s32.totalorder %s110, %s111
      %p123 = scmp.eq.s32.totalorder %s26, 7
      %p124 = por %p122, %p123
      %p126 = scmp.ne.s32.totalorder %s111, %s125
      %p127 = scmp.eq.s32.totalorder %s26, 0
      %p128 = por %p126, %p127
      %s130 = sadd.s32 %s129, 1
      %p133 = scmp.eq.s32.totalorder %s20, 7
      %p134 = scmp.ne.s32.totalorder %s129, %s131
      %p135 = scmp.eq.s32.totalorder %s20, 0
      %p136 = por %p134, %p135
      %p137 = scmp.ne.s32.totalorder %s129, %s131
      %p138 = scmp.eq.s32.totalorder %s25, 7
      %p139 = por %p137, %p138
      %p140 = scmp.ne.s32.totalorder %s131, %s132
      %p141 = scmp.eq.s32.totalorder %s25, 0
      %p142 = por %p140, %p141
      %p143 = scmp.ne.s32.totalorder %s131, %s132
      %p144 = scmp.eq.s32.totalorder %s26, 7
      %p145 = por %p143, %p144
      %p147 = scmp.ne.s32.totalorder %s132, %s146
      %p148 = scmp.eq.s32.totalorder %s26, 0
      %p149 = por %p147, %p148
      %s151 = sadd.s32 %s150, 1
      %p154 = scmp.eq.s32.totalorder %s20, 7
      %p155 = scmp.ne.s32.totalorder %s150, %s152
      %p156 = scmp.eq.s32.totalorder %s20, 0
      %p157 = por %p155, %p156
      %p158 = scmp.ne.s32.totalorder %s150, %s152
      %p159 = scmp.eq.s32.totalorder %s25, 7
      %p160 = por %p158, %p159
      %p161 = scmp.ne.s32.totalorder %s152, %s153
      %p162 = scmp.eq.s32.totalorder %s25, 0
      %p163 = por %p161, %p162
      %p164 = scmp.ne.s32.totalorder %s152, %s153
      %p165 = scmp.eq.s32.totalorder %s26, 7
      %p166 = por %p164, %p165
      %p168 = scmp.ne.s32.totalorder %s153, %s167
      %p169 = scmp.eq.s32.totalorder %s26, 0
      %p170 = por %p168, %p169
      %s172 = sadd.s32 %s171, 1
      %p175 = scmp.eq.s32.totalorder %s20, 7
      %p176 = scmp.ne.s32.totalorder %s171, %s173
      %p177 = scmp.eq.s32.totalorder %s20, 0
      %p178 = por %p176, %p177
      %p179 = scmp.ne.s32.totalorder %s171, %s173
      %p180 = scmp.eq.s32.totalorder %s25, 7
      %p181 = por %p179, %p180
      %p182 = scmp.ne.s32.totalorder %s173, %s174
      %p183 = scmp.eq.s32.totalorder %s25, 0
      %p184 = por %p182, %p183
      %p185 = scmp.ne.s32.totalorder %s173, %s174
      %p186 = scmp.eq.s32.totalorder %s26, 7
      %p187 = por %p185, %p186
      %p189 = scmp.ne.s32.totalorder %s174, %s188
      %p190 = scmp.eq.s32.totalorder %s26, 0
      %p191 = por %p189, %p190
      %s193 = sadd.s32 %s192, 1
      %p196 = scmp.eq.s32.totalorder %s20, 7
      %p197 = scmp.ne.s32.totalorder %s192, %s194
      %p198 = scmp.eq.s32.totalorder %s20, 0
      %p199 = por %p197, %p198
      %p200 = scmp.ne.s32.totalorder %s192, %s194
      %p201 = scmp.eq.s32.totalorder %s25, 7
      %p202 = por %p200, %p201
      %p203 = scmp.ne.s32.totalorder %s194, %s195
      %p204 = scmp.eq.s32.totalorder %s25, 0
      %p205 = por %p203, %p204
      %p206 = scmp.ne.s32.totalorder %s194, %s195
      %p207 = scmp.eq.s32.totalorder %s26, 7
      %p208 = por %p206, %p207
      %p210 = scmp.ne.s32.totalorder %s195, %s209
      %p211 = scmp.eq.s32.totalorder %s26, 0
      %p212 = por %p210, %p211
      %s214 = sadd.s32 %s213, 1
      %p217 = scmp.eq.s32.totalorder %s20, 7
      %p218 = scmp.ne.s32.totalorder %s213, %s215
      %p219 = scmp.eq.s32.totalorder %s20, 0
      %p220 = por %p218, %p219
      %p221 = scmp.ne.s32.totalorder %s213, %s215
      %p222 = scmp.eq.s32.totalorder %s25, 7
      %p223 = por %p221, %p222
      %p224 = scmp.ne.s32.totalorder %s215, %s216
      %p225 = scmp.eq.s32.totalorder %s25, 0
      %p226 = por %p224, %p225
      %p227 = scmp.ne.s32.totalorder %s215, %s216
      %p228 = scmp.eq.s32.totalorder %s26, 7
      %p229 = por %p227, %p228
      %p231 = scmp.ne.s32.totalorder %s216, %s230
      %p232 = scmp.eq.s32.totalorder %s26, 0
      %p233 = por %p231, %p232
      %s235 = sadd.s32 %s234, 1
      %p238 = scmp.eq.s32.totalorder %s20, 7
      %p239 = scmp.ne.s32.totalorder %s234, %s236
      %p240 = scmp.eq.s32.totalorder %s20, 0
      %p241 = por %p239, %p240
      %p242 = scmp.ne.s32.totalorder %s234, %s236
      %p243 = scmp.eq.s32.totalorder %s25, 7
      %p244 = por %p242, %p243
      %p245 = scmp.ne.s32.totalorder %s236, %s237
      %p246 = scmp.eq.s32.totalorder %s25, 0
      %p247 = por %p245, %p246
      %p248 = scmp.ne.s32.totalorder %s236, %s237
      %p249 = scmp.eq.s32.totalorder %s26, 7
      %p250 = por %p248, %p249
      %p252 = scmp.ne.s32.totalorder %s237, %s251
      %p253 = scmp.eq.s32.totalorder %s26, 0
      %p254 = por %p252, %p253
      %s256 = sadd.s32 %s255, 1
      %p259 = scmp.eq.s32.totalorder %s20, 7
      %p260 = scmp.ne.s32.totalorder %s255, %s257
      %p261 = scmp.eq.s32.totalorder %s20, 0
      %p262 = por %p260, %p261
      %p263 = scmp.ne.s32.totalorder %s255, %s257
      %p264 = scmp.eq.s32.totalorder %s25, 7
      %p265 = por %p263, %p264
      %p266 = scmp.ne.s32.totalorder %s257, %s258
      %p267 = scmp.eq.s32.totalorder %s25, 0
      %p268 = por %p266, %p267
      %p269 = scmp.ne.s32.totalorder %s257, %s258
      %p270 = scmp.eq.s32.totalorder %s26, 7
      %p271 = por %p269, %p270
      %p273 = scmp.ne.s32.totalorder %s258, %s272
      %p274 = scmp.eq.s32.totalorder %s26, 0
      %p275 = por %p273, %p274
      %p276 = scmp.le.s32.totalorder 1, %s20
      %p277 = scmp.lt.s32.totalorder %s20, 9
      %p278 = pnand %p276, %p277
      %p279 = pneg %p278
      // Predicated region
      $region9: #{tpu_custom_call.1} parent=5 // pred_check
        _
      $region10: #{tpu_custom_call.1} parent=5 // pred_check_branch
        %281 = sbr.rel (%p278) target = $region12
      $region11: #{tpu_custom_call.1} parent=5 // pred_region
        %s282 = ssub.s32 %s20, 1
        // Predicated region
        $region13: #{tpu_custom_call.1} parent=11 // pred_check
          %p283 = pneg %p79
        $region14: #{tpu_custom_call.1} parent=11 // pred_check_branch
          %285 = sbr.rel (%p283) target = $region16
        $region15: #{tpu_custom_call.1} parent=11 // pred_region
          _
        $region16: #{tpu_custom_call.1} parent=11 // pred_fallthru
          _
        // Predicated region
        $region17: #{tpu_custom_call.1} parent=11 // pred_check
          %p286 = pneg %p100
        $region18: #{tpu_custom_call.1} parent=11 // pred_check_branch
          %288 = sbr.rel (%p286) target = $region20
        $region19: #{tpu_custom_call.1} parent=11 // pred_region
          _
        $region20: #{tpu_custom_call.1} parent=11 // pred_fallthru
          _
        // Predicated region
        $region21: #{tpu_custom_call.1} parent=11 // pred_check
          %p289 = pneg %p121
        $region22: #{tpu_custom_call.1} parent=11 // pred_check_branch
          %291 = sbr.rel (%p289) target = $region24
        $region23: #{tpu_custom_call.1} parent=11 // pred_region
          _
        $region24: #{tpu_custom_call.1} parent=11 // pred_fallthru
          _
        // Predicated region
        $region25: #{tpu_custom_call.1} parent=11 // pred_check
          %p292 = pneg %p142
        $region26: #{tpu_custom_call.1} parent=11 // pred_check_branch
          %294 = sbr.rel (%p292) target = $region28
        $region27: #{tpu_custom_call.1} parent=11 // pred_region
          _
        $region28: #{tpu_custom_call.1} parent=11 // pred_fallthru
          _
        // Predicated region
        $region29: #{tpu_custom_call.1} parent=11 // pred_check
          %p295 = pneg %p163
        $region30: #{tpu_custom_call.1} parent=11 // pred_check_branch
          %297 = sbr.rel (%p295) target = $region32
        $region31: #{tpu_custom_call.1} parent=11 // pred_region
          _
        $region32: #{tpu_custom_call.1} parent=11 // pred_fallthru
          _
        // Predicated region
        $region33: #{tpu_custom_call.1} parent=11 // pred_check
          %p298 = pneg %p184
        $region34: #{tpu_custom_call.1} parent=11 // pred_check_branch
          %300 = sbr.rel (%p298) target = $region36
        $region35: #{tpu_custom_call.1} parent=11 // pred_region
          _
        $region36: #{tpu_custom_call.1} parent=11 // pred_fallthru
          _
        // Predicated region
        $region37: #{tpu_custom_call.1} parent=11 // pred_check
          %p301 = pneg %p205
        $region38: #{tpu_custom_call.1} parent=11 // pred_check_branch
          %303 = sbr.rel (%p301) target = $region40
        $region39: #{tpu_custom_call.1} parent=11 // pred_region
          _
        $region40: #{tpu_custom_call.1} parent=11 // pred_fallthru
          _
        // Predicated region
        $region41: #{tpu_custom_call.1} parent=11 // pred_check
          %p304 = pneg %p226
        $region42: #{tpu_custom_call.1} parent=11 // pred_check_branch
          %306 = sbr.rel (%p304) target = $region44
        $region43: #{tpu_custom_call.1} parent=11 // pred_region
          _
        $region44: #{tpu_custom_call.1} parent=11 // pred_fallthru
          _
        // Predicated region
        $region45: #{tpu_custom_call.1} parent=11 // pred_check
          %p307 = pneg %p247
        $region46: #{tpu_custom_call.1} parent=11 // pred_check_branch
          %309 = sbr.rel (%p307) target = $region48
        $region47: #{tpu_custom_call.1} parent=11 // pred_region
          _
        $region48: #{tpu_custom_call.1} parent=11 // pred_fallthru
          _
      $region12: #{tpu_custom_call.1} parent=5 // pred_fallthru
        _
      %p310 = scmp.lt.s32.totalorder %s20, 8
      // Predicated region
      $region49: #{tpu_custom_call.1} parent=5 // pred_check
        %p311 = pneg %p310
      $region50: #{tpu_custom_call.1} parent=5 // pred_check_branch
        %313 = sbr.rel (%p311) target = $region52
      $region51: #{tpu_custom_call.1} parent=5 // pred_region
        // Predicated region
        $region53: #{tpu_custom_call.1} parent=51 // pred_check
          %p314 = pneg %p52
        $region54: #{tpu_custom_call.1} parent=51 // pred_check_branch
          %316 = sbr.rel (%p314) target = $region56
        $region55: #{tpu_custom_call.1} parent=51 // pred_region
          %s317 = sand.u32 %s42, 1
          %s318 = scalar_lea.sflag [#allocation6], %s317
          %s319 = sand.u32 %s42, 1
          %s320 = smul.addr %s319, 256
          %s321 = scalar_lea.vmem [#allocation5], %s320
          %323 = vsyncadd %s318, 0
          %s324 = smul.addr %s28, 8
          %s325 = scalar_lea.hbm %s0, %s324
          %s326 = sshll.u32 %s325, 4
          %s327 = int_to_ptr.hbm [resolvable:$true] %s326
          %s328 = sshll.u32 %s321, 4
          %s329 = int_to_ptr.vmem [resolvable:$true] %s328
          %334 = dma.hbm_to_vmem [thread:$0]  %s327, 4096, %s329, %s318, 256, 128, 8
        $region56: #{tpu_custom_call.1} parent=51 // pred_fallthru
          _
      $region52: #{tpu_custom_call.1} parent=5 // pred_fallthru
        _
      %p335 = scmp.le.s32.totalorder 1, %s20
      %p336 = scmp.lt.s32.totalorder %s20, 9
      %p337 = pnand %p335, %p336
      %p338 = pneg %p337
      // Predicated region
      $region57: #{tpu_custom_call.1} parent=5 // pred_check
        _
      $region58: #{tpu_custom_call.1} parent=5 // pred_check_branch
        %340 = sbr.rel (%p337) target = $region60
      $region59: #{tpu_custom_call.1} parent=5 // pred_region
        %s341 = ssub.s32 %s20, 1
        %s342 = sand.u32 %s45, 1
        %s343 = scalar_lea.sflag [#allocation6], %s342
        %s344 = sand.u32 %s45, 1
        %s345 = smul.addr %s344, 256
        %s346 = scalar_lea.vmem [#allocation5], %s345
        // Predicated region
        $region61: #{tpu_custom_call.1} parent=59 // pred_check
          %p347 = pneg %p58
        $region62: #{tpu_custom_call.1} parent=59 // pred_check_branch
          %349 = sbr.rel (%p347) target = $region64
        $region63: #{tpu_custom_call.1} parent=59 // pred_region
          %351 = dma.done %s343, 4096
        $region64: #{tpu_custom_call.1} parent=59 // pred_fallthru
          _
        %s352 = sand.u32 %s45, 1
        %s353 = scalar_lea.sflag [#allocation6], %s352
        %s354 = sand.u32 %s45, 1
        %s355 = smul.addr %s354, 256
        %s356 = scalar_lea.vmem [#allocation5], %s355
        %p357 = pneg %p58
        %p358 = pneg %p55
        %p359 = pneg %p79
        %p360 = pneg %p76
        %p361 = pneg %p100
        %p362 = pneg %p97
        %p363 = pneg %p121
        %p364 = pneg %p118
        %p365 = pneg %p142
        %p366 = pneg %p139
        %p367 = pneg %p163
        %p368 = pneg %p160
        %p369 = pneg %p184
        %p370 = pneg %p181
        %p371 = pneg %p205
        %p372 = pneg %p202
        %p373 = pneg %p226
        %p374 = pneg %p223
        %p375 = pneg %p247
        %p376 = pneg %p244
        %p377 = pneg %p268
        %p378 = pneg %p265
        %p379 = scmp.eq.s32.totalorder %s29, 0
        // Predicated region
        $region65: #{tpu_custom_call.1} parent=59 // pred_check
          %p380 = pneg %p379
        $region66: #{tpu_custom_call.1} parent=59 // pred_check_branch
          %382 = sbr.rel (%p380) target = $region68
        $region67: #{tpu_custom_call.1} parent=59 // pred_region
          %v383 = vld [vmem:[%s1] sm:$0xff]
          %v384 = vld [vmem:[%s1 + $0x8] sm:$0xff]
          %v385 = vld [vmem:[%s346] sm:$0xff]
          %v386 = vld [vmem:[%s346 + $0x8] sm:$0xff]
          %v387 = vld [vmem:[%s346 + $0x10] sm:$0xff]
          %v388 = vld [vmem:[%s346 + $0x18] sm:$0xff]
          %v389 = vld [vmem:[%s346 + $0x20] sm:$0xff]
          %v390 = vld [vmem:[%s346 + $0x28] sm:$0xff]
          %v391 = vld [vmem:[%s346 + $0x30] sm:$0xff]
          %v392 = vld [vmem:[%s346 + $0x38] sm:$0xff]
          %v393 = vld [vmem:[%s346 + $0x40] sm:$0xff]
          %v394 = vld [vmem:[%s346 + $0x48] sm:$0xff]
          %v395 = vld [vmem:[%s346 + $0x50] sm:$0xff]
          %v396 = vld [vmem:[%s346 + $0x58] sm:$0xff]
          %v397 = vld [vmem:[%s346 + $0x60] sm:$0xff]
          %v398 = vld [vmem:[%s346 + $0x68] sm:$0xff]
          %v399 = vld [vmem:[%s346 + $0x70] sm:$0xff]
          %v400 = vld [vmem:[%s346 + $0x78] sm:$0xff]
          %s401 = scalar_lea.vmem %s1, 16
          %v402 = vld [vmem:[%s401] sm:$0xff]
          %v403 = vld [vmem:[%s401 + $0x8] sm:$0xff]
          %v404 = vld [vmem:[%s346 + $0x80] sm:$0xff]
          %v405 = vld [vmem:[%s346 + $0x88] sm:$0xff]
          %v406 = vld [vmem:[%s346 + $0x90] sm:$0xff]
          %v407 = vld [vmem:[%s346 + $0x98] sm:$0xff]
          %v408 = vld [vmem:[%s346 + $0xa0] sm:$0xff]
          %v409 = vld [vmem:[%s346 + $0xa8] sm:$0xff]
          %v410 = vld [vmem:[%s346 + $0xb0] sm:$0xff]
          %v411 = vld [vmem:[%s346 + $0xb8] sm:$0xff]
          %v412 = vld [vmem:[%s346 + $0xc0] sm:$0xff]
          %v413 = vld [vmem:[%s346 + $0xc8] sm:$0xff]
          %v414 = vld [vmem:[%s346 + $0xd0] sm:$0xff]
          %v415 = vld [vmem:[%s346 + $0xd8] sm:$0xff]
          %v416 = vld [vmem:[%s346 + $0xe0] sm:$0xff]
          %v417 = vld [vmem:[%s346 + $0xe8] sm:$0xff]
          %v418 = vld [vmem:[%s346 + $0xf0] sm:$0xff]
          %v419 = vld [vmem:[%s346 + $0xf8] sm:$0xff]
          %420 = vmatpush.msra.mxu0 %v419
          %421 = vmatpush.msra.mxu0 %v418
          %422 = vmatpush.msra.mxu0 %v417
          %423 = vmatpush.msra.mxu0 %v416
          %424 = vmatpush.msra.mxu0 %v415
          %425 = vmatpush.msra.mxu0 %v414
          %426 = vmatpush.msra.mxu0 %v413
          %427 = vmatpush.msra.mxu0 %v412
          %428 = vmatpush.msra.mxu0 %v411
          %429 = vmatpush.msra.mxu0 %v410
          %430 = vmatpush.msra.mxu0 %v409
          %431 = vmatpush.msra.mxu0 %v408
          %432 = vmatpush.msra.mxu0 %v407
          %433 = vmatpush.msra.mxu0 %v406
          %434 = vmatpush.msra.mxu0 %v405
          %435 = vmatpush.msra.mxu0 %v404
          %436 = vmatmul.f32.gmra.mxu0 %v402
          %v437 = vpop.f32.mrf.mxu0
          %v438 = vadd.f32 0.0, %v437
          %439 = vmatmul.f32.gmra.mxu0 %v403
          %v440 = vpop.f32.mrf.mxu0
          %v441 = vadd.f32 0.0, %v440
          %442 = vdwg.mxu0
          %443 = vmatpush.msra.mxu0 %v400
          %444 = vmatpush.msra.mxu0 %v399
          %445 = vmatpush.msra.mxu0 %v398
          %446 = vmatpush.msra.mxu0 %v397
          %447 = vmatpush.msra.mxu0 %v396
          %448 = vmatpush.msra.mxu0 %v395
          %449 = vmatpush.msra.mxu0 %v394
          %450 = vmatpush.msra.mxu0 %v393
          %451 = vmatpush.msra.mxu0 %v392
          %452 = vmatpush.msra.mxu0 %v391
          %453 = vmatpush.msra.mxu0 %v390
          %454 = vmatpush.msra.mxu0 %v389
          %455 = vmatpush.msra.mxu0 %v388
          %456 = vmatpush.msra.mxu0 %v387
          %457 = vmatpush.msra.mxu0 %v386
          %458 = vmatpush.msra.mxu0 %v385
          %459 = vmatmul.f32.gmra.mxu0 %v383
          %v460 = vpop.f32.mrf.mxu0
          %v461 = vadd.f32 %v438, %v460
          %462 = vmatmul.f32.gmra.mxu0 %v384
          %v463 = vpop.f32.mrf.mxu0
          %v464 = vadd.f32 %v441, %v463
          %465 = vdwg.mxu0
          %s466 = smul.u32 %s30, 32
          %s467 = scalar_lea.vmem [#allocation2], %s466
          %468 = vst [vmem:[%s467] sm:$0xff] %v461
          %469 = vst [vmem:[%s467 + $0x8] sm:$0xff] %v464
          %s470 = scalar_lea.vmem %s2, 16
          %v471 = vld [vmem:[%s470] sm:$0xff]
          %v472 = vld [vmem:[%s470 + $0x8] sm:$0xff]
          %v473 = vld [vmem:[%s2] sm:$0xff]
          %v474 = vld [vmem:[%s2 + $0x8] sm:$0xff]
          %s475 = smul.u32 %s30, 16
          %s476 = scalar_lea.vmem %s1, %s475
          %v477 = vld [vmem:[%s476] sm:$0xff]
          %v478 = vld [vmem:[%s476 + $0x8] sm:$0xff]
          %vm479 = vcmask 64512
          %v481 = vsel %vm479, %v473, 0
          %v484 = vsel %vm479, %v474, 0
          %486 = vmatpush.msra.mxu0 0.0
          %487 = vmatpush.msra.mxu0 0.0
          %488 = vmatpush.msra.mxu0 0.0
          %489 = vmatpush.msra.mxu0 0.0
          %490 = vmatpush.msra.mxu0 0.0
          %491 = vmatpush.msra.mxu0 0.0
          %492 = vmatpush.msra.mxu0 0.0
          %493 = vmatpush.msra.mxu0 0.0
          %494 = vmatpush.msra.mxu0 0.0
          %495 = vmatpush.msra.mxu0 0.0
          %496 = vmatpush.msra.mxu0 0.0
          %497 = vmatpush.msra.mxu0 0.0
          %498 = vmatpush.msra.mxu0 0.0
          %499 = vmatpush.msra.mxu0 0.0
          %500 = vmatpush.msra.mxu0 0.0
          %501 = vmatpush.msra.mxu0 %v477
          %502 = vmatmul.f32.gmra.mxu0 %v481
          %v503 = vpop.f32.mrf.mxu0
          %v504 = vadd.f32 0.0, %v503
          %505 = vmatmul.f32.gmra.mxu0 %v484
          %v506 = vpop.f32.mrf.mxu0
          %v507 = vadd.f32 0.0, %v506
          %508 = vdwg.mxu0
          %v510 = vsel %vm479, %v471, 0
          %v513 = vsel %vm479, %v472, 0
          %515 = vmatpush.msra.mxu0 0.0
          %516 = vmatpush.msra.mxu0 0.0
          %517 = vmatpush.msra.mxu0 0.0
          %518 = vmatpush.msra.mxu0 0.0
          %519 = vmatpush.msra.mxu0 0.0
          %520 = vmatpush.msra.mxu0 0.0
          %521 = vmatpush.msra.mxu0 0.0
          %522 = vmatpush.msra.mxu0 0.0
          %523 = vmatpush.msra.mxu0 0.0
          %524 = vmatpush.msra.mxu0 0.0
          %525 = vmatpush.msra.mxu0 0.0
          %526 = vmatpush.msra.mxu0 0.0
          %527 = vmatpush.msra.mxu0 0.0
          %528 = vmatpush.msra.mxu0 0.0
          %529 = vmatpush.msra.mxu0 0.0
          %530 = vmatpush.msra.mxu0 %v461
          %531 = vmatmul.f32.gmra.mxu0 %v510
          %v532 = vpop.f32.mrf.mxu0
          %v533 = vadd.f32 %v504, %v532
          %534 = vmatmul.f32.gmra.mxu0 %v513
          %v535 = vpop.f32.mrf.mxu0
          %v536 = vadd.f32 %v507, %v535
          %537 = vdwg.mxu0
          %v538 = vld [vmem:[%s3] sm:$0xff]
          %v539 = vld [vmem:[%s3 + $0x8] sm:$0xff]
          %541 = vset.pattern.permute.xlu0 0
          %542 = vperm.xlu0 %541, %v538
          %v543 = vpop.permute.xlu0 %542
          %546 = vset.pattern.permute.xlu0 0
          %547 = vperm.xlu0 %546, %v539
          %v548 = vpop.permute.xlu0 %547
          %v550 = vadd.f32 %v533, %v543
          %v551 = vadd.f32 %v536, %v548
          %s552 = scalar_lea.vmem [#allocation4], %s466
          %553 = vst [vmem:[%s552] sm:$0xff] %v550
          %554 = vst [vmem:[%s552 + $0x8] sm:$0xff] %v551
          %555 = vmatpush.msra.mxu0 0.0
          %556 = vmatpush.msra.mxu0 0.0
          %557 = vmatpush.msra.mxu0 0.0
          %558 = vmatpush.msra.mxu0 0.0
          %559 = vmatpush.msra.mxu0 0.0
          %560 = vmatpush.msra.mxu0 0.0
          %561 = vmatpush.msra.mxu0 0.0
          %562 = vmatpush.msra.mxu0 0.0
          %563 = vmatpush.msra.mxu0 0.0
          %564 = vmatpush.msra.mxu0 0.0
          %565 = vmatpush.msra.mxu0 0.0
          %566 = vmatpush.msra.mxu0 0.0
          %567 = vmatpush.msra.mxu0 0.0
          %568 = vmatpush.msra.mxu0 0.0
          %569 = vmatpush.msra.mxu0 0.0
          %570 = vmatpush.msra.mxu0 %v478
          %571 = vmatmul.f32.gmra.mxu0 %v481
          %v572 = vpop.f32.mrf.mxu0
          %v573 = vadd.f32 0.0, %v572
          %574 = vmatmul.f32.gmra.mxu0 %v484
          %v575 = vpop.f32.mrf.mxu0
          %v576 = vadd.f32 0.0, %v575
          %577 = vdwg.mxu0
          %578 = vmatpush.msra.mxu0 0.0
          %579 = vmatpush.msra.mxu0 0.0
          %580 = vmatpush.msra.mxu0 0.0
          %581 = vmatpush.msra.mxu0 0.0
          %582 = vmatpush.msra.mxu0 0.0
          %583 = vmatpush.msra.mxu0 0.0
          %584 = vmatpush.msra.mxu0 0.0
          %585 = vmatpush.msra.mxu0 0.0
          %586 = vmatpush.msra.mxu0 0.0
          %587 = vmatpush.msra.mxu0 0.0
          %588 = vmatpush.msra.mxu0 0.0
          %589 = vmatpush.msra.mxu0 0.0
          %590 = vmatpush.msra.mxu0 0.0
          %591 = vmatpush.msra.mxu0 0.0
          %592 = vmatpush.msra.mxu0 0.0
          %593 = vmatpush.msra.mxu0 %v464
          %594 = vmatmul.f32.gmra.mxu0 %v510
          %v595 = vpop.f32.mrf.mxu0
          %v596 = vadd.f32 %v573, %v595
          %597 = vmatmul.f32.gmra.mxu0 %v513
          %v598 = vpop.f32.mrf.mxu0
          %v599 = vadd.f32 %v576, %v598
          %600 = vdwg.mxu0
          %v601 = vld [vmem:[%s3 + $0x10] sm:$0xff]
          %v602 = vld [vmem:[%s3 + $0x18] sm:$0xff]
          %604 = vset.pattern.permute.xlu0 0
          %605 = vperm.xlu0 %604, %v601
          %v606 = vpop.permute.xlu0 %605
          %609 = vset.pattern.permute.xlu0 0
          %610 = vperm.xlu0 %609, %v602
          %v611 = vpop.permute.xlu0 %610
          %v613 = vadd.f32 %v596, %v606
          %v614 = vadd.f32 %v599, %v611
          %615 = vst [vmem:[%s552 + $0x10] sm:$0xff] %v613
          %616 = vst [vmem:[%s552 + $0x18] sm:$0xff] %v614
        $region68: #{tpu_custom_call.1} parent=59 // pred_fallthru
          _
        %p617 = scmp.eq.s32.totalorder %s29, 1
        // Predicated region
        $region69: #{tpu_custom_call.1} parent=59 // pred_check
          %p618 = pneg %p617
        $region70: #{tpu_custom_call.1} parent=59 // pred_check_branch
          %620 = sbr.rel (%p618) target = $region72
        $region71: #{tpu_custom_call.1} parent=59 // pred_region
          %v621 = vld [vmem:[#allocation2] sm:$0xff]
          %v622 = vld [vmem:[#allocation2 + $0x8] sm:$0xff]
          %v623 = vld [vmem:[%s346] sm:$0xff]
          %v624 = vld [vmem:[%s346 + $0x8] sm:$0xff]
          %v625 = vld [vmem:[%s346 + $0x10] sm:$0xff]
          %v626 = vld [vmem:[%s346 + $0x18] sm:$0xff]
          %v627 = vld [vmem:[%s346 + $0x20] sm:$0xff]
          %v628 = vld [vmem:[%s346 + $0x28] sm:$0xff]
          %v629 = vld [vmem:[%s346 + $0x30] sm:$0xff]
          %v630 = vld [vmem:[%s346 + $0x38] sm:$0xff]
          %v631 = vld [vmem:[%s346 + $0x40] sm:$0xff]
          %v632 = vld [vmem:[%s346 + $0x48] sm:$0xff]
          %v633 = vld [vmem:[%s346 + $0x50] sm:$0xff]
          %v634 = vld [vmem:[%s346 + $0x58] sm:$0xff]
          %v635 = vld [vmem:[%s346 + $0x60] sm:$0xff]
          %v636 = vld [vmem:[%s346 + $0x68] sm:$0xff]
          %v637 = vld [vmem:[%s346 + $0x70] sm:$0xff]
          %v638 = vld [vmem:[%s346 + $0x78] sm:$0xff]
          %s639 = scalar_lea.vmem [#allocation2], 32
          %v640 = vld [vmem:[%s639] sm:$0xff]
          %v641 = vld [vmem:[%s639 + $0x8] sm:$0xff]
          %v642 = vld [vmem:[%s346 + $0x80] sm:$0xff]
          %v643 = vld [vmem:[%s346 + $0x88] sm:$0xff]
          %v644 = vld [vmem:[%s346 + $0x90] sm:$0xff]
          %v645 = vld [vmem:[%s346 + $0x98] sm:$0xff]
          %v646 = vld [vmem:[%s346 + $0xa0] sm:$0xff]
          %v647 = vld [vmem:[%s346 + $0xa8] sm:$0xff]
          %v648 = vld [vmem:[%s346 + $0xb0] sm:$0xff]
          %v649 = vld [vmem:[%s346 + $0xb8] sm:$0xff]
          %v650 = vld [vmem:[%s346 + $0xc0] sm:$0xff]
          %v651 = vld [vmem:[%s346 + $0xc8] sm:$0xff]
          %v652 = vld [vmem:[%s346 + $0xd0] sm:$0xff]
          %v653 = vld [vmem:[%s346 + $0xd8] sm:$0xff]
          %v654 = vld [vmem:[%s346 + $0xe0] sm:$0xff]
          %v655 = vld [vmem:[%s346 + $0xe8] sm:$0xff]
          %v656 = vld [vmem:[%s346 + $0xf0] sm:$0xff]
          %v657 = vld [vmem:[%s346 + $0xf8] sm:$0xff]
          %658 = vmatpush.msra.mxu0 %v657
          %659 = vmatpush.msra.mxu0 %v656
          %660 = vmatpush.msra.mxu0 %v655
          %661 = vmatpush.msra.mxu0 %v654
          %662 = vmatpush.msra.mxu0 %v653
          %663 = vmatpush.msra.mxu0 %v652
          %664 = vmatpush.msra.mxu0 %v651
          %665 = vmatpush.msra.mxu0 %v650
          %666 = vmatpush.msra.mxu0 %v649
          %667 = vmatpush.msra.mxu0 %v648
          %668 = vmatpush.msra.mxu0 %v647
          %669 = vmatpush.msra.mxu0 %v646
          %670 = vmatpush.msra.mxu0 %v645
          %671 = vmatpush.msra.mxu0 %v644
          %672 = vmatpush.msra.mxu0 %v643
          %673 = vmatpush.msra.mxu0 %v642
          %674 = vmatmul.f32.gmra.mxu0 %v640
          %v675 = vpop.f32.mrf.mxu0
          %v676 = vadd.f32 0.0, %v675
          %677 = vmatmul.f32.gmra.mxu0 %v641
          %v678 = vpop.f32.mrf.mxu0
          %v679 = vadd.f32 0.0, %v678
          %680 = vdwg.mxu0
          %681 = vmatpush.msra.mxu0 %v638
          %682 = vmatpush.msra.mxu0 %v637
          %683 = vmatpush.msra.mxu0 %v636
          %684 = vmatpush.msra.mxu0 %v635
          %685 = vmatpush.msra.mxu0 %v634
          %686 = vmatpush.msra.mxu0 %v633
          %687 = vmatpush.msra.mxu0 %v632
          %688 = vmatpush.msra.mxu0 %v631
          %689 = vmatpush.msra.mxu0 %v630
          %690 = vmatpush.msra.mxu0 %v629
          %691 = vmatpush.msra.mxu0 %v628
          %692 = vmatpush.msra.mxu0 %v627
          %693 = vmatpush.msra.mxu0 %v626
          %694 = vmatpush.msra.mxu0 %v625
          %695 = vmatpush.msra.mxu0 %v624
          %696 = vmatpush.msra.mxu0 %v623
          %697 = vmatmul.f32.gmra.mxu0 %v621
          %v698 = vpop.f32.mrf.mxu0
          %v699 = vadd.f32 %v676, %v698
          %700 = vmatmul.f32.gmra.mxu0 %v622
          %v701 = vpop.f32.mrf.mxu0
          %v702 = vadd.f32 %v679, %v701
          %703 = vdwg.mxu0
          %v704 = vmul.f32 %v699, 2.0
          %v705 = vmul.f32 %v702, 2.0
          %s706 = smul.u32 %s30, 16
          %s707 = scalar_lea.vmem %s1, %s706
          %v708 = vld [vmem:[%s707] sm:$0xff]
          %v709 = vld [vmem:[%s707 + $0x8] sm:$0xff]
          %v710 = vsub.f32 %v704, %v708
          %v711 = vsub.f32 %v705, %v709
          %s712 = scalar_lea.vmem %s2, 32
          %v713 = vld [vmem:[%s712] sm:$0xff]
          %v714 = vld [vmem:[%s712 + $0x8] sm:$0xff]
          %vm715 = vcmask 64512
          %v717 = vsel %vm715, %v713, 0
          %v720 = vsel %vm715, %v714, 0
          %722 = vmatpush.msra.mxu0 0.0
          %723 = vmatpush.msra.mxu0 0.0
          %724 = vmatpush.msra.mxu0 0.0
          %725 = vmatpush.msra.mxu0 0.0
          %726 = vmatpush.msra.mxu0 0.0
          %727 = vmatpush.msra.mxu0 0.0
          %728 = vmatpush.msra.mxu0 0.0
          %729 = vmatpush.msra.mxu0 0.0
          %730 = vmatpush.msra.mxu0 0.0
          %731 = vmatpush.msra.mxu0 0.0
          %732 = vmatpush.msra.mxu0 0.0
          %733 = vmatpush.msra.mxu0 0.0
          %734 = vmatpush.msra.mxu0 0.0
          %735 = vmatpush.msra.mxu0 0.0
          %736 = vmatpush.msra.mxu0 0.0
          %737 = vmatpush.msra.mxu0 %v710
          %738 = vmatmul.f32.gmra.mxu0 %v717
          %v739 = vpop.f32.mrf.mxu0
          %v740 = vadd.f32 0.0, %v739
          %741 = vmatmul.f32.gmra.mxu0 %v720
          %v742 = vpop.f32.mrf.mxu0
          %v743 = vadd.f32 0.0, %v742
          %744 = vdwg.mxu0
          %s745 = smul.u32 %s30, 32
          %s746 = scalar_lea.vmem [#allocation4], %s745
          %v747 = vld [vmem:[%s746] sm:$0xff]
          %v748 = vld [vmem:[%s746 + $0x8] sm:$0xff]
          %v749 = vadd.f32 %v747, %v740
          %v750 = vadd.f32 %v748, %v743
          %751 = vst [vmem:[%s746] sm:$0xff] %v749
          %752 = vst [vmem:[%s746 + $0x8] sm:$0xff] %v750
          %753 = vmatpush.msra.mxu0 0.0
          %754 = vmatpush.msra.mxu0 0.0
          %755 = vmatpush.msra.mxu0 0.0
          %756 = vmatpush.msra.mxu0 0.0
          %757 = vmatpush.msra.mxu0 0.0
          %758 = vmatpush.msra.mxu0 0.0
          %759 = vmatpush.msra.mxu0 0.0
          %760 = vmatpush.msra.mxu0 0.0
          %761 = vmatpush.msra.mxu0 0.0
          %762 = vmatpush.msra.mxu0 0.0
          %763 = vmatpush.msra.mxu0 0.0
          %764 = vmatpush.msra.mxu0 0.0
          %765 = vmatpush.msra.mxu0 0.0
          %766 = vmatpush.msra.mxu0 0.0
          %767 = vmatpush.msra.mxu0 0.0
          %768 = vmatpush.msra.mxu0 %v711
          %769 = vmatmul.f32.gmra.mxu0 %v717
          %v770 = vpop.f32.mrf.mxu0
          %v771 = vadd.f32 0.0, %v770
          %772 = vmatmul.f32.gmra.mxu0 %v720
          %v773 = vpop.f32.mrf.mxu0
          %v774 = vadd.f32 0.0, %v773
          %775 = vdwg.mxu0
          %v776 = vld [vmem:[%s746 + $0x10] sm:$0xff]
          %v777 = vld [vmem:[%s746 + $0x18] sm:$0xff]
          %v778 = vadd.f32 %v776, %v771
          %v779 = vadd.f32 %v777, %v774
          %780 = vst [vmem:[%s746 + $0x10] sm:$0xff] %v778
          %781 = vst [vmem:[%s746 + $0x18] sm:$0xff] %v779
        $region72: #{tpu_custom_call.1} parent=59 // pred_fallthru
          _
        %p782 = scmp.eq.s32.totalorder %s29, 2
        // Predicated region
        $region73: #{tpu_custom_call.1} parent=59 // pred_check
          %p783 = pneg %p782
        $region74: #{tpu_custom_call.1} parent=59 // pred_check_branch
          %785 = sbr.rel (%p783) target = $region76
        $region75: #{tpu_custom_call.1} parent=59 // pred_region
          %p786 = scmp.eq.s32.totalorder %s30, 0
          // Predicated region
          $region77: #{tpu_custom_call.1} parent=75 // pred_check
            %p787 = pneg %p786
          $region78: #{tpu_custom_call.1} parent=75 // pred_check_branch
            %789 = sbr.rel (%p787) target = $region80
          $region79: #{tpu_custom_call.1} parent=75 // pred_region
            %v790 = vld [vmem:[#allocation4] sm:$0xff]
            %v791 = vld [vmem:[#allocation4 + $0x8] sm:$0xff]
            %792 = vadd.xlane.f32.xlu0 %v790
            %v793 = vpop.xlane.xlu0 %792
            %794 = vadd.xlane.f32.xlu0 %v791
            %v795 = vpop.xlane.xlu0 %794
            %v796 = vadd.f32 %v793, 0.0
            %v797 = vadd.f32 %v795, 0.0
            %v798 = vmul.f32 %v790, %v790
            %v799 = vmul.f32 %v791, %v791
            %800 = vadd.xlane.f32.xlu0 %v798
            %v801 = vpop.xlane.xlu0 %800
            %802 = vadd.xlane.f32.xlu0 %v799
            %v803 = vpop.xlane.xlu0 %802
            %v804 = vadd.f32 %v801, 0.0
            %v805 = vadd.f32 %v803, 0.0
            %v806 = vld [vmem:[#allocation4 + $0x10] sm:$0xff]
            %v807 = vld [vmem:[#allocation4 + $0x18] sm:$0xff]
            %808 = vadd.xlane.f32.xlu0 %v806
            %v809 = vpop.xlane.xlu0 %808
            %810 = vadd.xlane.f32.xlu0 %v807
            %v811 = vpop.xlane.xlu0 %810
            %v812 = vadd.f32 %v796, %v809
            %v813 = vadd.f32 %v797, %v811
            %v814 = vmul.f32 %v806, %v806
            %v815 = vmul.f32 %v807, %v807
            %816 = vadd.xlane.f32.xlu0 %v814
            %v817 = vpop.xlane.xlu0 %816
            %818 = vadd.xlane.f32.xlu0 %v815
            %v819 = vpop.xlane.xlu0 %818
            %v820 = vadd.f32 %v804, %v817
            %v821 = vadd.f32 %v805, %v819
            %s822 = scalar_lea.vmem [#allocation4], 32
            %v823 = vld [vmem:[%s822] sm:$0xff]
            %v824 = vld [vmem:[%s822 + $0x8] sm:$0xff]
            %825 = vadd.xlane.f32.xlu0 %v823
            %v826 = vpop.xlane.xlu0 %825
            %827 = vadd.xlane.f32.xlu0 %v824
            %v828 = vpop.xlane.xlu0 %827
            %v829 = vadd.f32 %v812, %v826
            %v830 = vadd.f32 %v813, %v828
            %v831 = vmul.f32 %v823, %v823
            %v832 = vmul.f32 %v824, %v824
            %833 = vadd.xlane.f32.xlu0 %v831
            %v834 = vpop.xlane.xlu0 %833
            %835 = vadd.xlane.f32.xlu0 %v832
            %v836 = vpop.xlane.xlu0 %835
            %v837 = vadd.f32 %v820, %v834
            %v838 = vadd.f32 %v821, %v836
            %v839 = vld [vmem:[%s822 + $0x10] sm:$0xff]
            %v840 = vld [vmem:[%s822 + $0x18] sm:$0xff]
            %841 = vadd.xlane.f32.xlu0 %v839
            %v842 = vpop.xlane.xlu0 %841
            %843 = vadd.xlane.f32.xlu0 %v840
            %v844 = vpop.xlane.xlu0 %843
            %v845 = vadd.f32 %v829, %v842
            %v846 = vadd.f32 %v830, %v844
            %v847 = vmul.f32 %v839, %v839
            %v848 = vmul.f32 %v840, %v840
            %849 = vadd.xlane.f32.xlu0 %v847
            %v850 = vpop.xlane.xlu0 %849
            %851 = vadd.xlane.f32.xlu0 %v848
            %v852 = vpop.xlane.xlu0 %851
            %v853 = vadd.f32 %v837, %v850
            %v854 = vadd.f32 %v838, %v852
            %v855 = vrcp.pop 512.0
            %v856 = vmul.f32 512.0, %v855
            %v857 = vsub.f32 1.0, %v856
            %v858 = vmul.f32 %v855, %v857
            %v859 = vadd.f32 %v855, %v858
            %vm860 = vweird.f32 %v855
            %v861 = vsel %vm860, %v855, %v859
            %v862 = vmul.f32 %v845, %v861
            %v863 = vmul.f32 %v846, %v861
            %v864 = vmul.f32 %v853, %v861
            %v865 = vmul.f32 %v854, %v861
            %v866 = vmul.f32 %v862, %v862
            %v867 = vmul.f32 %v863, %v863
            %v868 = vsub.f32 %v864, %v866
            %v869 = vsub.f32 %v865, %v867
            %v870 = vmax.f32 %v868, 0.0
            %v871 = vmax.f32 %v869, 0.0
            %v872 = vld [vmem:[%s4] sm:$0xff]
            %v873 = vld [vmem:[%s4 + $0x8] sm:$0xff]
            %v874 = vadd.f32 %v870, 1e-05
            %v875 = vadd.f32 %v871, 1e-05
            %v876 = vrsqrt.pop %v874
            %v877 = vmul.f32 %v876, %v874
            %v878 = vmul.f32 %v877, %v876
            %v879 = vmul.f32 0.5, %v878
            %v880 = vsub.f32 1.5, %v879
            %v881 = vmul.f32 %v876, %v880
            %vm882 = vweird.f32 %v874
            %vm883 = vweird.f32 %v876
            %vm884 = vmor %vm882, %vm883
            %v885 = vsel %vm884, %v876, %v881
            %v886 = vrsqrt.pop %v875
            %v887 = vmul.f32 %v886, %v875
            %v888 = vmul.f32 %v887, %v886
            %v889 = vmul.f32 0.5, %v888
            %v890 = vsub.f32 1.5, %v889
            %v891 = vmul.f32 %v886, %v890
            %vm892 = vweird.f32 %v875
            %vm893 = vweird.f32 %v886
            %vm894 = vmor %vm892, %vm893
            %v895 = vsel %vm894, %v886, %v891
            %v896 = vmul.f32 %v872, %v885
            %v897 = vmul.f32 %v873, %v895
            %v898 = vld [vmem:[%s5] sm:$0xff]
            %v899 = vld [vmem:[%s5 + $0x8] sm:$0xff]
            %v900 = vmul.f32 %v862, %v896
            %v901 = vmul.f32 %v863, %v897
            %v902 = vsub.f32 %v898, %v900
            %v903 = vsub.f32 %v899, %v901
            %905 = vset.pattern.permute.xlu0 0
            %906 = vperm.xlu0 %905, %v896
            %v907 = vpop.permute.xlu0 %906
            %910 = vset.pattern.permute.xlu0 0
            %911 = vperm.xlu0 %910, %v897
            %v912 = vpop.permute.xlu0 %911
            %v914 = vmul.f32 %v790, %v907
            %v915 = vmul.f32 %v791, %v912
            %917 = vset.pattern.permute.xlu0 0
            %918 = vperm.xlu0 %917, %v902
            %v919 = vpop.permute.xlu0 %918
            %922 = vset.pattern.permute.xlu0 0
            %923 = vperm.xlu0 %922, %v903
            %v924 = vpop.permute.xlu0 %923
            %v926 = vadd.f32 %v914, %v919
            %v927 = vadd.f32 %v915, %v924
            %v928 = vmax.f32 %v926, 0.0
            %v929 = vmax.f32 %v927, 0.0
            %930 = vst [vmem:[#allocation2] sm:$0xff] %v928
            %931 = vst [vmem:[#allocation2 + $0x8] sm:$0xff] %v929
            %v932 = vld [vmem:[#allocation4 + $0x10] sm:$0xff]
            %v933 = vld [vmem:[#allocation4 + $0x18] sm:$0xff]
            %v934 = vmul.f32 %v932, %v907
            %v935 = vmul.f32 %v933, %v912
            %v936 = vadd.f32 %v934, %v919
            %v937 = vadd.f32 %v935, %v924
            %v938 = vmax.f32 %v936, 0.0
            %v939 = vmax.f32 %v937, 0.0
            %940 = vst [vmem:[#allocation2 + $0x10] sm:$0xff] %v938
            %941 = vst [vmem:[#allocation2 + $0x18] sm:$0xff] %v939
            %v942 = vld [vmem:[%s822] sm:$0xff]
            %v943 = vld [vmem:[%s822 + $0x8] sm:$0xff]
            %v944 = vmul.f32 %v942, %v907
            %v945 = vmul.f32 %v943, %v912
            %v946 = vadd.f32 %v944, %v919
            %v947 = vadd.f32 %v945, %v924
            %v948 = vmax.f32 %v946, 0.0
            %v949 = vmax.f32 %v947, 0.0
            %s950 = scalar_lea.vmem [#allocation2], 32
            %951 = vst [vmem:[%s950] sm:$0xff] %v948
            %952 = vst [vmem:[%s950 + $0x8] sm:$0xff] %v949
            %v953 = vld [vmem:[%s822 + $0x10] sm:$0xff]
            %v954 = vld [vmem:[%s822 + $0x18] sm:$0xff]
            %v955 = vmul.f32 %v953, %v907
            %v956 = vmul.f32 %v954, %v912
            %v957 = vadd.f32 %v955, %v919
            %v958 = vadd.f32 %v956, %v924
            %v959 = vmax.f32 %v957, 0.0
            %v960 = vmax.f32 %v958, 0.0
            %961 = vst [vmem:[%s950 + $0x10] sm:$0xff] %v959
            %962 = vst [vmem:[%s950 + $0x18] sm:$0xff] %v960
          $region80: #{tpu_custom_call.1} parent=75 // pred_fallthru
            _
          %v963 = vld [vmem:[#allocation2] sm:$0xff]
          %v964 = vld [vmem:[#allocation2 + $0x8] sm:$0xff]
          %v965 = vld [vmem:[#allocation2 + $0x10] sm:$0xff]
          %v966 = vld [vmem:[#allocation2 + $0x18] sm:$0xff]
          %v967 = vld [vmem:[%s346] sm:$0xff]
          %v968 = vld [vmem:[%s346 + $0x8] sm:$0xff]
          %v969 = vld [vmem:[%s346 + $0x10] sm:$0xff]
          %v970 = vld [vmem:[%s346 + $0x18] sm:$0xff]
          %v971 = vld [vmem:[%s346 + $0x20] sm:$0xff]
          %v972 = vld [vmem:[%s346 + $0x28] sm:$0xff]
          %v973 = vld [vmem:[%s346 + $0x30] sm:$0xff]
          %v974 = vld [vmem:[%s346 + $0x38] sm:$0xff]
          %v975 = vld [vmem:[%s346 + $0x40] sm:$0xff]
          %v976 = vld [vmem:[%s346 + $0x48] sm:$0xff]
          %v977 = vld [vmem:[%s346 + $0x50] sm:$0xff]
          %v978 = vld [vmem:[%s346 + $0x58] sm:$0xff]
          %v979 = vld [vmem:[%s346 + $0x60] sm:$0xff]
          %v980 = vld [vmem:[%s346 + $0x68] sm:$0xff]
          %v981 = vld [vmem:[%s346 + $0x70] sm:$0xff]
          %v982 = vld [vmem:[%s346 + $0x78] sm:$0xff]
          %s983 = scalar_lea.vmem [#allocation2], 32
          %v984 = vld [vmem:[%s983] sm:$0xff]
          %v985 = vld [vmem:[%s983 + $0x8] sm:$0xff]
          %v986 = vld [vmem:[%s983 + $0x10] sm:$0xff]
          %v987 = vld [vmem:[%s983 + $0x18] sm:$0xff]
          %v988 = vld [vmem:[%s346 + $0x80] sm:$0xff]
          %v989 = vld [vmem:[%s346 + $0x88] sm:$0xff]
          %v990 = vld [vmem:[%s346 + $0x90] sm:$0xff]
          %v991 = vld [vmem:[%s346 + $0x98] sm:$0xff]
          %v992 = vld [vmem:[%s346 + $0xa0] sm:$0xff]
          %v993 = vld [vmem:[%s346 + $0xa8] sm:$0xff]
          %v994 = vld [vmem:[%s346 + $0xb0] sm:$0xff]
          %v995 = vld [vmem:[%s346 + $0xb8] sm:$0xff]
          %v996 = vld [vmem:[%s346 + $0xc0] sm:$0xff]
          %v997 = vld [vmem:[%s346 + $0xc8] sm:$0xff]
          %v998 = vld [vmem:[%s346 + $0xd0] sm:$0xff]
          %v999 = vld [vmem:[%s346 + $0xd8] sm:$0xff]
          %v1000 = vld [vmem:[%s346 + $0xe0] sm:$0xff]
          %v1001 = vld [vmem:[%s346 + $0xe8] sm:$0xff]
          %v1002 = vld [vmem:[%s346 + $0xf0] sm:$0xff]
          %v1003 = vld [vmem:[%s346 + $0xf8] sm:$0xff]
          %1004 = vmatpush.msra.mxu0 %v1003
          %1005 = vmatpush.msra.mxu0 %v1002
          %1006 = vmatpush.msra.mxu0 %v1001
          %1007 = vmatpush.msra.mxu0 %v1000
          %1008 = vmatpush.msra.mxu0 %v999
          %1009 = vmatpush.msra.mxu0 %v998
          %1010 = vmatpush.msra.mxu0 %v997
          %1011 = vmatpush.msra.mxu0 %v996
          %1012 = vmatpush.msra.mxu0 %v995
          %1013 = vmatpush.msra.mxu0 %v994
          %1014 = vmatpush.msra.mxu0 %v993
          %1015 = vmatpush.msra.mxu0 %v992
          %1016 = vmatpush.msra.mxu0 %v991
          %1017 = vmatpush.msra.mxu0 %v990
          %1018 = vmatpush.msra.mxu0 %v989
          %1019 = vmatpush.msra.mxu0 %v988
          %1020 = vmatmul.f32.gmra.mxu0 %v984
          %v1021 = vpop.f32.mrf.mxu0
          %v1022 = vadd.f32 0.0, %v1021
          %1023 = vmatmul.f32.gmra.mxu0 %v985
          %v1024 = vpop.f32.mrf.mxu0
          %v1025 = vadd.f32 0.0, %v1024
          %1026 = vmatmul.f32.gmra.mxu0 %v986
          %v1027 = vpop.f32.mrf.mxu0
          %v1028 = vadd.f32 0.0, %v1027
          %1029 = vmatmul.f32.gmra.mxu0 %v987
          %v1030 = vpop.f32.mrf.mxu0
          %v1031 = vadd.f32 0.0, %v1030
          %1032 = vdwg.mxu0
          %1033 = vmatpush.msra.mxu0 %v982
          %1034 = vmatpush.msra.mxu0 %v981
          %1035 = vmatpush.msra.mxu0 %v980
          %1036 = vmatpush.msra.mxu0 %v979
          %1037 = vmatpush.msra.mxu0 %v978
          %1038 = vmatpush.msra.mxu0 %v977
          %1039 = vmatpush.msra.mxu0 %v976
          %1040 = vmatpush.msra.mxu0 %v975
          %1041 = vmatpush.msra.mxu0 %v974
          %1042 = vmatpush.msra.mxu0 %v973
          %1043 = vmatpush.msra.mxu0 %v972
          %1044 = vmatpush.msra.mxu0 %v971
          %1045 = vmatpush.msra.mxu0 %v970
          %1046 = vmatpush.msra.mxu0 %v969
          %1047 = vmatpush.msra.mxu0 %v968
          %1048 = vmatpush.msra.mxu0 %v967
          %1049 = vmatmul.f32.gmra.mxu0 %v963
          %v1050 = vpop.f32.mrf.mxu0
          %v1051 = vadd.f32 %v1022, %v1050
          %1052 = vmatmul.f32.gmra.mxu0 %v964
          %v1053 = vpop.f32.mrf.mxu0
          %v1054 = vadd.f32 %v1025, %v1053
          %1055 = vmatmul.f32.gmra.mxu0 %v965
          %v1056 = vpop.f32.mrf.mxu0
          %v1057 = vadd.f32 %v1028, %v1056
          %1058 = vmatmul.f32.gmra.mxu0 %v966
          %v1059 = vpop.f32.mrf.mxu0
          %v1060 = vadd.f32 %v1031, %v1059
          %1061 = vdwg.mxu0
          %s1062 = smul.u32 %s30, 32
          %s1063 = scalar_lea.vmem [#allocation3], %s1062
          %1064 = vst [vmem:[%s1063] sm:$0xff] %v1051
          %1065 = vst [vmem:[%s1063 + $0x8] sm:$0xff] %v1054
          %1066 = vst [vmem:[%s1063 + $0x10] sm:$0xff] %v1057
          %1067 = vst [vmem:[%s1063 + $0x18] sm:$0xff] %v1060
          %s1068 = scalar_lea.vmem %s6, 8
          %v1069 = vld [vmem:[%s1068] sm:$0xff]
          %v1070 = vld [vmem:[%s6] sm:$0xff]
          %s1071 = scalar_lea.vmem [#allocation2], %s1062
          %v1072 = vld [vmem:[%s1071] sm:$0xff]
          %v1073 = vld [vmem:[%s1071 + $0x8] sm:$0xff]
          %v1074 = vld [vmem:[%s1071 + $0x10] sm:$0xff]
          %v1075 = vld [vmem:[%s1071 + $0x18] sm:$0xff]
          %vm1076 = vcmask 130048
          %v1078 = vsel %vm1076, %v1070, 0
          %1080 = vmatpush.msra.mxu0 0.0
          %1081 = vmatpush.msra.mxu0 0.0
          %1082 = vmatpush.msra.mxu0 0.0
          %1083 = vmatpush.msra.mxu0 0.0
          %1084 = vmatpush.msra.mxu0 0.0
          %1085 = vmatpush.msra.mxu0 0.0
          %1086 = vmatpush.msra.mxu0 0.0
          %1087 = vmatpush.msra.mxu0 0.0
          %1088 = vmatpush.msra.mxu0 0.0
          %1089 = vmatpush.msra.mxu0 0.0
          %1090 = vmatpush.msra.mxu0 0.0
          %1091 = vmatpush.msra.mxu0 0.0
          %1092 = vmatpush.msra.mxu0 0.0
          %1093 = vmatpush.msra.mxu0 0.0
          %1094 = vmatpush.msra.mxu0 %v1073
          %1095 = vmatpush.msra.mxu0 %v1072
          %1096 = vmatmul.f32.gmra.mxu0 %v1078
          %v1097 = vpop.f32.mrf.mxu0
          %v1098 = vadd.f32 0.0, %v1097
          %1099 = vdwg.mxu0
          %v1101 = vsel %vm1076, %v1069, 0
          %1103 = vmatpush.msra.mxu0 0.0
          %1104 = vmatpush.msra.mxu0 0.0
          %1105 = vmatpush.msra.mxu0 0.0
          %1106 = vmatpush.msra.mxu0 0.0
          %1107 = vmatpush.msra.mxu0 0.0
          %1108 = vmatpush.msra.mxu0 0.0
          %1109 = vmatpush.msra.mxu0 0.0
          %1110 = vmatpush.msra.mxu0 0.0
          %1111 = vmatpush.msra.mxu0 0.0
          %1112 = vmatpush.msra.mxu0 0.0
          %1113 = vmatpush.msra.mxu0 0.0
          %1114 = vmatpush.msra.mxu0 0.0
          %1115 = vmatpush.msra.mxu0 0.0
          %1116 = vmatpush.msra.mxu0 0.0
          %1117 = vmatpush.msra.mxu0 %v1054
          %1118 = vmatpush.msra.mxu0 %v1051
          %1119 = vmatmul.f32.gmra.mxu0 %v1101
          %v1120 = vpop.f32.mrf.mxu0
          %v1121 = vadd.f32 %v1098, %v1120
          %1122 = vdwg.mxu0
          %v1123 = vld [vmem:[%s7] sm:$0xff]
          %1125 = vset.pattern.permute.xlu0 0
          %1126 = vperm.xlu0 %1125, %v1123
          %v1127 = vpop.permute.xlu0 %1126
          %v1129 = vadd.f32 %v1121, %v1127
          %s1130 = scalar_lea.vmem [#allocation4], %s1062
          %1131 = vst [vmem:[%s1130] sm:$0xff] %v1129
          %1132 = vmatpush.msra.mxu0 0.0
          %1133 = vmatpush.msra.mxu0 0.0
          %1134 = vmatpush.msra.mxu0 0.0
          %1135 = vmatpush.msra.mxu0 0.0
          %1136 = vmatpush.msra.mxu0 0.0
          %1137 = vmatpush.msra.mxu0 0.0
          %1138 = vmatpush.msra.mxu0 0.0
          %1139 = vmatpush.msra.mxu0 0.0
          %1140 = vmatpush.msra.mxu0 0.0
          %1141 = vmatpush.msra.mxu0 0.0
          %1142 = vmatpush.msra.mxu0 0.0
          %1143 = vmatpush.msra.mxu0 0.0
          %1144 = vmatpush.msra.mxu0 0.0
          %1145 = vmatpush.msra.mxu0 0.0
          %1146 = vmatpush.msra.mxu0 %v1075
          %1147 = vmatpush.msra.mxu0 %v1074
          %1148 = vmatmul.f32.gmra.mxu0 %v1078
          %v1149 = vpop.f32.mrf.mxu0
          %v1150 = vadd.f32 0.0, %v1149
          %1151 = vdwg.mxu0
          %1152 = vmatpush.msra.mxu0 0.0
          %1153 = vmatpush.msra.mxu0 0.0
          %1154 = vmatpush.msra.mxu0 0.0
          %1155 = vmatpush.msra.mxu0 0.0
          %1156 = vmatpush.msra.mxu0 0.0
          %1157 = vmatpush.msra.mxu0 0.0
          %1158 = vmatpush.msra.mxu0 0.0
          %1159 = vmatpush.msra.mxu0 0.0
          %1160 = vmatpush.msra.mxu0 0.0
          %1161 = vmatpush.msra.mxu0 0.0
          %1162 = vmatpush.msra.mxu0 0.0
          %1163 = vmatpush.msra.mxu0 0.0
          %1164 = vmatpush.msra.mxu0 0.0
          %1165 = vmatpush.msra.mxu0 0.0
          %1166 = vmatpush.msra.mxu0 %v1060
          %1167 = vmatpush.msra.mxu0 %v1057
          %1168 = vmatmul.f32.gmra.mxu0 %v1101
          %v1169 = vpop.f32.mrf.mxu0
          %v1170 = vadd.f32 %v1150, %v1169
          %1171 = vdwg.mxu0
          %v1172 = vld [vmem:[%s7 + $0x8] sm:$0xff]
          %1174 = vset.pattern.permute.xlu0 0
          %1175 = vperm.xlu0 %1174, %v1172
          %v1176 = vpop.permute.xlu0 %1175
          %v1178 = vadd.f32 %v1170, %v1176
          %1179 = vst [vmem:[%s1130 + $0x8] sm:$0xff] %v1178
        $region76: #{tpu_custom_call.1} parent=59 // pred_fallthru
          _
        %p1180 = scmp.eq.s32.totalorder %s29, 3
        // Predicated region
        $region81: #{tpu_custom_call.1} parent=59 // pred_check
          %p1181 = pneg %p1180
        $region82: #{tpu_custom_call.1} parent=59 // pred_check_branch
          %1183 = sbr.rel (%p1181) target = $region84
        $region83: #{tpu_custom_call.1} parent=59 // pred_region
          %v1184 = vld [vmem:[#allocation3] sm:$0xff]
          %v1185 = vld [vmem:[#allocation3 + $0x8] sm:$0xff]
          %v1186 = vld [vmem:[#allocation3 + $0x10] sm:$0xff]
          %v1187 = vld [vmem:[#allocation3 + $0x18] sm:$0xff]
          %v1188 = vld [vmem:[%s346] sm:$0xff]
          %v1189 = vld [vmem:[%s346 + $0x8] sm:$0xff]
          %v1190 = vld [vmem:[%s346 + $0x10] sm:$0xff]
          %v1191 = vld [vmem:[%s346 + $0x18] sm:$0xff]
          %v1192 = vld [vmem:[%s346 + $0x20] sm:$0xff]
          %v1193 = vld [vmem:[%s346 + $0x28] sm:$0xff]
          %v1194 = vld [vmem:[%s346 + $0x30] sm:$0xff]
          %v1195 = vld [vmem:[%s346 + $0x38] sm:$0xff]
          %v1196 = vld [vmem:[%s346 + $0x40] sm:$0xff]
          %v1197 = vld [vmem:[%s346 + $0x48] sm:$0xff]
          %v1198 = vld [vmem:[%s346 + $0x50] sm:$0xff]
          %v1199 = vld [vmem:[%s346 + $0x58] sm:$0xff]
          %v1200 = vld [vmem:[%s346 + $0x60] sm:$0xff]
          %v1201 = vld [vmem:[%s346 + $0x68] sm:$0xff]
          %v1202 = vld [vmem:[%s346 + $0x70] sm:$0xff]
          %v1203 = vld [vmem:[%s346 + $0x78] sm:$0xff]
          %s1204 = scalar_lea.vmem [#allocation3], 32
          %v1205 = vld [vmem:[%s1204] sm:$0xff]
          %v1206 = vld [vmem:[%s1204 + $0x8] sm:$0xff]
          %v1207 = vld [vmem:[%s1204 + $0x10] sm:$0xff]
          %v1208 = vld [vmem:[%s1204 + $0x18] sm:$0xff]
          %v1209 = vld [vmem:[%s346 + $0x80] sm:$0xff]
          %v1210 = vld [vmem:[%s346 + $0x88] sm:$0xff]
          %v1211 = vld [vmem:[%s346 + $0x90] sm:$0xff]
          %v1212 = vld [vmem:[%s346 + $0x98] sm:$0xff]
          %v1213 = vld [vmem:[%s346 + $0xa0] sm:$0xff]
          %v1214 = vld [vmem:[%s346 + $0xa8] sm:$0xff]
          %v1215 = vld [vmem:[%s346 + $0xb0] sm:$0xff]
          %v1216 = vld [vmem:[%s346 + $0xb8] sm:$0xff]
          %v1217 = vld [vmem:[%s346 + $0xc0] sm:$0xff]
          %v1218 = vld [vmem:[%s346 + $0xc8] sm:$0xff]
          %v1219 = vld [vmem:[%s346 + $0xd0] sm:$0xff]
          %v1220 = vld [vmem:[%s346 + $0xd8] sm:$0xff]
          %v1221 = vld [vmem:[%s346 + $0xe0] sm:$0xff]
          %v1222 = vld [vmem:[%s346 + $0xe8] sm:$0xff]
          %v1223 = vld [vmem:[%s346 + $0xf0] sm:$0xff]
          %v1224 = vld [vmem:[%s346 + $0xf8] sm:$0xff]
          %1225 = vmatpush.msra.mxu0 %v1224
          %1226 = vmatpush.msra.mxu0 %v1223
          %1227 = vmatpush.msra.mxu0 %v1222
          %1228 = vmatpush.msra.mxu0 %v1221
          %1229 = vmatpush.msra.mxu0 %v1220
          %1230 = vmatpush.msra.mxu0 %v1219
          %1231 = vmatpush.msra.mxu0 %v1218
          %1232 = vmatpush.msra.mxu0 %v1217
          %1233 = vmatpush.msra.mxu0 %v1216
          %1234 = vmatpush.msra.mxu0 %v1215
          %1235 = vmatpush.msra.mxu0 %v1214
          %1236 = vmatpush.msra.mxu0 %v1213
          %1237 = vmatpush.msra.mxu0 %v1212
          %1238 = vmatpush.msra.mxu0 %v1211
          %1239 = vmatpush.msra.mxu0 %v1210
          %1240 = vmatpush.msra.mxu0 %v1209
          %1241 = vmatmul.f32.gmra.mxu0 %v1205
          %v1242 = vpop.f32.mrf.mxu0
          %v1243 = vadd.f32 0.0, %v1242
          %1244 = vmatmul.f32.gmra.mxu0 %v1206
          %v1245 = vpop.f32.mrf.mxu0
          %v1246 = vadd.f32 0.0, %v1245
          %1247 = vmatmul.f32.gmra.mxu0 %v1207
          %v1248 = vpop.f32.mrf.mxu0
          %v1249 = vadd.f32 0.0, %v1248
          %1250 = vmatmul.f32.gmra.mxu0 %v1208
          %v1251 = vpop.f32.mrf.mxu0
          %v1252 = vadd.f32 0.0, %v1251
          %1253 = vdwg.mxu0
          %1254 = vmatpush.msra.mxu0 %v1203
          %1255 = vmatpush.msra.mxu0 %v1202
          %1256 = vmatpush.msra.mxu0 %v1201
          %1257 = vmatpush.msra.mxu0 %v1200
          %1258 = vmatpush.msra.mxu0 %v1199
          %1259 = vmatpush.msra.mxu0 %v1198
          %1260 = vmatpush.msra.mxu0 %v1197
          %1261 = vmatpush.msra.mxu0 %v1196
          %1262 = vmatpush.msra.mxu0 %v1195
          %1263 = vmatpush.msra.mxu0 %v1194
          %1264 = vmatpush.msra.mxu0 %v1193
          %1265 = vmatpush.msra.mxu0 %v1192
          %1266 = vmatpush.msra.mxu0 %v1191
          %1267 = vmatpush.msra.mxu0 %v1190
          %1268 = vmatpush.msra.mxu0 %v1189
          %1269 = vmatpush.msra.mxu0 %v1188
          %1270 = vmatmul.f32.gmra.mxu0 %v1184
          %v1271 = vpop.f32.mrf.mxu0
          %v1272 = vadd.f32 %v1243, %v1271
          %1273 = vmatmul.f32.gmra.mxu0 %v1185
          %v1274 = vpop.f32.mrf.mxu0
          %v1275 = vadd.f32 %v1246, %v1274
          %1276 = vmatmul.f32.gmra.mxu0 %v1186
          %v1277 = vpop.f32.mrf.mxu0
          %v1278 = vadd.f32 %v1249, %v1277
          %1279 = vmatmul.f32.gmra.mxu0 %v1187
          %v1280 = vpop.f32.mrf.mxu0
          %v1281 = vadd.f32 %v1252, %v1280
          %1282 = vdwg.mxu0
          %v1283 = vmul.f32 %v1272, 2.0
          %v1284 = vmul.f32 %v1275, 2.0
          %v1285 = vmul.f32 %v1278, 2.0
          %v1286 = vmul.f32 %v1281, 2.0
          %s1287 = smul.u32 %s30, 32
          %s1288 = scalar_lea.vmem [#allocation2], %s1287
          %v1289 = vld [vmem:[%s1288] sm:$0xff]
          %v1290 = vld [vmem:[%s1288 + $0x8] sm:$0xff]
          %v1291 = vld [vmem:[%s1288 + $0x10] sm:$0xff]
          %v1292 = vld [vmem:[%s1288 + $0x18] sm:$0xff]
          %v1293 = vsub.f32 %v1283, %v1289
          %v1294 = vsub.f32 %v1284, %v1290
          %v1295 = vsub.f32 %v1285, %v1291
          %v1296 = vsub.f32 %v1286, %v1292
          %s1297 = scalar_lea.vmem %s6, 16
          %v1298 = vld [vmem:[%s1297] sm:$0xff]
          %vm1299 = vcmask 130048
          %v1301 = vsel %vm1299, %v1298, 0
          %1303 = vmatpush.msra.mxu0 0.0
          %1304 = vmatpush.msra.mxu0 0.0
          %1305 = vmatpush.msra.mxu0 0.0
          %1306 = vmatpush.msra.mxu0 0.0
          %1307 = vmatpush.msra.mxu0 0.0
          %1308 = vmatpush.msra.mxu0 0.0
          %1309 = vmatpush.msra.mxu0 0.0
          %1310 = vmatpush.msra.mxu0 0.0
          %1311 = vmatpush.msra.mxu0 0.0
          %1312 = vmatpush.msra.mxu0 0.0
          %1313 = vmatpush.msra.mxu0 0.0
          %1314 = vmatpush.msra.mxu0 0.0
          %1315 = vmatpush.msra.mxu0 0.0
          %1316 = vmatpush.msra.mxu0 0.0
          %1317 = vmatpush.msra.mxu0 %v1294
          %1318 = vmatpush.msra.mxu0 %v1293
          %1319 = vmatmul.f32.gmra.mxu0 %v1301
          %v1320 = vpop.f32.mrf.mxu0
          %v1321 = vadd.f32 0.0, %v1320
          %1322 = vdwg.mxu0
          %s1323 = scalar_lea.vmem [#allocation4], %s1287
          %v1324 = vld [vmem:[%s1323] sm:$0xff]
          %v1325 = vadd.f32 %v1324, %v1321
          %1326 = vst [vmem:[%s1323] sm:$0xff] %v1325
          %1327 = vmatpush.msra.mxu0 0.0
          %1328 = vmatpush.msra.mxu0 0.0
          %1329 = vmatpush.msra.mxu0 0.0
          %1330 = vmatpush.msra.mxu0 0.0
          %1331 = vmatpush.msra.mxu0 0.0
          %1332 = vmatpush.msra.mxu0 0.0
          %1333 = vmatpush.msra.mxu0 0.0
          %1334 = vmatpush.msra.mxu0 0.0
          %1335 = vmatpush.msra.mxu0 0.0
          %1336 = vmatpush.msra.mxu0 0.0
          %1337 = vmatpush.msra.mxu0 0.0
          %1338 = vmatpush.msra.mxu0 0.0
          %1339 = vmatpush.msra.mxu0 0.0
          %1340 = vmatpush.msra.mxu0 0.0
          %1341 = vmatpush.msra.mxu0 %v1296
          %1342 = vmatpush.msra.mxu0 %v1295
          %1343 = vmatmul.f32.gmra.mxu0 %v1301
          %v1344 = vpop.f32.mrf.mxu0
          %v1345 = vadd.f32 0.0, %v1344
          %1346 = vdwg.mxu0
          %v1347 = vld [vmem:[%s1323 + $0x8] sm:$0xff]
          %v1348 = vadd.f32 %v1347, %v1345
          %1349 = vst [vmem:[%s1323 + $0x8] sm:$0xff] %v1348
          %p1350 = scmp.eq.s32.totalorder %s30, 1
          // Predicated region
          $region85: #{tpu_custom_call.1} parent=83 // pred_check
            %p1351 = pneg %p1350
          $region86: #{tpu_custom_call.1} parent=83 // pred_check_branch
            %1353 = sbr.rel (%p1351) target = $region88
          $region87: #{tpu_custom_call.1} parent=83 // pred_region
            %v1354 = vld [vmem:[#allocation4] sm:$0xff]
            %1355 = vadd.xlane.f32.xlu0 %v1354
            %v1356 = vpop.xlane.xlu0 %1355
            %v1357 = vadd.f32 %v1356, 0.0
            %v1358 = vmul.f32 %v1354, %v1354
            %1359 = vadd.xlane.f32.xlu0 %v1358
            %v1360 = vpop.xlane.xlu0 %1359
            %v1361 = vadd.f32 %v1360, 0.0
            %v1362 = vld [vmem:[#allocation4 + $0x8] sm:$0xff]
            %1363 = vadd.xlane.f32.xlu0 %v1362
            %v1364 = vpop.xlane.xlu0 %1363
            %v1365 = vadd.f32 %v1357, %v1364
            %v1366 = vmul.f32 %v1362, %v1362
            %1367 = vadd.xlane.f32.xlu0 %v1366
            %v1368 = vpop.xlane.xlu0 %1367
            %v1369 = vadd.f32 %v1361, %v1368
            %s1370 = scalar_lea.vmem [#allocation4], 32
            %v1371 = vld [vmem:[%s1370] sm:$0xff]
            %1372 = vadd.xlane.f32.xlu0 %v1371
            %v1373 = vpop.xlane.xlu0 %1372
            %v1374 = vadd.f32 %v1365, %v1373
            %v1375 = vmul.f32 %v1371, %v1371
            %1376 = vadd.xlane.f32.xlu0 %v1375
            %v1377 = vpop.xlane.xlu0 %1376
            %v1378 = vadd.f32 %v1369, %v1377
            %v1379 = vld [vmem:[%s1370 + $0x8] sm:$0xff]
            %1380 = vadd.xlane.f32.xlu0 %v1379
            %v1381 = vpop.xlane.xlu0 %1380
            %v1382 = vadd.f32 %v1374, %v1381
            %v1383 = vmul.f32 %v1379, %v1379
            %1384 = vadd.xlane.f32.xlu0 %v1383
            %v1385 = vpop.xlane.xlu0 %1384
            %v1386 = vadd.f32 %v1378, %v1385
            %v1387 = vrcp.pop 512.0
            %v1388 = vmul.f32 512.0, %v1387
            %v1389 = vsub.f32 1.0, %v1388
            %v1390 = vmul.f32 %v1387, %v1389
            %v1391 = vadd.f32 %v1387, %v1390
            %vm1392 = vweird.f32 %v1387
            %v1393 = vsel %vm1392, %v1387, %v1391
            %v1394 = vmul.f32 %v1382, %v1393
            %v1395 = vmul.f32 %v1386, %v1393
            %v1396 = vmul.f32 %v1394, %v1394
            %v1397 = vsub.f32 %v1395, %v1396
            %v1398 = vmax.f32 %v1397, 0.0
            %v1399 = vld [vmem:[%s8] sm:$0xff]
            %v1400 = vadd.f32 %v1398, 1e-05
            %v1401 = vrsqrt.pop %v1400
            %v1402 = vmul.f32 %v1401, %v1400
            %v1403 = vmul.f32 %v1402, %v1401
            %v1404 = vmul.f32 0.5, %v1403
            %v1405 = vsub.f32 1.5, %v1404
            %v1406 = vmul.f32 %v1401, %v1405
            %vm1407 = vweird.f32 %v1400
            %vm1408 = vweird.f32 %v1401
            %vm1409 = vmor %vm1407, %vm1408
            %v1410 = vsel %vm1409, %v1401, %v1406
            %v1411 = vmul.f32 %v1399, %v1410
            %v1412 = vld [vmem:[%s9] sm:$0xff]
            %v1413 = vmul.f32 %v1394, %v1411
            %v1414 = vsub.f32 %v1412, %v1413
            %1416 = vset.pattern.permute.xlu0 0
            %1417 = vperm.xlu0 %1416, %v1411
            %v1418 = vpop.permute.xlu0 %1417
            %v1420 = vmul.f32 %v1354, %v1418
            %1422 = vset.pattern.permute.xlu0 0
            %1423 = vperm.xlu0 %1422, %v1414
            %v1424 = vpop.permute.xlu0 %1423
            %v1426 = vadd.f32 %v1420, %v1424
            %v1427 = vmax.f32 %v1426, 0.0
            %1428 = vst [vmem:[#allocation8] sm:$0xff] %v1427
            %v1429 = vld [vmem:[#allocation4 + $0x8] sm:$0xff]
            %v1430 = vmul.f32 %v1429, %v1418
            %v1431 = vadd.f32 %v1430, %v1424
            %v1432 = vmax.f32 %v1431, 0.0
            %1433 = vst [vmem:[#allocation8 + $0x10] sm:$0xff] %v1432
            %v1434 = vld [vmem:[%s1370] sm:$0xff]
            %v1435 = vmul.f32 %v1434, %v1418
            %v1436 = vadd.f32 %v1435, %v1424
            %v1437 = vmax.f32 %v1436, 0.0
            %1438 = vst [vmem:[#allocation8 + $0x8] sm:$0xff] %v1437
            %v1439 = vld [vmem:[%s1370 + $0x8] sm:$0xff]
            %v1440 = vmul.f32 %v1439, %v1418
            %v1441 = vadd.f32 %v1440, %v1424
            %v1442 = vmax.f32 %v1441, 0.0
            %1443 = vst [vmem:[#allocation8 + $0x18] sm:$0xff] %v1442
          $region88: #{tpu_custom_call.1} parent=83 // pred_fallthru
            _
        $region84: #{tpu_custom_call.1} parent=59 // pred_fallthru
          _
        // Predicated region
        $region89: #{tpu_custom_call.1} parent=59 // pred_check
          %p1444 = pneg %p265
        $region90: #{tpu_custom_call.1} parent=59 // pred_check_branch
          %1446 = sbr.rel (%p1444) target = $region92
        $region91: #{tpu_custom_call.1} parent=59 // pred_region
          %1448 = vsyncadd [#allocation7], 0
          %s1449 = sshll.u32 [#allocation8], 4
          %s1450 = int_to_ptr.vmem [resolvable:$true] %s1449
          %s1451 = sshll.u32 %s10, 4
          %s1452 = int_to_ptr.hbm [resolvable:$true] %s1451
          %1457 = dma.vmem_to_hbm [thread:$0]  %s1450, 512, %s1452, [#allocation7], 256, 256, 16
        $region92: #{tpu_custom_call.1} parent=59 // pred_fallthru
          _
        // Predicated region
        $region93: #{tpu_custom_call.1} parent=59 // pred_check
          %p1458 = pneg %p265
        $region94: #{tpu_custom_call.1} parent=59 // pred_check_branch
          %1460 = sbr.rel (%p1458) target = $region96
        $region95: #{tpu_custom_call.1} parent=59 // pred_region
          %1462 = dma.done [#allocation7], 512
        $region96: #{tpu_custom_call.1} parent=59 // pred_fallthru
          _
      $region60: #{tpu_custom_call.1} parent=5 // pred_fallthru
        _
      %p1463 = scmp.le.s32.totalorder 2, %s20
      // Predicated region
      $region97: #{tpu_custom_call.1} parent=5 // pred_check
        %p1464 = pneg %p1463
      $region98: #{tpu_custom_call.1} parent=5 // pred_check_branch
        %1466 = sbr.rel (%p1464) target = $region100
      $region99: #{tpu_custom_call.1} parent=5 // pred_region
        %s1467 = ssub.s32 %s20, 2
      $region100: #{tpu_custom_call.1} parent=5 // pred_fallthru
        _
    $region6: #{tpu_custom_call.1} parent=1 // loop_footer
      %s24 = sadd.s32 1, %s20
    $region7: #{tpu_custom_call.1} parent=1 // loop_footer_branch
      %19 = sbr.rel target = $region3
    $region8: #{tpu_custom_call.1} parent=1 // loop_exit
      _
    %1468 = vsyncpa [#allocation6], 1
    %s1469 = scalar_lea.sflag [#allocation6], 1
    %1470 = vsyncpa %s1469, 1
    %1471 = vsyncpa [#allocation7], 1
    %s1472 = scalar_lea.sflag [#allocation7], 1
    %1473 = vsyncpa %s1472, 1

</llo_original>
